<compile_context>
chip_gen: v7x
topology: tpu7x:2x2x1
jax: 0.10.0
libtpu: 0.0.40
codegen_flags: <defaults>
</compile_context>

<pallas_src>
import functools

import jax
import jax.numpy as jnp
from jax.experimental import pallas as pl
from jax.experimental.pallas import tpu as pltpu


def _scn_kernel(frames_ref, events_ref, masks_ref, wr_ref, we_ref,
                w1o_ref, w1c_ref, s1o_ref, s1c_ref, s2o_ref, s2c_ref,
                wout_ref, out_ref, patches_ref, *, loop, W, HID):
    N = frames_ref.shape[1]            # fused lanes = images_per_block * H*W

    # Per-image border masks (0/1), precomputed in the wrapper; one (1, N)
    # bf16 strip per off-center tap, reused by all five 3x3 convs.
    m_all = masks_ref[...]                                        # (8, N) f32
    masks = [m_all[t:t + 1, :].astype(jnp.bfloat16) for t in range(8)]

    def conv3x3(x_f32, w_off_ref, w_ctr_ref):
        """3x3 SAME conv: (HID, N) f32 -> (HID, N) f32.

        8 off-center taps built in bf16 into the (8*HID, N) scratch and
        contracted in a single MXU matmul (K = 8*HID); center tap handled as
        a separate K=HID 1x1 matmul accumulated on top (no store at all).
        """
        xb = x_f32.astype(jnp.bfloat16)                           # (HID, N)
        x32 = pltpu.bitcast(xb, jnp.uint32) if HID % 2 == 0 else None
        t = 0
        for dy in (-1, 0, 1):
            for dx in (-1, 0, 1):
                if dy == 0 and dx == 0:
                    continue                      # center tap: separate matmul
                s = dy * W + dx                   # flat-index offset of tap
                if x32 is not None:
                    # Lane roll on the 32-bit view (native XLU rotate, half the
                    # vreg traffic of an f32 roll), reinterpret back as bf16.
                    rolled = pltpu.bitcast(pltpu.roll(x32, (-s) % N, 1),
                                           jnp.bfloat16)
                else:
                    # Odd HID fallback: f32 lane roll, cast at the store.
                    rolled = pltpu.roll(x_f32, (-s) % N, 1).astype(jnp.bfloat16)
                patches_ref[t * HID:(t + 1) * HID, :] = rolled * masks[t]
                t += 1
        acc = jnp.dot(w_off_ref[...], patches_ref[...],
                      preferred_element_type=jnp.float32)
        return acc + jnp.dot(w_ctr_ref[...], xb,
                             preferred_element_type=jnp.float32)

    x = frames_ref[...].astype(jnp.bfloat16)                      # (DC, N)
    e = events_ref[...].astype(jnp.bfloat16)                      # (Ce, N)

    # 1x1 convs as lane-dense matmuls (bf16 inputs, f32 accumulation).
    x1 = jnp.dot(wr_ref[...], x, preferred_element_type=jnp.float32)   # (HID, N)
    ev = jax.nn.sigmoid(
        jnp.dot(we_ref[...], e, preferred_element_type=jnp.float32))   # (HID, N)
    ev2 = ev * ev                                   # hoisted loop invariant

    z = conv3x3(x1 * ev, w1o_ref, w1c_ref)

    def refine(tmp):
        ttmp = jnp.maximum(tmp, 0.0)                # shlu
        xx = conv3x3(ttmp, s1o_ref, s1c_ref)        # S1
        xx = xx * ev2
        xx = conv3x3(xx, s2o_ref, s2c_ref)          # S2
        return (ttmp - xx) + z

    if loop <= 4:
        tmp = z
        for _ in range(loop):
            tmp = refine(tmp)
    else:
        # Bounded live ranges / scheduler visibility for long refinement loops.
        tmp = jax.lax.fori_loop(0, loop, lambda _, t: refine(t), z)

    c = jnp.maximum(tmp, 0.0)
    # frames_channels_restore: 1x1 conv back to D*C channels.
    out = jnp.dot(wout_ref[...], c.astype(jnp.bfloat16),
                  preferred_element_type=jnp.float32)             # (DC, N)
    out_ref[...] = out.astype(out_ref.dtype)


def scn_pallas(multi_frame_feature, events, params, loop):
    """multi_frame_feature: (B, D, C, H, W); events: (B, Ce, H, W)."""
    B, D, C, H, W = multi_frame_feature.shape
    Ce = events.shape[1]
    DC = D * C
    HW = H * W
    HID = params["wr"].shape[1]

    # 'b d c h w -> (d c) (b h w)': batch fused into the lane axis.
    frames = multi_frame_feature.reshape(B, DC, HW).transpose(1, 0, 2).reshape(DC, B * HW)
    events_f = events.reshape(B, Ce, HW).transpose(1, 0, 2).reshape(Ce, B * HW)

    cdt = jnp.bfloat16
    # 1x1 weights stored (Cin, Cout) -> kernel wants (Cout, Cin).
    wr = params["wr"].T.astype(cdt)                 # (HID, DC)
    we = params["we"].T.astype(cdt)                 # (HID, Ce)
    wout = params["wout"].T.astype(cdt)             # (DC, HID)

    def prep3(w):
        # HWIO (3,3,Cin,Cout) -> off-center (Cout, 8*Cin) tap-major + center (Cout, Cin).
        taps = []
        for ky in range(3):
            for kx in range(3):
                if ky == 1 and kx == 1:
                    continue
                taps.append(w[ky, kx].T)
        return (jnp.concatenate(taps, axis=1).astype(cdt), w[1, 1].T.astype(cdt))

    w1o, w1c = prep3(params["w1"])
    s1o, s1c = prep3(params["s1"])
    s2o, s2c = prep3(params["s2"])

    # Per-image border-validity masks for the 8 off-center taps (hoisted out
    # of the kernel).  Tap order matches prep3 / the kernel's dy,dx loop.
    pos = jnp.arange(HW, dtype=jnp.int32)
    hh = pos // W
    ww = pos - hh * W
    rows = []
    for dy in (-1, 0, 1):
        for dx in (-1, 0, 1):
            if dy == 0 and dx == 0:
                continue
            rows.append((hh >= -dy) & (hh < H - dy) & (ww >= -dx) & (ww < W - dx))
    masks_img = jnp.stack(rows, 0).astype(jnp.float32)            # (8, HW)

    # --- block sizing: images per program, bounded by this chip's VMEM. ----
    try:
        info = pltpu.get_tpu_info()
        vmem_cap = int(getattr(info, "vmem_capacity_bytes", 64 * 2**20))
    except Exception:                               # non-TPU / API drift
        vmem_cap = 64 * 2**20
    per_lane = (2 * DC * 4            # frames block (f32, double-buffered)
                + 2 * Ce * 4          # events block
                + 2 * DC * 4          # output block
                + 8 * 4               # mask strips (f32)
                + 8 * HID * 2         # im2col patch scratch (bf16)
                + 6 * HID * 4)        # live f32 activations (ev, ev2, z, tmp, ...)
    budget = int(0.4 * vmem_cap)
    divisors = [g for g in range(1, B + 1) if B % g == 0]
    fitting = [g for g in divisors if g * HW * per_lane <= budget] or [1]
    G = max(fitting)
    # Keep >= 2 "parallel" programs (v7x has 2 TensorCores) when each program
    # still gets enough lanes to amortize per-step pipeline overhead.
    if G == B and B > 1:
        smaller = [g for g in fitting if g < B]
        if smaller and max(smaller) * HW >= 2048:
            G = max(smaller)
    # Lane-dim blocks must be a multiple of 128 unless they span the full axis.
    if B // G > 1 and (G * HW) % 128 != 0:
        G = B
    NB = B // G
    NBLK = G * HW
    # TODO(synk): for H*W so large that a single image exceeds the VMEM budget,
    # add a spatial row-block grid axis with a 1-row halo instead of G=1.

    vmem_limit = int(min(0.75 * vmem_cap,
                         max(32 * 2**20, 1.5 * NBLK * per_lane + 4 * 2**20)))

    masks = jnp.tile(masks_img, (1, G))             # (8, NBLK)

    kernel = functools.partial(_scn_kernel, loop=loop, W=W, HID=HID)

    def const_spec(a):
        return pl.BlockSpec(a.shape, lambda i: (0, 0))

    out = pl.pallas_call(
        kernel,
        out_shape=jax.ShapeDtypeStruct((DC, B * HW), jnp.float32),
        grid_spec=pltpu.PrefetchScalarGridSpec(
            num_scalar_prefetch=0,
            grid=(NB,),
            in_specs=[
                pl.BlockSpec((DC, NBLK), lambda i: (0, i)),
                pl.BlockSpec((Ce, NBLK), lambda i: (0, i)),
                const_spec(masks),
                const_spec(wr), const_spec(we),
                const_spec(w1o), const_spec(w1c),
                const_spec(s1o), const_spec(s1c),
                const_spec(s2o), const_spec(s2c),
                const_spec(wout),
            ],
            out_specs=pl.BlockSpec((DC, NBLK), lambda i: (0, i)),
            # im2col patch buffer: 8 off-center taps x HID channels, bf16.
            scratch_shapes=[pltpu.VMEM((8 * HID, NBLK), jnp.bfloat16)],
        ),
        compiler_params=pltpu.CompilerParams(
            dimension_semantics=("parallel",),
            vmem_limit_bytes=vmem_limit,
        ),
    )(frames, events_f, masks, wr, we, w1o, w1c, s1o, s1c, s2o, s2c, wout)

    # '(d c) (b h w) -> b d c h w'
    return out.reshape(DC, B, HW).transpose(1, 0, 2).reshape(B, D, C, H, W)


def scn_reference(multi_frame_feature, events, params, loop):
    """Pure-JAX (f32, highest precision) reference of the PyTorch forward."""
    B, D, C, H, W = multi_frame_feature.shape
    DC = D * C
    x = multi_frame_feature.reshape(B, DC, H, W).transpose(0, 2, 3, 1)
    e = events.transpose(0, 2, 3, 1)
    hp = jax.lax.Precision.HIGHEST

    def conv1x1(a, w):  # w: (Cin, Cout)
        return jnp.einsum('bhwc,cd->bhwd', a, w, precision=hp)

    def conv3x3(a, w):  # w: (3, 3, Cin, Cout) HWIO
        return jax.lax.conv_general_dilated(
            a, w, (1, 1), 'SAME',
            dimension_numbers=('NHWC', 'HWIO', 'NHWC'), precision=hp)

    x1 = conv1x1(x, params["wr"])
    ev = jax.nn.sigmoid(conv1x1(e, params["we"]))
    x1 = x1 * ev
    z = conv3x3(x1, params["w1"])
    tmp = z
    for _ in range(loop):
        ttmp = jnp.maximum(tmp, 0.0)
        xx = conv3x3(ttmp, params["s1"]) * ev * ev
        xx = conv3x3(xx, params["s2"])
        tmp = (ttmp - xx) + z
    c = jnp.maximum(tmp, 0.0)
    out = conv1x1(c, params["wout"])
    return out.transpose(0, 3, 1, 2).reshape(B, D, C, H, W)


def init_params(key, frames_channels, events_channels, hidden_channels):
    """Deterministic synthetic weights (1x1 as (Cin,Cout), 3x3 as HWIO)."""
    ks = jax.random.split(key, 6)
    scale = 0.1
    return {
        "wr":   scale * jax.random.normal(ks[0], (frames_channels, hidden_channels), jnp.float32),
        "we":   scale * jax.random.normal(ks[1], (events_channels, hidden_channels), jnp.float32),
        "w1":   scale * jax.random.normal(ks[2], (3, 3, hidden_channels, hidden_channels), jnp.float32),
        "s1":   scale * jax.random.normal(ks[3], (3, 3, hidden_channels, hidden_channels), jnp.float32),
        "s2":   scale * jax.random.normal(ks[4], (3, 3, hidden_channels, hidden_channels), jnp.float32),
        "wout": scale * jax.random.normal(ks[5], (hidden_channels, frames_channels), jnp.float32),
    }


if __name__ == "__main__":
    key = jax.random.PRNGKey(0)
    B, D, C, H, W = 2, 2, 4, 16, 16
    Ce = 4
    frames_channels = D * C          # 8 (must equal D*C per the forward's rearrange)
    hidden_channels = 32
    loop = 2

    k_f, k_e, k_p = jax.random.split(key, 3)
    multi_frame_feature = jax.random.normal(k_f, (B, D, C, H, W), jnp.float32)
    events = jax.random.normal(k_e, (B, Ce, H, W), jnp.float32)
    params = init_params(k_p, frames_channels, Ce, hidden_channels)

    out = scn_pallas(multi_frame_feature, events, params, loop)
    out = jax.block_until_ready(out)

    ref = scn_reference(multi_frame_feature, events, params, loop)
    assert out.shape == (B, D, C, H, W)
    # Tolerance relaxed vs. the f32 reference because matmul inputs are bf16
    # (f32 accumulation); structural errors would be O(0.1+) and still caught.
    assert jnp.allclose(out, ref, atol=3e-2, rtol=3e-2), "mismatch vs JAX reference"

    print("KERNEL_OK")
</pallas_src>

<mosaic_0001>
module attributes {stable_mosaic.version = 11 : i64} {
  func.func @_scn_kernel(%arg0: i32, %arg1: memref<8x512xf32, #tpu.memory_space<vmem>>, %arg2: memref<4x512xf32, #tpu.memory_space<vmem>>, %arg3: memref<8x512xf32, #tpu.memory_space<vmem>>, %arg4: memref<32x8xbf16, #tpu.memory_space<vmem>>, %arg5: memref<32x4xbf16, #tpu.memory_space<vmem>>, %arg6: memref<32x256xbf16, #tpu.memory_space<vmem>>, %arg7: memref<32x32xbf16, #tpu.memory_space<vmem>>, %arg8: memref<32x256xbf16, #tpu.memory_space<vmem>>, %arg9: memref<32x32xbf16, #tpu.memory_space<vmem>>, %arg10: memref<32x256xbf16, #tpu.memory_space<vmem>>, %arg11: memref<32x32xbf16, #tpu.memory_space<vmem>>, %arg12: memref<8x32xbf16, #tpu.memory_space<vmem>>, %arg13: memref<8x512xf32, #tpu.memory_space<vmem>>, %arg14: memref<256x512xbf16, #tpu.memory_space<vmem>>) attributes {dimension_semantics = [#tpu.dimension_semantics<parallel>], iteration_bounds = array<i64: 1>, scalar_prefetch = 0 : i64, scratch_operands = 1 : i64, tpu.core_type = #tpu.core_type<tc>, window_params = [{transform_indices = @transform_0, window_bounds = array<i64: 8, 512>}, {transform_indices = @transform_1, window_bounds = array<i64: 4, 512>}, {pipeline_mode = #tpu.pipeline_mode<synchronous>, transform_indices = @transform_2, window_bounds = array<i64: 8, 512>}, {pipeline_mode = #tpu.pipeline_mode<synchronous>, transform_indices = @transform_3, window_bounds = array<i64: 32, 8>}, {pipeline_mode = #tpu.pipeline_mode<synchronous>, transform_indices = @transform_4, window_bounds = array<i64: 32, 4>}, {pipeline_mode = #tpu.pipeline_mode<synchronous>, transform_indices = @transform_5, window_bounds = array<i64: 32, 256>}, {pipeline_mode = #tpu.pipeline_mode<synchronous>, transform_indices = @transform_6, window_bounds = array<i64: 32, 32>}, {pipeline_mode = #tpu.pipeline_mode<synchronous>, transform_indices = @transform_7, window_bounds = array<i64: 32, 256>}, {pipeline_mode = #tpu.pipeline_mode<synchronous>, transform_indices = @transform_8, window_bounds = array<i64: 32, 32>}, {pipeline_mode = #tpu.pipeline_mode<synchronous>, transform_indices = @transform_9, window_bounds = array<i64: 32, 256>}, {pipeline_mode = #tpu.pipeline_mode<synchronous>, transform_indices = @transform_10, window_bounds = array<i64: 32, 32>}, {pipeline_mode = #tpu.pipeline_mode<synchronous>, transform_indices = @transform_11, window_bounds = array<i64: 8, 32>}, {transform_indices = @transform_12, window_bounds = array<i64: 8, 512>}]} {
    %c0 = arith.constant 0 : index
    %c0_0 = arith.constant 0 : index
    %0 = vector.load %arg3[%c0, %c0_0] : memref<8x512xf32, #tpu.memory_space<vmem>>, vector<8x512xf32>
    %1 = vector.extract_strided_slice %0 {offsets = [0, 0], sizes = [1, 512], strides = [1, 1]} : vector<8x512xf32> to vector<1x512xf32>
    %2 = arith.truncf %1 : vector<1x512xf32> to vector<1x512xbf16>
    %3 = vector.extract_strided_slice %0 {offsets = [1, 0], sizes = [1, 512], strides = [1, 1]} : vector<8x512xf32> to vector<1x512xf32>
    %4 = arith.truncf %3 : vector<1x512xf32> to vector<1x512xbf16>
    %5 = vector.extract_strided_slice %0 {offsets = [2, 0], sizes = [1, 512], strides = [1, 1]} : vector<8x512xf32> to vector<1x512xf32>
    %6 = arith.truncf %5 : vector<1x512xf32> to vector<1x512xbf16>
    %7 = vector.extract_strided_slice %0 {offsets = [3, 0], sizes = [1, 512], strides = [1, 1]} : vector<8x512xf32> to vector<1x512xf32>
    %8 = arith.truncf %7 : vector<1x512xf32> to vector<1x512xbf16>
    %9 = vector.extract_strided_slice %0 {offsets = [4, 0], sizes = [1, 512], strides = [1, 1]} : vector<8x512xf32> to vector<1x512xf32>
    %10 = arith.truncf %9 : vector<1x512xf32> to vector<1x512xbf16>
    %11 = vector.extract_strided_slice %0 {offsets = [5, 0], sizes = [1, 512], strides = [1, 1]} : vector<8x512xf32> to vector<1x512xf32>
    %12 = arith.truncf %11 : vector<1x512xf32> to vector<1x512xbf16>
    %13 = vector.extract_strided_slice %0 {offsets = [6, 0], sizes = [1, 512], strides = [1, 1]} : vector<8x512xf32> to vector<1x512xf32>
    %14 = arith.truncf %13 : vector<1x512xf32> to vector<1x512xbf16>
    %15 = vector.extract_strided_slice %0 {offsets = [7, 0], sizes = [1, 512], strides = [1, 1]} : vector<8x512xf32> to vector<1x512xf32>
    %16 = arith.truncf %15 : vector<1x512xf32> to vector<1x512xbf16>
    %c0_1 = arith.constant 0 : index
    %c0_2 = arith.constant 0 : index
    %17 = vector.load %arg1[%c0_1, %c0_2] : memref<8x512xf32, #tpu.memory_space<vmem>>, vector<8x512xf32>
    %18 = arith.truncf %17 : vector<8x512xf32> to vector<8x512xbf16>
    %c0_3 = arith.constant 0 : index
    %c0_4 = arith.constant 0 : index
    %19 = vector.load %arg2[%c0_3, %c0_4] : memref<4x512xf32, #tpu.memory_space<vmem>>, vector<4x512xf32>
    %20 = arith.truncf %19 : vector<4x512xf32> to vector<4x512xbf16>
    %c0_5 = arith.constant 0 : index
    %c0_6 = arith.constant 0 : index
    %21 = vector.load %arg4[%c0_5, %c0_6] : memref<32x8xbf16, #tpu.memory_space<vmem>>, vector<32x8xbf16>
    %cst = arith.constant dense<0.000000e+00> : vector<32x512xf32>
    %22 = tpu.matmul %21, %18, %cst {dimension_numbers = #tpu.dot_dimension_numbers<[1], [0], [0], [1], [0, 0, 1, 1], [], []>} : vector<32x8xbf16>, vector<8x512xbf16>, vector<32x512xf32> -> vector<32x512xf32>
    %c0_7 = arith.constant 0 : index
    %c0_8 = arith.constant 0 : index
    %23 = vector.load %arg5[%c0_7, %c0_8] : memref<32x4xbf16, #tpu.memory_space<vmem>>, vector<32x4xbf16>
    %cst_9 = arith.constant dense<0.000000e+00> : vector<32x512xf32>
    %24 = tpu.matmul %23, %20, %cst_9 {dimension_numbers = #tpu.dot_dimension_numbers<[1], [0], [0], [1], [0, 0, 1, 1], [], []>} : vector<32x4xbf16>, vector<4x512xbf16>, vector<32x512xf32> -> vector<32x512xf32>
    %25 = arith.negf %24 : vector<32x512xf32>
    %26 = math.exp %25 : vector<32x512xf32>
    %cst_10 = arith.constant 1.000000e+00 : f32
    %27 = vector.broadcast %cst_10 : f32 to vector<32x512xf32>
    %28 = arith.addf %27, %26 : vector<32x512xf32>
    %29 = arith.divf %27, %28 : vector<32x512xf32>
    %30 = arith.mulf %29, %29 : vector<32x512xf32>
    %31 = arith.mulf %22, %29 : vector<32x512xf32>
    %32 = arith.truncf %31 : vector<32x512xf32> to vector<32x512xbf16>
    %33 = tpu.bitcast %32 : vector<32x512xbf16> -> vector<16x512xi32>
    %c17_i32 = arith.constant 17 : i32
    %34 = tpu.dynamic_rotate %33 by %c17_i32 dim 1 : vector<16x512xi32>, i32 -> vector<16x512xi32>
    %35 = tpu.bitcast %34 : vector<16x512xi32> -> vector<32x512xbf16>
    %36 = vector.broadcast %2 : vector<1x512xbf16> to vector<32x512xbf16>
    %37 = arith.mulf %35, %36 : vector<32x512xbf16>
    %c0_11 = arith.constant 0 : index
    %c0_12 = arith.constant 0 : index
    %38 = vector.load %arg14[%c0_11, %c0_12] : memref<256x512xbf16, #tpu.memory_space<vmem>>, vector<32x512xbf16>
    tpu.vector_store %arg14[%c0_11, %c0_12], %37 {strides = array<i32>} : memref<256x512xbf16, #tpu.memory_space<vmem>>, vector<32x512xbf16>,
    %c16_i32 = arith.constant 16 : i32
    %39 = tpu.dynamic_rotate %33 by %c16_i32 dim 1 : vector<16x512xi32>, i32 -> vector<16x512xi32>
    %40 = tpu.bitcast %39 : vector<16x512xi32> -> vector<32x512xbf16>
    %41 = vector.broadcast %4 : vector<1x512xbf16> to vector<32x512xbf16>
    %42 = arith.mulf %40, %41 : vector<32x512xbf16>
    %c32 = arith.constant 32 : index
    %c0_13 = arith.constant 0 : index
    %43 = vector.load %arg14[%c32, %c0_13] : memref<256x512xbf16, #tpu.memory_space<vmem>>, vector<32x512xbf16>
    tpu.vector_store %arg14[%c32, %c0_13], %42 {strides = array<i32>} : memref<256x512xbf16, #tpu.memory_space<vmem>>, vector<32x512xbf16>,
    %c15_i32 = arith.constant 15 : i32
    %44 = tpu.dynamic_rotate %33 by %c15_i32 dim 1 : vector<16x512xi32>, i32 -> vector<16x512xi32>
    %45 = tpu.bitcast %44 : vector<16x512xi32> -> vector<32x512xbf16>
    %46 = vector.broadcast %6 : vector<1x512xbf16> to vector<32x512xbf16>
    %47 = arith.mulf %45, %46 : vector<32x512xbf16>
    %c64 = arith.constant 64 : index
    %c0_14 = arith.constant 0 : index
    %48 = vector.load %arg14[%c64, %c0_14] : memref<256x512xbf16, #tpu.memory_space<vmem>>, vector<32x512xbf16>
    tpu.vector_store %arg14[%c64, %c0_14], %47 {strides = array<i32>} : memref<256x512xbf16, #tpu.memory_space<vmem>>, vector<32x512xbf16>,
    %c1_i32 = arith.constant 1 : i32
    %49 = tpu.dynamic_rotate %33 by %c1_i32 dim 1 : vector<16x512xi32>, i32 -> vector<16x512xi32>
    %50 = tpu.bitcast %49 : vector<16x512xi32> -> vector<32x512xbf16>
    %51 = vector.broadcast %8 : vector<1x512xbf16> to vector<32x512xbf16>
    %52 = arith.mulf %50, %51 : vector<32x512xbf16>
    %c96 = arith.constant 96 : index
    %c0_15 = arith.constant 0 : index
    %53 = vector.load %arg14[%c96, %c0_15] : memref<256x512xbf16, #tpu.memory_space<vmem>>, vector<32x512xbf16>
    tpu.vector_store %arg14[%c96, %c0_15], %52 {strides = array<i32>} : memref<256x512xbf16, #tpu.memory_space<vmem>>, vector<32x512xbf16>,
    %c511_i32 = arith.constant 511 : i32
    %54 = tpu.dynamic_rotate %33 by %c511_i32 dim 1 : vector<16x512xi32>, i32 -> vector<16x512xi32>
    %55 = tpu.bitcast %54 : vector<16x512xi32> -> vector<32x512xbf16>
    %56 = vector.broadcast %10 : vector<1x512xbf16> to vector<32x512xbf16>
    %57 = arith.mulf %55, %56 : vector<32x512xbf16>
    %c128 = arith.constant 128 : index
    %c0_16 = arith.constant 0 : index
    %58 = vector.load %arg14[%c128, %c0_16] : memref<256x512xbf16, #tpu.memory_space<vmem>>, vector<32x512xbf16>
    tpu.vector_store %arg14[%c128, %c0_16], %57 {strides = array<i32>} : memref<256x512xbf16, #tpu.memory_space<vmem>>, vector<32x512xbf16>,
    %c497_i32 = arith.constant 497 : i32
    %59 = tpu.dynamic_rotate %33 by %c497_i32 dim 1 : vector<16x512xi32>, i32 -> vector<16x512xi32>
    %60 = tpu.bitcast %59 : vector<16x512xi32> -> vector<32x512xbf16>
    %61 = vector.broadcast %12 : vector<1x512xbf16> to vector<32x512xbf16>
    %62 = arith.mulf %60, %61 : vector<32x512xbf16>
    %c160 = arith.constant 160 : index
    %c0_17 = arith.constant 0 : index
    %63 = vector.load %arg14[%c160, %c0_17] : memref<256x512xbf16, #tpu.memory_space<vmem>>, vector<32x512xbf16>
    tpu.vector_store %arg14[%c160, %c0_17], %62 {strides = array<i32>} : memref<256x512xbf16, #tpu.memory_space<vmem>>, vector<32x512xbf16>,
    %c496_i32 = arith.constant 496 : i32
    %64 = tpu.dynamic_rotate %33 by %c496_i32 dim 1 : vector<16x512xi32>, i32 -> vector<16x512xi32>
    %65 = tpu.bitcast %64 : vector<16x512xi32> -> vector<32x512xbf16>
    %66 = vector.broadcast %14 : vector<1x512xbf16> to vector<32x512xbf16>
    %67 = arith.mulf %65, %66 : vector<32x512xbf16>
    %c192 = arith.constant 192 : index
    %c0_18 = arith.constant 0 : index
    %68 = vector.load %arg14[%c192, %c0_18] : memref<256x512xbf16, #tpu.memory_space<vmem>>, vector<32x512xbf16>
    tpu.vector_store %arg14[%c192, %c0_18], %67 {strides = array<i32>} : memref<256x512xbf16, #tpu.memory_space<vmem>>, vector<32x512xbf16>,
    %c495_i32 = arith.constant 495 : i32
    %69 = tpu.dynamic_rotate %33 by %c495_i32 dim 1 : vector<16x512xi32>, i32 -> vector<16x512xi32>
    %70 = tpu.bitcast %69 : vector<16x512xi32> -> vector<32x512xbf16>
    %71 = vector.broadcast %16 : vector<1x512xbf16> to vector<32x512xbf16>
    %72 = arith.mulf %70, %71 : vector<32x512xbf16>
    %c224 = arith.constant 224 : index
    %c0_19 = arith.constant 0 : index
    %73 = vector.load %arg14[%c224, %c0_19] : memref<256x512xbf16, #tpu.memory_space<vmem>>, vector<32x512xbf16>
    tpu.vector_store %arg14[%c224, %c0_19], %72 {strides = array<i32>} : memref<256x512xbf16, #tpu.memory_space<vmem>>, vector<32x512xbf16>,
    %c0_20 = arith.constant 0 : index
    %c0_21 = arith.constant 0 : index
    %74 = vector.load %arg6[%c0_20, %c0_21] : memref<32x256xbf16, #tpu.memory_space<vmem>>, vector<32x256xbf16>
    %c0_22 = arith.constant 0 : index
    %c0_23 = arith.constant 0 : index
    %75 = vector.load %arg14[%c0_22, %c0_23] : memref<256x512xbf16, #tpu.memory_space<vmem>>, vector<256x512xbf16>
    %cst_24 = arith.constant dense<0.000000e+00> : vector<32x512xf32>
    %76 = tpu.matmul %74, %75, %cst_24 {dimension_numbers = #tpu.dot_dimension_numbers<[1], [0], [0], [1], [0, 0, 1, 1], [], []>} : vector<32x256xbf16>, vector<256x512xbf16>, vector<32x512xf32> -> vector<32x512xf32>
    %c0_25 = arith.constant 0 : index
    %c0_26 = arith.constant 0 : index
    %77 = vector.load %arg7[%c0_25, %c0_26] : memref<32x32xbf16, #tpu.memory_space<vmem>>, vector<32x32xbf16>
    %cst_27 = arith.constant dense<0.000000e+00> : vector<32x512xf32>
    %78 = tpu.matmul %77, %32, %cst_27 {dimension_numbers = #tpu.dot_dimension_numbers<[1], [0], [0], [1], [0, 0, 1, 1], [], []>} : vector<32x32xbf16>, vector<32x512xbf16>, vector<32x512xf32> -> vector<32x512xf32>
    %79 = arith.addf %76, %78 : vector<32x512xf32>
    %cst_28 = arith.constant 0.000000e+00 : f32
    %80 = vector.broadcast %cst_28 : f32 to vector<32x512xf32>
    %81 = arith.maximumf %79, %80 : vector<32x512xf32>
    %82 = arith.truncf %81 : vector<32x512xf32> to vector<32x512xbf16>
    %83 = tpu.bitcast %82 : vector<32x512xbf16> -> vector<16x512xi32>
    %c17_i32_29 = arith.constant 17 : i32
    %84 = tpu.dynamic_rotate %83 by %c17_i32_29 dim 1 : vector<16x512xi32>, i32 -> vector<16x512xi32>
    %85 = tpu.bitcast %84 : vector<16x512xi32> -> vector<32x512xbf16>
    %86 = vector.broadcast %2 : vector<1x512xbf16> to vector<32x512xbf16>
    %87 = arith.mulf %85, %86 : vector<32x512xbf16>
    %c0_30 = arith.constant 0 : index
    %c0_31 = arith.constant 0 : index
    %88 = vector.load %arg14[%c0_30, %c0_31] : memref<256x512xbf16, #tpu.memory_space<vmem>>, vector<32x512xbf16>
    tpu.vector_store %arg14[%c0_30, %c0_31], %87 {strides = array<i32>} : memref<256x512xbf16, #tpu.memory_space<vmem>>, vector<32x512xbf16>,
    %c16_i32_32 = arith.constant 16 : i32
    %89 = tpu.dynamic_rotate %83 by %c16_i32_32 dim 1 : vector<16x512xi32>, i32 -> vector<16x512xi32>
    %90 = tpu.bitcast %89 : vector<16x512xi32> -> vector<32x512xbf16>
    %91 = vector.broadcast %4 : vector<1x512xbf16> to vector<32x512xbf16>
    %92 = arith.mulf %90, %91 : vector<32x512xbf16>
    %c32_33 = arith.constant 32 : index
    %c0_34 = arith.constant 0 : index
    %93 = vector.load %arg14[%c32_33, %c0_34] : memref<256x512xbf16, #tpu.memory_space<vmem>>, vector<32x512xbf16>
    tpu.vector_store %arg14[%c32_33, %c0_34], %92 {strides = array<i32>} : memref<256x512xbf16, #tpu.memory_space<vmem>>, vector<32x512xbf16>,
    %c15_i32_35 = arith.constant 15 : i32
    %94 = tpu.dynamic_rotate %83 by %c15_i32_35 dim 1 : vector<16x512xi32>, i32 -> vector<16x512xi32>
    %95 = tpu.bitcast %94 : vector<16x512xi32> -> vector<32x512xbf16>
    %96 = vector.broadcast %6 : vector<1x512xbf16> to vector<32x512xbf16>
    %97 = arith.mulf %95, %96 : vector<32x512xbf16>
    %c64_36 = arith.constant 64 : index
    %c0_37 = arith.constant 0 : index
    %98 = vector.load %arg14[%c64_36, %c0_37] : memref<256x512xbf16, #tpu.memory_space<vmem>>, vector<32x512xbf16>
    tpu.vector_store %arg14[%c64_36, %c0_37], %97 {strides = array<i32>} : memref<256x512xbf16, #tpu.memory_space<vmem>>, vector<32x512xbf16>,
    %c1_i32_38 = arith.constant 1 : i32
    %99 = tpu.dynamic_rotate %83 by %c1_i32_38 dim 1 : vector<16x512xi32>, i32 -> vector<16x512xi32>
    %100 = tpu.bitcast %99 : vector<16x512xi32> -> vector<32x512xbf16>
    %101 = vector.broadcast %8 : vector<1x512xbf16> to vector<32x512xbf16>
    %102 = arith.mulf %100, %101 : vector<32x512xbf16>
    %c96_39 = arith.constant 96 : index
    %c0_40 = arith.constant 0 : index
    %103 = vector.load %arg14[%c96_39, %c0_40] : memref<256x512xbf16, #tpu.memory_space<vmem>>, vector<32x512xbf16>
    tpu.vector_store %arg14[%c96_39, %c0_40], %102 {strides = array<i32>} : memref<256x512xbf16, #tpu.memory_space<vmem>>, vector<32x512xbf16>,
    %c511_i32_41 = arith.constant 511 : i32
    %104 = tpu.dynamic_rotate %83 by %c511_i32_41 dim 1 : vector<16x512xi32>, i32 -> vector<16x512xi32>
    %105 = tpu.bitcast %104 : vector<16x512xi32> -> vector<32x512xbf16>
    %106 = vector.broadcast %10 : vector<1x512xbf16> to vector<32x512xbf16>
    %107 = arith.mulf %105, %106 : vector<32x512xbf16>
    %c128_42 = arith.constant 128 : index
    %c0_43 = arith.constant 0 : index
    %108 = vector.load %arg14[%c128_42, %c0_43] : memref<256x512xbf16, #tpu.memory_space<vmem>>, vector<32x512xbf16>
    tpu.vector_store %arg14[%c128_42, %c0_43], %107 {strides = array<i32>} : memref<256x512xbf16, #tpu.memory_space<vmem>>, vector<32x512xbf16>,
    %c497_i32_44 = arith.constant 497 : i32
    %109 = tpu.dynamic_rotate %83 by %c497_i32_44 dim 1 : vector<16x512xi32>, i32 -> vector<16x512xi32>
    %110 = tpu.bitcast %109 : vector<16x512xi32> -> vector<32x512xbf16>
    %111 = vector.broadcast %12 : vector<1x512xbf16> to vector<32x512xbf16>
    %112 = arith.mulf %110, %111 : vector<32x512xbf16>
    %c160_45 = arith.constant 160 : index
    %c0_46 = arith.constant 0 : index
    %113 = vector.load %arg14[%c160_45, %c0_46] : memref<256x512xbf16, #tpu.memory_space<vmem>>, vector<32x512xbf16>
    tpu.vector_store %arg14[%c160_45, %c0_46], %112 {strides = array<i32>} : memref<256x512xbf16, #tpu.memory_space<vmem>>, vector<32x512xbf16>,
    %c496_i32_47 = arith.constant 496 : i32
    %114 = tpu.dynamic_rotate %83 by %c496_i32_47 dim 1 : vector<16x512xi32>, i32 -> vector<16x512xi32>
    %115 = tpu.bitcast %114 : vector<16x512xi32> -> vector<32x512xbf16>
    %116 = vector.broadcast %14 : vector<1x512xbf16> to vector<32x512xbf16>
    %117 = arith.mulf %115, %116 : vector<32x512xbf16>
    %c192_48 = arith.constant 192 : index
    %c0_49 = arith.constant 0 : index
    %118 = vector.load %arg14[%c192_48, %c0_49] : memref<256x512xbf16, #tpu.memory_space<vmem>>, vector<32x512xbf16>
    tpu.vector_store %arg14[%c192_48, %c0_49], %117 {strides = array<i32>} : memref<256x512xbf16, #tpu.memory_space<vmem>>, vector<32x512xbf16>,
    %c495_i32_50 = arith.constant 495 : i32
    %119 = tpu.dynamic_rotate %83 by %c495_i32_50 dim 1 : vector<16x512xi32>, i32 -> vector<16x512xi32>
    %120 = tpu.bitcast %119 : vector<16x512xi32> -> vector<32x512xbf16>
    %121 = vector.broadcast %16 : vector<1x512xbf16> to vector<32x512xbf16>
    %122 = arith.mulf %120, %121 : vector<32x512xbf16>
    %c224_51 = arith.constant 224 : index
    %c0_52 = arith.constant 0 : index
    %123 = vector.load %arg14[%c224_51, %c0_52] : memref<256x512xbf16, #tpu.memory_space<vmem>>, vector<32x512xbf16>
    tpu.vector_store %arg14[%c224_51, %c0_52], %122 {strides = array<i32>} : memref<256x512xbf16, #tpu.memory_space<vmem>>, vector<32x512xbf16>,
    %c0_53 = arith.constant 0 : index
    %c0_54 = arith.constant 0 : index
    %124 = vector.load %arg8[%c0_53, %c0_54] : memref<32x256xbf16, #tpu.memory_space<vmem>>, vector<32x256xbf16>
    %c0_55 = arith.constant 0 : index
    %c0_56 = arith.constant 0 : index
    %125 = vector.load %arg14[%c0_55, %c0_56] : memref<256x512xbf16, #tpu.memory_space<vmem>>, vector<256x512xbf16>
    %cst_57 = arith.constant dense<0.000000e+00> : vector<32x512xf32>
    %126 = tpu.matmul %124, %125, %cst_57 {dimension_numbers = #tpu.dot_dimension_numbers<[1], [0], [0], [1], [0, 0, 1, 1], [], []>} : vector<32x256xbf16>, vector<256x512xbf16>, vector<32x512xf32> -> vector<32x512xf32>
    %c0_58 = arith.constant 0 : index
    %c0_59 = arith.constant 0 : index
    %127 = vector.load %arg9[%c0_58, %c0_59] : memref<32x32xbf16, #tpu.memory_space<vmem>>, vector<32x32xbf16>
    %cst_60 = arith.constant dense<0.000000e+00> : vector<32x512xf32>
    %128 = tpu.matmul %127, %82, %cst_60 {dimension_numbers = #tpu.dot_dimension_numbers<[1], [0], [0], [1], [0, 0, 1, 1], [], []>} : vector<32x32xbf16>, vector<32x512xbf16>, vector<32x512xf32> -> vector<32x512xf32>
    %129 = arith.addf %126, %128 : vector<32x512xf32>
    %130 = arith.mulf %129, %30 : vector<32x512xf32>
    %131 = arith.truncf %130 : vector<32x512xf32> to vector<32x512xbf16>
    %132 = tpu.bitcast %131 : vector<32x512xbf16> -> vector<16x512xi32>
    %c17_i32_61 = arith.constant 17 : i32
    %133 = tpu.dynamic_rotate %132 by %c17_i32_61 dim 1 : vector<16x512xi32>, i32 -> vector<16x512xi32>
    %134 = tpu.bitcast %133 : vector<16x512xi32> -> vector<32x512xbf16>
    %135 = vector.broadcast %2 : vector<1x512xbf16> to vector<32x512xbf16>
    %136 = arith.mulf %134, %135 : vector<32x512xbf16>
    %c0_62 = arith.constant 0 : index
    %c0_63 = arith.constant 0 : index
    %137 = vector.load %arg14[%c0_62, %c0_63] : memref<256x512xbf16, #tpu.memory_space<vmem>>, vector<32x512xbf16>
    tpu.vector_store %arg14[%c0_62, %c0_63], %136 {strides = array<i32>} : memref<256x512xbf16, #tpu.memory_space<vmem>>, vector<32x512xbf16>,
    %c16_i32_64 = arith.constant 16 : i32
    %138 = tpu.dynamic_rotate %132 by %c16_i32_64 dim 1 : vector<16x512xi32>, i32 -> vector<16x512xi32>
    %139 = tpu.bitcast %138 : vector<16x512xi32> -> vector<32x512xbf16>
    %140 = vector.broadcast %4 : vector<1x512xbf16> to vector<32x512xbf16>
    %141 = arith.mulf %139, %140 : vector<32x512xbf16>
    %c32_65 = arith.constant 32 : index
    %c0_66 = arith.constant 0 : index
    %142 = vector.load %arg14[%c32_65, %c0_66] : memref<256x512xbf16, #tpu.memory_space<vmem>>, vector<32x512xbf16>
    tpu.vector_store %arg14[%c32_65, %c0_66], %141 {strides = array<i32>} : memref<256x512xbf16, #tpu.memory_space<vmem>>, vector<32x512xbf16>,
    %c15_i32_67 = arith.constant 15 : i32
    %143 = tpu.dynamic_rotate %132 by %c15_i32_67 dim 1 : vector<16x512xi32>, i32 -> vector<16x512xi32>
    %144 = tpu.bitcast %143 : vector<16x512xi32> -> vector<32x512xbf16>
    %145 = vector.broadcast %6 : vector<1x512xbf16> to vector<32x512xbf16>
    %146 = arith.mulf %144, %145 : vector<32x512xbf16>
    %c64_68 = arith.constant 64 : index
    %c0_69 = arith.constant 0 : index
    %147 = vector.load %arg14[%c64_68, %c0_69] : memref<256x512xbf16, #tpu.memory_space<vmem>>, vector<32x512xbf16>
    tpu.vector_store %arg14[%c64_68, %c0_69], %146 {strides = array<i32>} : memref<256x512xbf16, #tpu.memory_space<vmem>>, vector<32x512xbf16>,
    %c1_i32_70 = arith.constant 1 : i32
    %148 = tpu.dynamic_rotate %132 by %c1_i32_70 dim 1 : vector<16x512xi32>, i32 -> vector<16x512xi32>
    %149 = tpu.bitcast %148 : vector<16x512xi32> -> vector<32x512xbf16>
    %150 = vector.broadcast %8 : vector<1x512xbf16> to vector<32x512xbf16>
    %151 = arith.mulf %149, %150 : vector<32x512xbf16>
    %c96_71 = arith.constant 96 : index
    %c0_72 = arith.constant 0 : index
    %152 = vector.load %arg14[%c96_71, %c0_72] : memref<256x512xbf16, #tpu.memory_space<vmem>>, vector<32x512xbf16>
    tpu.vector_store %arg14[%c96_71, %c0_72], %151 {strides = array<i32>} : memref<256x512xbf16, #tpu.memory_space<vmem>>, vector<32x512xbf16>,
    %c511_i32_73 = arith.constant 511 : i32
    %153 = tpu.dynamic_rotate %132 by %c511_i32_73 dim 1 : vector<16x512xi32>, i32 -> vector<16x512xi32>
    %154 = tpu.bitcast %153 : vector<16x512xi32> -> vector<32x512xbf16>
    %155 = vector.broadcast %10 : vector<1x512xbf16> to vector<32x512xbf16>
    %156 = arith.mulf %154, %155 : vector<32x512xbf16>
    %c128_74 = arith.constant 128 : index
    %c0_75 = arith.constant 0 : index
    %157 = vector.load %arg14[%c128_74, %c0_75] : memref<256x512xbf16, #tpu.memory_space<vmem>>, vector<32x512xbf16>
    tpu.vector_store %arg14[%c128_74, %c0_75], %156 {strides = array<i32>} : memref<256x512xbf16, #tpu.memory_space<vmem>>, vector<32x512xbf16>,
    %c497_i32_76 = arith.constant 497 : i32
    %158 = tpu.dynamic_rotate %132 by %c497_i32_76 dim 1 : vector<16x512xi32>, i32 -> vector<16x512xi32>
    %159 = tpu.bitcast %158 : vector<16x512xi32> -> vector<32x512xbf16>
    %160 = vector.broadcast %12 : vector<1x512xbf16> to vector<32x512xbf16>
    %161 = arith.mulf %159, %160 : vector<32x512xbf16>
    %c160_77 = arith.constant 160 : index
    %c0_78 = arith.constant 0 : index
    %162 = vector.load %arg14[%c160_77, %c0_78] : memref<256x512xbf16, #tpu.memory_space<vmem>>, vector<32x512xbf16>
    tpu.vector_store %arg14[%c160_77, %c0_78], %161 {strides = array<i32>} : memref<256x512xbf16, #tpu.memory_space<vmem>>, vector<32x512xbf16>,
    %c496_i32_79 = arith.constant 496 : i32
    %163 = tpu.dynamic_rotate %132 by %c496_i32_79 dim 1 : vector<16x512xi32>, i32 -> vector<16x512xi32>
    %164 = tpu.bitcast %163 : vector<16x512xi32> -> vector<32x512xbf16>
    %165 = vector.broadcast %14 : vector<1x512xbf16> to vector<32x512xbf16>
    %166 = arith.mulf %164, %165 : vector<32x512xbf16>
    %c192_80 = arith.constant 192 : index
    %c0_81 = arith.constant 0 : index
    %167 = vector.load %arg14[%c192_80, %c0_81] : memref<256x512xbf16, #tpu.memory_space<vmem>>, vector<32x512xbf16>
    tpu.vector_store %arg14[%c192_80, %c0_81], %166 {strides = array<i32>} : memref<256x512xbf16, #tpu.memory_space<vmem>>, vector<32x512xbf16>,
    %c495_i32_82 = arith.constant 495 : i32
    %168 = tpu.dynamic_rotate %132 by %c495_i32_82 dim 1 : vector<16x512xi32>, i32 -> vector<16x512xi32>
    %169 = tpu.bitcast %168 : vector<16x512xi32> -> vector<32x512xbf16>
    %170 = vector.broadcast %16 : vector<1x512xbf16> to vector<32x512xbf16>
    %171 = arith.mulf %169, %170 : vector<32x512xbf16>
    %c224_83 = arith.constant 224 : index
    %c0_84 = arith.constant 0 : index
    %172 = vector.load %arg14[%c224_83, %c0_84] : memref<256x512xbf16, #tpu.memory_space<vmem>>, vector<32x512xbf16>
    tpu.vector_store %arg14[%c224_83, %c0_84], %171 {strides = array<i32>} : memref<256x512xbf16, #tpu.memory_space<vmem>>, vector<32x512xbf16>,
    %c0_85 = arith.constant 0 : index
    %c0_86 = arith.constant 0 : index
    %173 = vector.load %arg10[%c0_85, %c0_86] : memref<32x256xbf16, #tpu.memory_space<vmem>>, vector<32x256xbf16>
    %c0_87 = arith.constant 0 : index
    %c0_88 = arith.constant 0 : index
    %174 = vector.load %arg14[%c0_87, %c0_88] : memref<256x512xbf16, #tpu.memory_space<vmem>>, vector<256x512xbf16>
    %cst_89 = arith.constant dense<0.000000e+00> : vector<32x512xf32>
    %175 = tpu.matmul %173, %174, %cst_89 {dimension_numbers = #tpu.dot_dimension_numbers<[1], [0], [0], [1], [0, 0, 1, 1], [], []>} : vector<32x256xbf16>, vector<256x512xbf16>, vector<32x512xf32> -> vector<32x512xf32>
    %c0_90 = arith.constant 0 : index
    %c0_91 = arith.constant 0 : index
    %176 = vector.load %arg11[%c0_90, %c0_91] : memref<32x32xbf16, #tpu.memory_space<vmem>>, vector<32x32xbf16>
    %cst_92 = arith.constant dense<0.000000e+00> : vector<32x512xf32>
    %177 = tpu.matmul %176, %131, %cst_92 {dimension_numbers = #tpu.dot_dimension_numbers<[1], [0], [0], [1], [0, 0, 1, 1], [], []>} : vector<32x32xbf16>, vector<32x512xbf16>, vector<32x512xf32> -> vector<32x512xf32>
    %178 = arith.addf %175, %177 : vector<32x512xf32>
    %179 = arith.subf %81, %178 : vector<32x512xf32>
    %180 = arith.addf %179, %79 : vector<32x512xf32>
    %cst_93 = arith.constant 0.000000e+00 : f32
    %181 = vector.broadcast %cst_93 : f32 to vector<32x512xf32>
    %182 = arith.maximumf %180, %181 : vector<32x512xf32>
    %183 = arith.truncf %182 : vector<32x512xf32> to vector<32x512xbf16>
    %184 = tpu.bitcast %183 : vector<32x512xbf16> -> vector<16x512xi32>
    %c17_i32_94 = arith.constant 17 : i32
    %185 = tpu.dynamic_rotate %184 by %c17_i32_94 dim 1 : vector<16x512xi32>, i32 -> vector<16x512xi32>
    %186 = tpu.bitcast %185 : vector<16x512xi32> -> vector<32x512xbf16>
    %187 = vector.broadcast %2 : vector<1x512xbf16> to vector<32x512xbf16>
    %188 = arith.mulf %186, %187 : vector<32x512xbf16>
    %c0_95 = arith.constant 0 : index
    %c0_96 = arith.constant 0 : index
    %189 = vector.load %arg14[%c0_95, %c0_96] : memref<256x512xbf16, #tpu.memory_space<vmem>>, vector<32x512xbf16>
    tpu.vector_store %arg14[%c0_95, %c0_96], %188 {strides = array<i32>} : memref<256x512xbf16, #tpu.memory_space<vmem>>, vector<32x512xbf16>,
    %c16_i32_97 = arith.constant 16 : i32
    %190 = tpu.dynamic_rotate %184 by %c16_i32_97 dim 1 : vector<16x512xi32>, i32 -> vector<16x512xi32>
    %191 = tpu.bitcast %190 : vector<16x512xi32> -> vector<32x512xbf16>
    %192 = vector.broadcast %4 : vector<1x512xbf16> to vector<32x512xbf16>
    %193 = arith.mulf %191, %192 : vector<32x512xbf16>
    %c32_98 = arith.constant 32 : index
    %c0_99 = arith.constant 0 : index
    %194 = vector.load %arg14[%c32_98, %c0_99] : memref<256x512xbf16, #tpu.memory_space<vmem>>, vector<32x512xbf16>
    tpu.vector_store %arg14[%c32_98, %c0_99], %193 {strides = array<i32>} : memref<256x512xbf16, #tpu.memory_space<vmem>>, vector<32x512xbf16>,
    %c15_i32_100 = arith.constant 15 : i32
    %195 = tpu.dynamic_rotate %184 by %c15_i32_100 dim 1 : vector<16x512xi32>, i32 -> vector<16x512xi32>
    %196 = tpu.bitcast %195 : vector<16x512xi32> -> vector<32x512xbf16>
    %197 = vector.broadcast %6 : vector<1x512xbf16> to vector<32x512xbf16>
    %198 = arith.mulf %196, %197 : vector<32x512xbf16>
    %c64_101 = arith.constant 64 : index
    %c0_102 = arith.constant 0 : index
    %199 = vector.load %arg14[%c64_101, %c0_102] : memref<256x512xbf16, #tpu.memory_space<vmem>>, vector<32x512xbf16>
    tpu.vector_store %arg14[%c64_101, %c0_102], %198 {strides = array<i32>} : memref<256x512xbf16, #tpu.memory_space<vmem>>, vector<32x512xbf16>,
    %c1_i32_103 = arith.constant 1 : i32
    %200 = tpu.dynamic_rotate %184 by %c1_i32_103 dim 1 : vector<16x512xi32>, i32 -> vector<16x512xi32>
    %201 = tpu.bitcast %200 : vector<16x512xi32> -> vector<32x512xbf16>
    %202 = vector.broadcast %8 : vector<1x512xbf16> to vector<32x512xbf16>
    %203 = arith.mulf %201, %202 : vector<32x512xbf16>
    %c96_104 = arith.constant 96 : index
    %c0_105 = arith.constant 0 : index
    %204 = vector.load %arg14[%c96_104, %c0_105] : memref<256x512xbf16, #tpu.memory_space<vmem>>, vector<32x512xbf16>
    tpu.vector_store %arg14[%c96_104, %c0_105], %203 {strides = array<i32>} : memref<256x512xbf16, #tpu.memory_space<vmem>>, vector<32x512xbf16>,
    %c511_i32_106 = arith.constant 511 : i32
    %205 = tpu.dynamic_rotate %184 by %c511_i32_106 dim 1 : vector<16x512xi32>, i32 -> vector<16x512xi32>
    %206 = tpu.bitcast %205 : vector<16x512xi32> -> vector<32x512xbf16>
    %207 = vector.broadcast %10 : vector<1x512xbf16> to vector<32x512xbf16>
    %208 = arith.mulf %206, %207 : vector<32x512xbf16>
    %c128_107 = arith.constant 128 : index
    %c0_108 = arith.constant 0 : index
    %209 = vector.load %arg14[%c128_107, %c0_108] : memref<256x512xbf16, #tpu.memory_space<vmem>>, vector<32x512xbf16>
    tpu.vector_store %arg14[%c128_107, %c0_108], %208 {strides = array<i32>} : memref<256x512xbf16, #tpu.memory_space<vmem>>, vector<32x512xbf16>,
    %c497_i32_109 = arith.constant 497 : i32
    %210 = tpu.dynamic_rotate %184 by %c497_i32_109 dim 1 : vector<16x512xi32>, i32 -> vector<16x512xi32>
    %211 = tpu.bitcast %210 : vector<16x512xi32> -> vector<32x512xbf16>
    %212 = vector.broadcast %12 : vector<1x512xbf16> to vector<32x512xbf16>
    %213 = arith.mulf %211, %212 : vector<32x512xbf16>
    %c160_110 = arith.constant 160 : index
    %c0_111 = arith.constant 0 : index
    %214 = vector.load %arg14[%c160_110, %c0_111] : memref<256x512xbf16, #tpu.memory_space<vmem>>, vector<32x512xbf16>
    tpu.vector_store %arg14[%c160_110, %c0_111], %213 {strides = array<i32>} : memref<256x512xbf16, #tpu.memory_space<vmem>>, vector<32x512xbf16>,
    %c496_i32_112 = arith.constant 496 : i32
    %215 = tpu.dynamic_rotate %184 by %c496_i32_112 dim 1 : vector<16x512xi32>, i32 -> vector<16x512xi32>
    %216 = tpu.bitcast %215 : vector<16x512xi32> -> vector<32x512xbf16>
    %217 = vector.broadcast %14 : vector<1x512xbf16> to vector<32x512xbf16>
    %218 = arith.mulf %216, %217 : vector<32x512xbf16>
    %c192_113 = arith.constant 192 : index
    %c0_114 = arith.constant 0 : index
    %219 = vector.load %arg14[%c192_113, %c0_114] : memref<256x512xbf16, #tpu.memory_space<vmem>>, vector<32x512xbf16>
    tpu.vector_store %arg14[%c192_113, %c0_114], %218 {strides = array<i32>} : memref<256x512xbf16, #tpu.memory_space<vmem>>, vector<32x512xbf16>,
    %c495_i32_115 = arith.constant 495 : i32
    %220 = tpu.dynamic_rotate %184 by %c495_i32_115 dim 1 : vector<16x512xi32>, i32 -> vector<16x512xi32>
    %221 = tpu.bitcast %220 : vector<16x512xi32> -> vector<32x512xbf16>
    %222 = vector.broadcast %16 : vector<1x512xbf16> to vector<32x512xbf16>
    %223 = arith.mulf %221, %222 : vector<32x512xbf16>
    %c224_116 = arith.constant 224 : index
    %c0_117 = arith.constant 0 : index
    %224 = vector.load %arg14[%c224_116, %c0_117] : memref<256x512xbf16, #tpu.memory_space<vmem>>, vector<32x512xbf16>
    tpu.vector_store %arg14[%c224_116, %c0_117], %223 {strides = array<i32>} : memref<256x512xbf16, #tpu.memory_space<vmem>>, vector<32x512xbf16>,
    %c0_118 = arith.constant 0 : index
    %c0_119 = arith.constant 0 : index
    %225 = vector.load %arg8[%c0_118, %c0_119] : memref<32x256xbf16, #tpu.memory_space<vmem>>, vector<32x256xbf16>
    %c0_120 = arith.constant 0 : index
    %c0_121 = arith.constant 0 : index
    %226 = vector.load %arg14[%c0_120, %c0_121] : memref<256x512xbf16, #tpu.memory_space<vmem>>, vector<256x512xbf16>
    %cst_122 = arith.constant dense<0.000000e+00> : vector<32x512xf32>
    %227 = tpu.matmul %225, %226, %cst_122 {dimension_numbers = #tpu.dot_dimension_numbers<[1], [0], [0], [1], [0, 0, 1, 1], [], []>} : vector<32x256xbf16>, vector<256x512xbf16>, vector<32x512xf32> -> vector<32x512xf32>
    %c0_123 = arith.constant 0 : index
    %c0_124 = arith.constant 0 : index
    %228 = vector.load %arg9[%c0_123, %c0_124] : memref<32x32xbf16, #tpu.memory_space<vmem>>, vector<32x32xbf16>
    %cst_125 = arith.constant dense<0.000000e+00> : vector<32x512xf32>
    %229 = tpu.matmul %228, %183, %cst_125 {dimension_numbers = #tpu.dot_dimension_numbers<[1], [0], [0], [1], [0, 0, 1, 1], [], []>} : vector<32x32xbf16>, vector<32x512xbf16>, vector<32x512xf32> -> vector<32x512xf32>
    %230 = arith.addf %227, %229 : vector<32x512xf32>
    %231 = arith.mulf %230, %30 : vector<32x512xf32>
    %232 = arith.truncf %231 : vector<32x512xf32> to vector<32x512xbf16>
    %233 = tpu.bitcast %232 : vector<32x512xbf16> -> vector<16x512xi32>
    %c17_i32_126 = arith.constant 17 : i32
    %234 = tpu.dynamic_rotate %233 by %c17_i32_126 dim 1 : vector<16x512xi32>, i32 -> vector<16x512xi32>
    %235 = tpu.bitcast %234 : vector<16x512xi32> -> vector<32x512xbf16>
    %236 = vector.broadcast %2 : vector<1x512xbf16> to vector<32x512xbf16>
    %237 = arith.mulf %235, %236 : vector<32x512xbf16>
    %c0_127 = arith.constant 0 : index
    %c0_128 = arith.constant 0 : index
    %238 = vector.load %arg14[%c0_127, %c0_128] : memref<256x512xbf16, #tpu.memory_space<vmem>>, vector<32x512xbf16>
    tpu.vector_store %arg14[%c0_127, %c0_128], %237 {strides = array<i32>} : memref<256x512xbf16, #tpu.memory_space<vmem>>, vector<32x512xbf16>,
    %c16_i32_129 = arith.constant 16 : i32
    %239 = tpu.dynamic_rotate %233 by %c16_i32_129 dim 1 : vector<16x512xi32>, i32 -> vector<16x512xi32>
    %240 = tpu.bitcast %239 : vector<16x512xi32> -> vector<32x512xbf16>
    %241 = vector.broadcast %4 : vector<1x512xbf16> to vector<32x512xbf16>
    %242 = arith.mulf %240, %241 : vector<32x512xbf16>
    %c32_130 = arith.constant 32 : index
    %c0_131 = arith.constant 0 : index
    %243 = vector.load %arg14[%c32_130, %c0_131] : memref<256x512xbf16, #tpu.memory_space<vmem>>, vector<32x512xbf16>
    tpu.vector_store %arg14[%c32_130, %c0_131], %242 {strides = array<i32>} : memref<256x512xbf16, #tpu.memory_space<vmem>>, vector<32x512xbf16>,
    %c15_i32_132 = arith.constant 15 : i32
    %244 = tpu.dynamic_rotate %233 by %c15_i32_132 dim 1 : vector<16x512xi32>, i32 -> vector<16x512xi32>
    %245 = tpu.bitcast %244 : vector<16x512xi32> -> vector<32x512xbf16>
    %246 = vector.broadcast %6 : vector<1x512xbf16> to vector<32x512xbf16>
    %247 = arith.mulf %245, %246 : vector<32x512xbf16>
    %c64_133 = arith.constant 64 : index
    %c0_134 = arith.constant 0 : index
    %248 = vector.load %arg14[%c64_133, %c0_134] : memref<256x512xbf16, #tpu.memory_space<vmem>>, vector<32x512xbf16>
    tpu.vector_store %arg14[%c64_133, %c0_134], %247 {strides = array<i32>} : memref<256x512xbf16, #tpu.memory_space<vmem>>, vector<32x512xbf16>,
    %c1_i32_135 = arith.constant 1 : i32
    %249 = tpu.dynamic_rotate %233 by %c1_i32_135 dim 1 : vector<16x512xi32>, i32 -> vector<16x512xi32>
    %250 = tpu.bitcast %249 : vector<16x512xi32> -> vector<32x512xbf16>
    %251 = vector.broadcast %8 : vector<1x512xbf16> to vector<32x512xbf16>
    %252 = arith.mulf %250, %251 : vector<32x512xbf16>
    %c96_136 = arith.constant 96 : index
    %c0_137 = arith.constant 0 : index
    %253 = vector.load %arg14[%c96_136, %c0_137] : memref<256x512xbf16, #tpu.memory_space<vmem>>, vector<32x512xbf16>
    tpu.vector_store %arg14[%c96_136, %c0_137], %252 {strides = array<i32>} : memref<256x512xbf16, #tpu.memory_space<vmem>>, vector<32x512xbf16>,
    %c511_i32_138 = arith.constant 511 : i32
    %254 = tpu.dynamic_rotate %233 by %c511_i32_138 dim 1 : vector<16x512xi32>, i32 -> vector<16x512xi32>
    %255 = tpu.bitcast %254 : vector<16x512xi32> -> vector<32x512xbf16>
    %256 = vector.broadcast %10 : vector<1x512xbf16> to vector<32x512xbf16>
    %257 = arith.mulf %255, %256 : vector<32x512xbf16>
    %c128_139 = arith.constant 128 : index
    %c0_140 = arith.constant 0 : index
    %258 = vector.load %arg14[%c128_139, %c0_140] : memref<256x512xbf16, #tpu.memory_space<vmem>>, vector<32x512xbf16>
    tpu.vector_store %arg14[%c128_139, %c0_140], %257 {strides = array<i32>} : memref<256x512xbf16, #tpu.memory_space<vmem>>, vector<32x512xbf16>,
    %c497_i32_141 = arith.constant 497 : i32
    %259 = tpu.dynamic_rotate %233 by %c497_i32_141 dim 1 : vector<16x512xi32>, i32 -> vector<16x512xi32>
    %260 = tpu.bitcast %259 : vector<16x512xi32> -> vector<32x512xbf16>
    %261 = vector.broadcast %12 : vector<1x512xbf16> to vector<32x512xbf16>
    %262 = arith.mulf %260, %261 : vector<32x512xbf16>
    %c160_142 = arith.constant 160 : index
    %c0_143 = arith.constant 0 : index
    %263 = vector.load %arg14[%c160_142, %c0_143] : memref<256x512xbf16, #tpu.memory_space<vmem>>, vector<32x512xbf16>
    tpu.vector_store %arg14[%c160_142, %c0_143], %262 {strides = array<i32>} : memref<256x512xbf16, #tpu.memory_space<vmem>>, vector<32x512xbf16>,
    %c496_i32_144 = arith.constant 496 : i32
    %264 = tpu.dynamic_rotate %233 by %c496_i32_144 dim 1 : vector<16x512xi32>, i32 -> vector<16x512xi32>
    %265 = tpu.bitcast %264 : vector<16x512xi32> -> vector<32x512xbf16>
    %266 = vector.broadcast %14 : vector<1x512xbf16> to vector<32x512xbf16>
    %267 = arith.mulf %265, %266 : vector<32x512xbf16>
    %c192_145 = arith.constant 192 : index
    %c0_146 = arith.constant 0 : index
    %268 = vector.load %arg14[%c192_145, %c0_146] : memref<256x512xbf16, #tpu.memory_space<vmem>>, vector<32x512xbf16>
    tpu.vector_store %arg14[%c192_145, %c0_146], %267 {strides = array<i32>} : memref<256x512xbf16, #tpu.memory_space<vmem>>, vector<32x512xbf16>,
    %c495_i32_147 = arith.constant 495 : i32
    %269 = tpu.dynamic_rotate %233 by %c495_i32_147 dim 1 : vector<16x512xi32>, i32 -> vector<16x512xi32>
    %270 = tpu.bitcast %269 : vector<16x512xi32> -> vector<32x512xbf16>
    %271 = vector.broadcast %16 : vector<1x512xbf16> to vector<32x512xbf16>
    %272 = arith.mulf %270, %271 : vector<32x512xbf16>
    %c224_148 = arith.constant 224 : index
    %c0_149 = arith.constant 0 : index
    %273 = vector.load %arg14[%c224_148, %c0_149] : memref<256x512xbf16, #tpu.memory_space<vmem>>, vector<32x512xbf16>
    tpu.vector_store %arg14[%c224_148, %c0_149], %272 {strides = array<i32>} : memref<256x512xbf16, #tpu.memory_space<vmem>>, vector<32x512xbf16>,
    %c0_150 = arith.constant 0 : index
    %c0_151 = arith.constant 0 : index
    %274 = vector.load %arg10[%c0_150, %c0_151] : memref<32x256xbf16, #tpu.memory_space<vmem>>, vector<32x256xbf16>
    %c0_152 = arith.constant 0 : index
    %c0_153 = arith.constant 0 : index
    %275 = vector.load %arg14[%c0_152, %c0_153] : memref<256x512xbf16, #tpu.memory_space<vmem>>, vector<256x512xbf16>
    %cst_154 = arith.constant dense<0.000000e+00> : vector<32x512xf32>
    %276 = tpu.matmul %274, %275, %cst_154 {dimension_numbers = #tpu.dot_dimension_numbers<[1], [0], [0], [1], [0, 0, 1, 1], [], []>} : vector<32x256xbf16>, vector<256x512xbf16>, vector<32x512xf32> -> vector<32x512xf32>
    %c0_155 = arith.constant 0 : index
    %c0_156 = arith.constant 0 : index
    %277 = vector.load %arg11[%c0_155, %c0_156] : memref<32x32xbf16, #tpu.memory_space<vmem>>, vector<32x32xbf16>
    %cst_157 = arith.constant dense<0.000000e+00> : vector<32x512xf32>
    %278 = tpu.matmul %277, %232, %cst_157 {dimension_numbers = #tpu.dot_dimension_numbers<[1], [0], [0], [1], [0, 0, 1, 1], [], []>} : vector<32x32xbf16>, vector<32x512xbf16>, vector<32x512xf32> -> vector<32x512xf32>
    %279 = arith.addf %276, %278 : vector<32x512xf32>
    %280 = arith.subf %182, %279 : vector<32x512xf32>
    %281 = arith.addf %280, %79 : vector<32x512xf32>
    %cst_158 = arith.constant 0.000000e+00 : f32
    %282 = vector.broadcast %cst_158 : f32 to vector<32x512xf32>
    %283 = arith.maximumf %281, %282 : vector<32x512xf32>
    %c0_159 = arith.constant 0 : index
    %c0_160 = arith.constant 0 : index
    %284 = vector.load %arg12[%c0_159, %c0_160] : memref<8x32xbf16, #tpu.memory_space<vmem>>, vector<8x32xbf16>
    %285 = arith.truncf %283 : vector<32x512xf32> to vector<32x512xbf16>
    %cst_161 = arith.constant dense<0.000000e+00> : vector<8x512xf32>
    %286 = tpu.matmul %284, %285, %cst_161 {dimension_numbers = #tpu.dot_dimension_numbers<[1], [0], [0], [1], [0, 0, 1, 1], [], []>} : vector<8x32xbf16>, vector<32x512xbf16>, vector<8x512xf32> -> vector<8x512xf32>
    %c0_162 = arith.constant 0 : index
    %c0_163 = arith.constant 0 : index
    %287 = vector.load %arg13[%c0_162, %c0_163] : memref<8x512xf32, #tpu.memory_space<vmem>>, vector<8x512xf32>
    tpu.vector_store %arg13[%c0_162, %c0_163], %286 {strides = array<i32>} : memref<8x512xf32, #tpu.memory_space<vmem>>, vector<8x512xf32>,
    return
  }
  func.func @transform_0(%arg0: i32) -> (i32, i32) {
    %c0_i32 = arith.constant 0 : i32
    %c0_i32_0 = arith.constant 0 : i32
    return %c0_i32, %arg0 : i32, i32
  }
  func.func @transform_1(%arg0: i32) -> (i32, i32) {
    %c0_i32 = arith.constant 0 : i32
    %c0_i32_0 = arith.constant 0 : i32
    return %c0_i32, %arg0 : i32, i32
  }
  func.func @transform_2(%arg0: i32) -> (i32, i32) {
    %c0_i32 = arith.constant 0 : i32
    %c0_i32_0 = arith.constant 0 : i32
    %c0_i32_1 = arith.constant 0 : i32
    return %c0_i32, %c0_i32_0 : i32, i32
  }
  func.func @transform_3(%arg0: i32) -> (i32, i32) {
    %c0_i32 = arith.constant 0 : i32
    %c0_i32_0 = arith.constant 0 : i32
    %c0_i32_1 = arith.constant 0 : i32
    return %c0_i32, %c0_i32_0 : i32, i32
  }
  func.func @transform_4(%arg0: i32) -> (i32, i32) {
    %c0_i32 = arith.constant 0 : i32
    %c0_i32_0 = arith.constant 0 : i32
    %c0_i32_1 = arith.constant 0 : i32
    return %c0_i32, %c0_i32_0 : i32, i32
  }
  func.func @transform_5(%arg0: i32) -> (i32, i32) {
    %c0_i32 = arith.constant 0 : i32
    %c0_i32_0 = arith.constant 0 : i32
    %c0_i32_1 = arith.constant 0 : i32
    return %c0_i32, %c0_i32_0 : i32, i32
  }
  func.func @transform_6(%arg0: i32) -> (i32, i32) {
    %c0_i32 = arith.constant 0 : i32
    %c0_i32_0 = arith.constant 0 : i32
    %c0_i32_1 = arith.constant 0 : i32
    return %c0_i32, %c0_i32_0 : i32, i32
  }
  func.func @transform_7(%arg0: i32) -> (i32, i32) {
    %c0_i32 = arith.constant 0 : i32
    %c0_i32_0 = arith.constant 0 : i32
    %c0_i32_1 = arith.constant 0 : i32
    return %c0_i32, %c0_i32_0 : i32, i32
  }
  func.func @transform_8(%arg0: i32) -> (i32, i32) {
    %c0_i32 = arith.constant 0 : i32
    %c0_i32_0 = arith.constant 0 : i32
    %c0_i32_1 = arith.constant 0 : i32
    return %c0_i32, %c0_i32_0 : i32, i32
  }
  func.func @transform_9(%arg0: i32) -> (i32, i32) {
    %c0_i32 = arith.constant 0 : i32
    %c0_i32_0 = arith.constant 0 : i32
    %c0_i32_1 = arith.constant 0 : i32
    return %c0_i32, %c0_i32_0 : i32, i32
  }
  func.func @transform_10(%arg0: i32) -> (i32, i32) {
    %c0_i32 = arith.constant 0 : i32
    %c0_i32_0 = arith.constant 0 : i32
    %c0_i32_1 = arith.constant 0 : i32
    return %c0_i32, %c0_i32_0 : i32, i32
  }
  func.func @transform_11(%arg0: i32) -> (i32, i32) {
    %c0_i32 = arith.constant 0 : i32
    %c0_i32_0 = arith.constant 0 : i32
    %c0_i32_1 = arith.constant 0 : i32
    return %c0_i32, %c0_i32_0 : i32, i32
  }
  func.func @transform_12(%arg0: i32) -> (i32, i32) {
    %c0_i32 = arith.constant 0 : i32
    %c0_i32_0 = arith.constant 0 : i32
    return %c0_i32, %arg0 : i32, i32
  }
}

</mosaic_0001>

<llo_original>
// kernel: tpu_custom_call.1
$region0: #{tpu_custom_call.1}
  #allocation0 [shape = 'u32[]', space=smem, size = 0x4, offset = 0x4, fixed_abs, tag = 'smem constant byte address 0x4 - core index']
  #allocation1 [shape = 'u32[144,128]{1,0:T(1,128)}', space=vmem, size = 0x12000, scoped, tag = 'internal scratch']
  #allocation2 [shape = 'bf16[256,512]{1,0:T(16,128)(2,1)}', space=vmem, size = 0x40000, scoped, tag = 'scratch operand']
  %s0 = inlined_call_operand.vmem [shape: f32[8,512], index: 0, kind: input, shape index: {}]
  %s1 = inlined_call_operand.hbm [shape: f32[4,512], index: 1, kind: input, shape index: {}]
  %s2 = inlined_call_operand.hbm [shape: f32[8,512], index: 2, kind: input, shape index: {}]
  %s3 = inlined_call_operand.vmem [shape: bf16[32,8], index: 3, kind: input, shape index: {}]
  %s4 = inlined_call_operand.vmem [shape: bf16[32,4], index: 4, kind: input, shape index: {}]
  %s5 = inlined_call_operand.hbm [shape: bf16[32,256], index: 5, kind: input, shape index: {}]
  %s6 = inlined_call_operand.hbm [shape: bf16[32,32], index: 6, kind: input, shape index: {}]
  %s7 = inlined_call_operand.vmem [shape: bf16[32,256], index: 7, kind: input, shape index: {}]
  %s8 = inlined_call_operand.hbm [shape: bf16[32,32], index: 8, kind: input, shape index: {}]
  %s9 = inlined_call_operand.hbm [shape: bf16[32,256], index: 9, kind: input, shape index: {}]
  %s10 = inlined_call_operand.hbm [shape: bf16[32,32], index: 10, kind: input, shape index: {}]
  %s11 = inlined_call_operand.vmem [shape: bf16[8,32], index: 11, kind: input, shape index: {}]
  %s12 = inlined_call_operand.hbm [shape: f32[8,512], index: 12, kind: output, shape index: {}]
  %s13 = sld [smem:[#allocation0]]
  $region86: #{tpu_custom_call.1} parent=0
    _
  %s15 = ssub.s32 1, %s13
  %s16 = scalar_select 0, %s15, %s13
  $region1: #{tpu_custom_call.1} parent=0
    #allocation3 [shape = 'u8[8192]{0}', space=vmem, size = 0x2000, scoped, tag = 'input window, operand 1, single buffered']
    #allocation4 [shape = 's32[1]{0}', space=sflag, size = 0x4, scoped, tag = 'scoped memory for tpu_custom_call.1']
    #allocation5 [shape = 's32[1]{0}', space=sflag, size = 0x4, scoped, tag = 'scoped memory for tpu_custom_call.1']
    #allocation6 [shape = 'u8[16384]{0}', space=vmem, size = 0x4000, scoped, tag = 'input window, operand 2, single buffered']
    #allocation7 [shape = 's32[1]{0}', space=sflag, size = 0x4, scoped, tag = 'scoped memory for tpu_custom_call.1']
    #allocation8 [shape = 'u8[16384]{0}', space=vmem, size = 0x4000, scoped, tag = 'input window, operand 5, single buffered']
    #allocation9 [shape = 'u8[8192]{0}', space=vmem, size = 0x2000, scoped, tag = 'input window, operand 6, single buffered']
    #allocation10 [shape = 's32[1]{0}', space=sflag, size = 0x4, scoped, tag = 'scoped memory for tpu_custom_call.1']
    #allocation11 [shape = 'u8[8192]{0}', space=vmem, size = 0x2000, scoped, tag = 'input window, operand 8, single buffered']
    #allocation12 [shape = 'u8[16384]{0}', space=vmem, size = 0x4000, scoped, tag = 'input window, operand 9, single buffered']
    #allocation13 [shape = 's32[1]{0}', space=sflag, size = 0x4, scoped, tag = 'scoped memory for tpu_custom_call.1']
    #allocation14 [shape = 'u8[8192]{0}', space=vmem, size = 0x2000, scoped, tag = 'input window, operand 10, single buffered']
    #allocation15 [shape = 'u8[16384]{0}', space=vmem, size = 0x4000, scoped, tag = 'output window, operand 0, single buffered']
    %17 = vsyncpa [#allocation4], 0
    %18 = vsyncpa [#allocation7], 0
    %19 = vsyncpa [#allocation10], 0
    %20 = vsyncpa [#allocation13], 0
    %21 = vsyncpa [#allocation5], 0
    // Predicated region
    $region2: #{tpu_custom_call.1} parent=1 // pred_check
      _
    $region3: #{tpu_custom_call.1} parent=1 // pred_check_branch
      %23 = sbr.rel (0) target = $region5
    $region4: #{tpu_custom_call.1} parent=1 // pred_region
      _
    $region5: #{tpu_custom_call.1} parent=1 // pred_fallthru
      _
    // Predicated region
    $region6: #{tpu_custom_call.1} parent=1 // pred_check
      _
    $region7: #{tpu_custom_call.1} parent=1 // pred_check_branch
      %25 = sbr.rel (0) target = $region9
    $region8: #{tpu_custom_call.1} parent=1 // pred_region
      %s27 = ssub.s32 256, 256
      %28 = vsyncadd [#allocation4], %s27
      %s30 = sshll.u32 [#allocation3], 4
      %s31 = int_to_ptr.vmem [resolvable:$true] %s30
      %33 = dma.hbm_to_vmem [thread:$0]  %s1, 256, %s31, [#allocation4]
    $region9: #{tpu_custom_call.1} parent=1 // pred_fallthru
      _
    // Predicated region
    $region10: #{tpu_custom_call.1} parent=1 // pred_check
      _
    $region11: #{tpu_custom_call.1} parent=1 // pred_check_branch
      %35 = sbr.rel (0) target = $region13
    $region12: #{tpu_custom_call.1} parent=1 // pred_region
      %s37 = ssub.s32 512, 512
      %38 = vsyncadd [#allocation7], %s37
      %s40 = sshll.u32 [#allocation6], 4
      %s41 = int_to_ptr.vmem [resolvable:$true] %s40
      %43 = dma.hbm_to_vmem [thread:$0]  %s2, 512, %s41, [#allocation7]
    $region13: #{tpu_custom_call.1} parent=1 // pred_fallthru
      _
    // Predicated region
    $region14: #{tpu_custom_call.1} parent=1 // pred_check
      _
    $region15: #{tpu_custom_call.1} parent=1 // pred_check_branch
      %45 = sbr.rel (0) target = $region17
    $region16: #{tpu_custom_call.1} parent=1 // pred_region
      _
    $region17: #{tpu_custom_call.1} parent=1 // pred_fallthru
      _
    // Predicated region
    $region18: #{tpu_custom_call.1} parent=1 // pred_check
      _
    $region19: #{tpu_custom_call.1} parent=1 // pred_check_branch
      %47 = sbr.rel (0) target = $region21
    $region20: #{tpu_custom_call.1} parent=1 // pred_region
      _
    $region21: #{tpu_custom_call.1} parent=1 // pred_fallthru
      _
    // Predicated region
    $region22: #{tpu_custom_call.1} parent=1 // pred_check
      _
    $region23: #{tpu_custom_call.1} parent=1 // pred_check_branch
      %49 = sbr.rel (0) target = $region25
    $region24: #{tpu_custom_call.1} parent=1 // pred_region
      %s51 = ssub.s32 512, 512
      %52 = vsyncadd [#allocation7], %s51
      %s53 = sshll.u32 [#allocation8], 4
      %s54 = int_to_ptr.vmem [resolvable:$true] %s53
      %59 = dma.hbm_to_vmem [thread:$0]  %s5, 512, %s54, [#allocation7], 128, 128, 8
    $region25: #{tpu_custom_call.1} parent=1 // pred_fallthru
      _
    // Predicated region
    $region26: #{tpu_custom_call.1} parent=1 // pred_check
      _
    $region27: #{tpu_custom_call.1} parent=1 // pred_check_branch
      %61 = sbr.rel (0) target = $region29
    $region28: #{tpu_custom_call.1} parent=1 // pred_region
      %s63 = ssub.s32 256, 256
      %64 = vsyncadd [#allocation10], %s63
      %s65 = sshll.u32 [#allocation9], 4
      %s66 = int_to_ptr.vmem [resolvable:$true] %s65
      %71 = dma.hbm_to_vmem [thread:$0]  %s6, 256, %s66, [#allocation10], 64, 64, 4
    $region29: #{tpu_custom_call.1} parent=1 // pred_fallthru
      _
    // Predicated region
    $region30: #{tpu_custom_call.1} parent=1 // pred_check
      _
    $region31: #{tpu_custom_call.1} parent=1 // pred_check_branch
      %73 = sbr.rel (0) target = $region33
    $region32: #{tpu_custom_call.1} parent=1 // pred_region
      _
    $region33: #{tpu_custom_call.1} parent=1 // pred_fallthru
      _
    // Predicated region
    $region34: #{tpu_custom_call.1} parent=1 // pred_check
      _
    $region35: #{tpu_custom_call.1} parent=1 // pred_check_branch
      %75 = sbr.rel (0) target = $region37
    $region36: #{tpu_custom_call.1} parent=1 // pred_region
      %s77 = ssub.s32 256, 256
      %78 = vsyncadd [#allocation10], %s77
      %s79 = sshll.u32 [#allocation11], 4
      %s80 = int_to_ptr.vmem [resolvable:$true] %s79
      %85 = dma.hbm_to_vmem [thread:$0]  %s8, 256, %s80, [#allocation10], 64, 64, 4
    $region37: #{tpu_custom_call.1} parent=1 // pred_fallthru
      _
    // Predicated region
    $region38: #{tpu_custom_call.1} parent=1 // pred_check
      _
    $region39: #{tpu_custom_call.1} parent=1 // pred_check_branch
      %87 = sbr.rel (0) target = $region41
    $region40: #{tpu_custom_call.1} parent=1 // pred_region
      %s89 = ssub.s32 512, 512
      %90 = vsyncadd [#allocation13], %s89
      %s91 = sshll.u32 [#allocation12], 4
      %s92 = int_to_ptr.vmem [resolvable:$true] %s91
      %97 = dma.hbm_to_vmem [thread:$0]  %s9, 512, %s92, [#allocation13], 128, 128, 8
    $region41: #{tpu_custom_call.1} parent=1 // pred_fallthru
      _
    // Predicated region
    $region42: #{tpu_custom_call.1} parent=1 // pred_check
      _
    $region43: #{tpu_custom_call.1} parent=1 // pred_check_branch
      %99 = sbr.rel (0) target = $region45
    $region44: #{tpu_custom_call.1} parent=1 // pred_region
      %s101 = ssub.s32 256, 256
      %102 = vsyncadd [#allocation13], %s101
      %s103 = sshll.u32 [#allocation14], 4
      %s104 = int_to_ptr.vmem [resolvable:$true] %s103
      %109 = dma.hbm_to_vmem [thread:$0]  %s10, 256, %s104, [#allocation13], 64, 64, 4
    $region45: #{tpu_custom_call.1} parent=1 // pred_fallthru
      _
    // Predicated region
    $region46: #{tpu_custom_call.1} parent=1 // pred_check
      _
    $region47: #{tpu_custom_call.1} parent=1 // pred_check_branch
      %111 = sbr.rel (0) target = $region49
    $region48: #{tpu_custom_call.1} parent=1 // pred_region
      _
    $region49: #{tpu_custom_call.1} parent=1 // pred_fallthru
      _
    // Predicated region
    $region50: #{tpu_custom_call.1} parent=1 // pred_check
      _
    $region51: #{tpu_custom_call.1} parent=1 // pred_check_branch
      %113 = sbr.rel (0) target = $region53
    $region52: #{tpu_custom_call.1} parent=1 // pred_region
      %114 = dma.done [#allocation4], 256
    $region53: #{tpu_custom_call.1} parent=1 // pred_fallthru
      _
    // Predicated region
    $region54: #{tpu_custom_call.1} parent=1 // pred_check
      _
    $region55: #{tpu_custom_call.1} parent=1 // pred_check_branch
      %116 = sbr.rel (0) target = $region57
    $region56: #{tpu_custom_call.1} parent=1 // pred_region
      %117 = dma.done [#allocation7], 512
    $region57: #{tpu_custom_call.1} parent=1 // pred_fallthru
      _
    // Predicated region
    $region58: #{tpu_custom_call.1} parent=1 // pred_check
      _
    $region59: #{tpu_custom_call.1} parent=1 // pred_check_branch
      %119 = sbr.rel (0) target = $region61
    $region60: #{tpu_custom_call.1} parent=1 // pred_region
      %120 = dma.done [#allocation7], 512
    $region61: #{tpu_custom_call.1} parent=1 // pred_fallthru
      _
    // Predicated region
    $region62: #{tpu_custom_call.1} parent=1 // pred_check
      _
    $region63: #{tpu_custom_call.1} parent=1 // pred_check_branch
      %122 = sbr.rel (0) target = $region65
    $region64: #{tpu_custom_call.1} parent=1 // pred_region
      %123 = dma.done [#allocation10], 256
    $region65: #{tpu_custom_call.1} parent=1 // pred_fallthru
      _
    // Predicated region
    $region66: #{tpu_custom_call.1} parent=1 // pred_check
      _
    $region67: #{tpu_custom_call.1} parent=1 // pred_check_branch
      %125 = sbr.rel (0) target = $region69
    $region68: #{tpu_custom_call.1} parent=1 // pred_region
      %126 = dma.done [#allocation10], 256
    $region69: #{tpu_custom_call.1} parent=1 // pred_fallthru
      _
    // Predicated region
    $region70: #{tpu_custom_call.1} parent=1 // pred_check
      _
    $region71: #{tpu_custom_call.1} parent=1 // pred_check_branch
      %128 = sbr.rel (0) target = $region73
    $region72: #{tpu_custom_call.1} parent=1 // pred_region
      %129 = dma.done [#allocation13], 512
    $region73: #{tpu_custom_call.1} parent=1 // pred_fallthru
      _
    // Predicated region
    $region74: #{tpu_custom_call.1} parent=1 // pred_check
      _
    $region75: #{tpu_custom_call.1} parent=1 // pred_check_branch
      %131 = sbr.rel (0) target = $region77
    $region76: #{tpu_custom_call.1} parent=1 // pred_region
      %132 = dma.done [#allocation13], 256
    $region77: #{tpu_custom_call.1} parent=1 // pred_fallthru
      _
    %v134 = vld [vmem:[#allocation6] sm:$0xff]
    %v135 = vld [vmem:[#allocation6 + $0x8] sm:$0xff]
    %v136 = vld [vmem:[#allocation6 + $0x10] sm:$0xff]
    %v137 = vld [vmem:[#allocation6 + $0x18] sm:$0xff]
    %v138 = vpack.c.bf16 %v134, %v134
    %v139 = vpack.c.bf16 %v135, %v135
    %v140 = vpack.c.bf16 %v136, %v136
    %v141 = vpack.c.bf16 %v137, %v137
    %v142 = vld [vmem:[%s0] sm:$0xff]
    %v143 = vld [vmem:[%s0 + $0x8] sm:$0xff]
    %v144 = vld [vmem:[%s0 + $0x10] sm:$0xff]
    %v145 = vld [vmem:[%s0 + $0x18] sm:$0xff]
    %v146 = vpack.c.bf16 %v142, %v142
    %v147 = vpack.c.bf16 %v143, %v143
    %v148 = vpack.c.bf16 %v144, %v144
    %v149 = vpack.c.bf16 %v145, %v145
    %v150 = vld [vmem:[#allocation3] sm:$0xff]
    %v151 = vld [vmem:[#allocation3 + $0x8] sm:$0xff]
    %v154 = vcombine.high %v150, %v150
    %v155 = vcombine.high %v151, %v151
    %v158 = vpack.c.bf16 %v150, %v150
    %v159 = vpack.c.bf16 %v154, %v154
    %v160 = vpack.c.bf16 %v151, %v151
    %v161 = vpack.c.bf16 %v155, %v155
    %v162 = vld [vmem:[%s3] sm:$0xf]
    %v163 = vld [vmem:[%s3 + $0x4] sm:$0xf]
    %v164 = vld [vmem:[%s3 + $0x8] sm:$0xf]
    %v165 = vld [vmem:[%s3 + $0xc] sm:$0xf]
    %v170 = vunpack.c.l.b16 %v162
    %v171 = vunpack.c.l.b16 %v163
    %v172 = vunpack.c.l.b16 %v164
    %v173 = vunpack.c.l.b16 %v165
    %v174 = vpack.c.b16 %v171, %v170
    %v175 = vpack.c.b16 %v173, %v172
    %vm176 = vcmask 64512
    %v178 = vsel %vm176, %v174, 0
    %v181 = vsel %vm176, %v175, 0
    %vm183 = vcmask 1043456
    %v185 = vsel %vm183, %v146, 0
    %v188 = vsel %vm183, %v147, 0
    %v191 = vsel %vm183, %v148, 0
    %v194 = vsel %vm183, %v149, 0
    %196 = vmatprep.subr.bf16.mxu0 %v188
    %197 = vmatpush1.bf16.msra.mxu0 %v185
    %198 = vmatprep.subr.bf16.mxu0 0
    %199 = vmatpush1.bf16.msra.mxu0 0
    %200 = vmatprep.subr.bf16.mxu0 0
    %201 = vmatpush1.bf16.msra.mxu0 0
    %202 = vmatprep.subr.bf16.mxu0 0
    %203 = vmatpush1.bf16.msra.mxu0 0
    %204 = vmatprep.subr.bf16.mxu0 0
    %205 = vmatpush1.bf16.msra.mxu0 0
    %206 = vmatprep.subr.bf16.mxu0 0
    %207 = vmatpush1.bf16.msra.mxu0 0
    %208 = vmatprep.subr.bf16.mxu0 0
    %209 = vmatpush1.bf16.msra.mxu0 0
    %210 = vmatprep.subr.bf16.mxu0 0
    %211 = vmatpush1.bf16.msra.mxu0 0
    %212 = vmatprep.subr.bf16.mxu0 0
    %213 = vmatpush1.bf16.msra.mxu0 0
    %214 = vmatprep.subr.bf16.mxu0 0
    %215 = vmatpush1.bf16.msra.mxu0 0
    %216 = vmatprep.subr.bf16.mxu0 0
    %217 = vmatpush1.bf16.msra.mxu0 0
    %218 = vmatprep.subr.bf16.mxu0 0
    %219 = vmatpush1.bf16.msra.mxu0 0
    %220 = vmatprep.subr.bf16.mxu0 0
    %221 = vmatpush1.bf16.msra.mxu0 0
    %222 = vmatprep.subr.bf16.mxu0 0
    %223 = vmatpush1.bf16.msra.mxu0 0
    %224 = vmatprep.subr.bf16.mxu0 0
    %225 = vmatpush1.bf16.msra.mxu0 0
    %226 = vmatprep.subr.bf16.mxu0 0
    %227 = vmatpush1.bf16.msra.mxu0 0
    %228 = vmatprep.mubr.bf16.mxu0 0
    %229 = vmatmul.mubr.bf16.gmra.mrb[0].mxu0 %v178
    %v230 = vpop.f32.mrb[0].mxu0
    %v231 = vadd.f32 0.0, %v230
    %v232 = vpop.f32.mrb[0].mxu0
    %v233 = vadd.f32 0.0, %v232
    %v234 = vpop.f32.mrb[0].mxu0
    %v235 = vadd.f32 0.0, %v234
    %v236 = vpop.f32.mrb[0].mxu0
    %v237 = vadd.f32 0.0, %v236
    %238 = vmatprep.mubr.bf16.mxu0 0
    %239 = vmatmul.mubr.bf16.gmra.mrb[0].mxu0 %v181
    %v240 = vpop.f32.mrb[0].mxu0
    %v241 = vadd.f32 0.0, %v240
    %v242 = vpop.f32.mrb[0].mxu0
    %v243 = vadd.f32 0.0, %v242
    %v244 = vpop.f32.mrb[0].mxu0
    %v245 = vadd.f32 0.0, %v244
    %v246 = vpop.f32.mrb[0].mxu0
    %v247 = vadd.f32 0.0, %v246
    %248 = vdwg.mxu0
    %249 = vmatprep.subr.bf16.mxu0 %v194
    %250 = vmatpush1.bf16.msra.mxu0 %v191
    %251 = vmatprep.subr.bf16.mxu0 0
    %252 = vmatpush1.bf16.msra.mxu0 0
    %253 = vmatprep.subr.bf16.mxu0 0
    %254 = vmatpush1.bf16.msra.mxu0 0
    %255 = vmatprep.subr.bf16.mxu0 0
    %256 = vmatpush1.bf16.msra.mxu0 0
    %257 = vmatprep.subr.bf16.mxu0 0
    %258 = vmatpush1.bf16.msra.mxu0 0
    %259 = vmatprep.subr.bf16.mxu0 0
    %260 = vmatpush1.bf16.msra.mxu0 0
    %261 = vmatprep.subr.bf16.mxu0 0
    %262 = vmatpush1.bf16.msra.mxu0 0
    %263 = vmatprep.subr.bf16.mxu0 0
    %264 = vmatpush1.bf16.msra.mxu0 0
    %265 = vmatprep.subr.bf16.mxu0 0
    %266 = vmatpush1.bf16.msra.mxu0 0
    %267 = vmatprep.subr.bf16.mxu0 0
    %268 = vmatpush1.bf16.msra.mxu0 0
    %269 = vmatprep.subr.bf16.mxu0 0
    %270 = vmatpush1.bf16.msra.mxu0 0
    %271 = vmatprep.subr.bf16.mxu0 0
    %272 = vmatpush1.bf16.msra.mxu0 0
    %273 = vmatprep.subr.bf16.mxu0 0
    %274 = vmatpush1.bf16.msra.mxu0 0
    %275 = vmatprep.subr.bf16.mxu0 0
    %276 = vmatpush1.bf16.msra.mxu0 0
    %277 = vmatprep.subr.bf16.mxu0 0
    %278 = vmatpush1.bf16.msra.mxu0 0
    %279 = vmatprep.subr.bf16.mxu0 0
    %280 = vmatpush1.bf16.msra.mxu0 0
    %281 = vmatprep.mubr.bf16.mxu0 0
    %282 = vmatmul.mubr.bf16.gmra.mrb[0].mxu0 %v178
    %v283 = vpop.f32.mrb[0].mxu0
    %v284 = vadd.f32 0.0, %v283
    %v285 = vpop.f32.mrb[0].mxu0
    %v286 = vadd.f32 0.0, %v285
    %v287 = vpop.f32.mrb[0].mxu0
    %v288 = vadd.f32 0.0, %v287
    %v289 = vpop.f32.mrb[0].mxu0
    %v290 = vadd.f32 0.0, %v289
    %291 = vmatprep.mubr.bf16.mxu0 0
    %292 = vmatmul.mubr.bf16.gmra.mrb[0].mxu0 %v181
    %v293 = vpop.f32.mrb[0].mxu0
    %v294 = vadd.f32 0.0, %v293
    %v295 = vpop.f32.mrb[0].mxu0
    %v296 = vadd.f32 0.0, %v295
    %v297 = vpop.f32.mrb[0].mxu0
    %v298 = vadd.f32 0.0, %v297
    %v299 = vpop.f32.mrb[0].mxu0
    %v300 = vadd.f32 0.0, %v299
    %301 = vdwg.mxu0
    %v302 = vld [vmem:[%s4] sm:$0xf]
    %v303 = vld [vmem:[%s4 + $0x4] sm:$0xf]
    %v304 = vld [vmem:[%s4 + $0x8] sm:$0xf]
    %v305 = vld [vmem:[%s4 + $0xc] sm:$0xf]
    %v310 = vunpack.c.l.b16 %v302
    %v311 = vunpack.c.l.b16 %v303
    %v312 = vunpack.c.l.b16 %v304
    %v313 = vunpack.c.l.b16 %v305
    %v314 = vpack.c.b16 %v311, %v310
    %v315 = vpack.c.b16 %v313, %v312
    %vm316 = vcmask 31744
    %v318 = vsel %vm316, %v314, 0
    %v321 = vsel %vm316, %v315, 0
    %vm323 = vcmask 1041408
    %v325 = vsel %vm323, %v158, 0
    %v328 = vsel %vm323, %v159, 0
    %v331 = vsel %vm323, %v160, 0
    %v334 = vsel %vm323, %v161, 0
    %336 = vmatprep.subr.bf16.mxu0 %v328
    %337 = vmatpush1.bf16.msra.mxu0 %v325
    %338 = vmatprep.subr.bf16.mxu0 0
    %339 = vmatpush1.bf16.msra.mxu0 0
    %340 = vmatprep.subr.bf16.mxu0 0
    %341 = vmatpush1.bf16.msra.mxu0 0
    %342 = vmatprep.subr.bf16.mxu0 0
    %343 = vmatpush1.bf16.msra.mxu0 0
    %344 = vmatprep.subr.bf16.mxu0 0
    %345 = vmatpush1.bf16.msra.mxu0 0
    %346 = vmatprep.subr.bf16.mxu0 0
    %347 = vmatpush1.bf16.msra.mxu0 0
    %348 = vmatprep.subr.bf16.mxu0 0
    %349 = vmatpush1.bf16.msra.mxu0 0
    %350 = vmatprep.subr.bf16.mxu0 0
    %351 = vmatpush1.bf16.msra.mxu0 0
    %352 = vmatprep.subr.bf16.mxu0 0
    %353 = vmatpush1.bf16.msra.mxu0 0
    %354 = vmatprep.subr.bf16.mxu0 0
    %355 = vmatpush1.bf16.msra.mxu0 0
    %356 = vmatprep.subr.bf16.mxu0 0
    %357 = vmatpush1.bf16.msra.mxu0 0
    %358 = vmatprep.subr.bf16.mxu0 0
    %359 = vmatpush1.bf16.msra.mxu0 0
    %360 = vmatprep.subr.bf16.mxu0 0
    %361 = vmatpush1.bf16.msra.mxu0 0
    %362 = vmatprep.subr.bf16.mxu0 0
    %363 = vmatpush1.bf16.msra.mxu0 0
    %364 = vmatprep.subr.bf16.mxu0 0
    %365 = vmatpush1.bf16.msra.mxu0 0
    %366 = vmatprep.subr.bf16.mxu0 0
    %367 = vmatpush1.bf16.msra.mxu0 0
    %368 = vmatprep.mubr.bf16.mxu0 0
    %369 = vmatmul.mubr.bf16.gmra.mrb[0].mxu0 %v318
    %v370 = vpop.f32.mrb[0].mxu0
    %v371 = vadd.f32 0.0, %v370
    %v372 = vpop.f32.mrb[0].mxu0
    %v373 = vadd.f32 0.0, %v372
    %v374 = vpop.f32.mrb[0].mxu0
    %v375 = vadd.f32 0.0, %v374
    %v376 = vpop.f32.mrb[0].mxu0
    %v377 = vadd.f32 0.0, %v376
    %378 = vmatprep.mubr.bf16.mxu0 0
    %379 = vmatmul.mubr.bf16.gmra.mrb[0].mxu0 %v321
    %v380 = vpop.f32.mrb[0].mxu0
    %v381 = vadd.f32 0.0, %v380
    %v382 = vpop.f32.mrb[0].mxu0
    %v383 = vadd.f32 0.0, %v382
    %v384 = vpop.f32.mrb[0].mxu0
    %v385 = vadd.f32 0.0, %v384
    %v386 = vpop.f32.mrb[0].mxu0
    %v387 = vadd.f32 0.0, %v386
    %388 = vdwg.mxu0
    %389 = vmatprep.subr.bf16.mxu0 %v334
    %390 = vmatpush1.bf16.msra.mxu0 %v331
    %391 = vmatprep.subr.bf16.mxu0 0
    %392 = vmatpush1.bf16.msra.mxu0 0
    %393 = vmatprep.subr.bf16.mxu0 0
    %394 = vmatpush1.bf16.msra.mxu0 0
    %395 = vmatprep.subr.bf16.mxu0 0
    %396 = vmatpush1.bf16.msra.mxu0 0
    %397 = vmatprep.subr.bf16.mxu0 0
    %398 = vmatpush1.bf16.msra.mxu0 0
    %399 = vmatprep.subr.bf16.mxu0 0
    %400 = vmatpush1.bf16.msra.mxu0 0
    %401 = vmatprep.subr.bf16.mxu0 0
    %402 = vmatpush1.bf16.msra.mxu0 0
    %403 = vmatprep.subr.bf16.mxu0 0
    %404 = vmatpush1.bf16.msra.mxu0 0
    %405 = vmatprep.subr.bf16.mxu0 0
    %406 = vmatpush1.bf16.msra.mxu0 0
    %407 = vmatprep.subr.bf16.mxu0 0
    %408 = vmatpush1.bf16.msra.mxu0 0
    %409 = vmatprep.subr.bf16.mxu0 0
    %410 = vmatpush1.bf16.msra.mxu0 0
    %411 = vmatprep.subr.bf16.mxu0 0
    %412 = vmatpush1.bf16.msra.mxu0 0
    %413 = vmatprep.subr.bf16.mxu0 0
    %414 = vmatpush1.bf16.msra.mxu0 0
    %415 = vmatprep.subr.bf16.mxu0 0
    %416 = vmatpush1.bf16.msra.mxu0 0
    %417 = vmatprep.subr.bf16.mxu0 0
    %418 = vmatpush1.bf16.msra.mxu0 0
    %419 = vmatprep.subr.bf16.mxu0 0
    %420 = vmatpush1.bf16.msra.mxu0 0
    %421 = vmatprep.mubr.bf16.mxu0 0
    %422 = vmatmul.mubr.bf16.gmra.mrb[0].mxu0 %v318
    %v423 = vpop.f32.mrb[0].mxu0
    %v424 = vadd.f32 0.0, %v423
    %v425 = vpop.f32.mrb[0].mxu0
    %v426 = vadd.f32 0.0, %v425
    %v427 = vpop.f32.mrb[0].mxu0
    %v428 = vadd.f32 0.0, %v427
    %v429 = vpop.f32.mrb[0].mxu0
    %v430 = vadd.f32 0.0, %v429
    %431 = vmatprep.mubr.bf16.mxu0 0
    %432 = vmatmul.mubr.bf16.gmra.mrb[0].mxu0 %v321
    %v433 = vpop.f32.mrb[0].mxu0
    %v434 = vadd.f32 0.0, %v433
    %v435 = vpop.f32.mrb[0].mxu0
    %v436 = vadd.f32 0.0, %v435
    %v437 = vpop.f32.mrb[0].mxu0
    %v438 = vadd.f32 0.0, %v437
    %v439 = vpop.f32.mrb[0].mxu0
    %v440 = vadd.f32 0.0, %v439
    %441 = vdwg.mxu0
    %v442 = vxor.u32 %v371, 2147483648
    %v443 = vxor.u32 %v373, 2147483648
    %v444 = vxor.u32 %v424, 2147483648
    %v445 = vxor.u32 %v426, 2147483648
    %v446 = vxor.u32 %v375, 2147483648
    %v447 = vxor.u32 %v377, 2147483648
    %v448 = vxor.u32 %v428, 2147483648
    %v449 = vxor.u32 %v430, 2147483648
    %v450 = vxor.u32 %v381, 2147483648
    %v451 = vxor.u32 %v383, 2147483648
    %v452 = vxor.u32 %v434, 2147483648
    %v453 = vxor.u32 %v436, 2147483648
    %v454 = vxor.u32 %v385, 2147483648
    %v455 = vxor.u32 %v387, 2147483648
    %v456 = vxor.u32 %v438, 2147483648
    %v457 = vxor.u32 %v440, 2147483648
    %v458 = vmul.f32 %v442, 1.442695
    %v459 = vpow.pop %v458
    %v460 = vmul.f32 %v443, 1.442695
    %v461 = vpow.pop %v460
    %v462 = vmul.f32 %v444, 1.442695
    %v463 = vpow.pop %v462
    %v464 = vmul.f32 %v445, 1.442695
    %v465 = vpow.pop %v464
    %v466 = vmul.f32 %v446, 1.442695
    %v467 = vpow.pop %v466
    %v468 = vmul.f32 %v447, 1.442695
    %v469 = vpow.pop %v468
    %v470 = vmul.f32 %v448, 1.442695
    %v471 = vpow.pop %v470
    %v472 = vmul.f32 %v449, 1.442695
    %v473 = vpow.pop %v472
    %v474 = vmul.f32 %v450, 1.442695
    %v475 = vpow.pop %v474
    %v476 = vmul.f32 %v451, 1.442695
    %v477 = vpow.pop %v476
    %v478 = vmul.f32 %v452, 1.442695
    %v479 = vpow.pop %v478
    %v480 = vmul.f32 %v453, 1.442695
    %v481 = vpow.pop %v480
    %v482 = vmul.f32 %v454, 1.442695
    %v483 = vpow.pop %v482
    %v484 = vmul.f32 %v455, 1.442695
    %v485 = vpow.pop %v484
    %v486 = vmul.f32 %v456, 1.442695
    %v487 = vpow.pop %v486
    %v488 = vmul.f32 %v457, 1.442695
    %v489 = vpow.pop %v488
    %v490 = vadd.f32 %v459, 1.0
    %v491 = vadd.f32 %v461, 1.0
    %v492 = vadd.f32 %v463, 1.0
    %v493 = vadd.f32 %v465, 1.0
    %v494 = vadd.f32 %v467, 1.0
    %v495 = vadd.f32 %v469, 1.0
    %v496 = vadd.f32 %v471, 1.0
    %v497 = vadd.f32 %v473, 1.0
    %v498 = vadd.f32 %v475, 1.0
    %v499 = vadd.f32 %v477, 1.0
    %v500 = vadd.f32 %v479, 1.0
    %v501 = vadd.f32 %v481, 1.0
    %v502 = vadd.f32 %v483, 1.0
    %v503 = vadd.f32 %v485, 1.0
    %v504 = vadd.f32 %v487, 1.0
    %v505 = vadd.f32 %v489, 1.0
    %v506 = vrcp.pop %v490
    %v507 = vmul.f32 1.0, %v506
    %v508 = vrcp.pop %v491
    %v509 = vmul.f32 1.0, %v508
    %v510 = vrcp.pop %v492
    %v511 = vmul.f32 1.0, %v510
    %v512 = vrcp.pop %v493
    %v513 = vmul.f32 1.0, %v512
    %v514 = vrcp.pop %v494
    %v515 = vmul.f32 1.0, %v514
    %v516 = vrcp.pop %v495
    %v517 = vmul.f32 1.0, %v516
    %v518 = vrcp.pop %v496
    %v519 = vmul.f32 1.0, %v518
    %v520 = vrcp.pop %v497
    %v521 = vmul.f32 1.0, %v520
    %v522 = vrcp.pop %v498
    %v523 = vmul.f32 1.0, %v522
    %v524 = vrcp.pop %v499
    %v525 = vmul.f32 1.0, %v524
    %v526 = vrcp.pop %v500
    %v527 = vmul.f32 1.0, %v526
    %v528 = vrcp.pop %v501
    %v529 = vmul.f32 1.0, %v528
    %v530 = vrcp.pop %v502
    %v531 = vmul.f32 1.0, %v530
    %v532 = vrcp.pop %v503
    %v533 = vmul.f32 1.0, %v532
    %v534 = vrcp.pop %v504
    %v535 = vmul.f32 1.0, %v534
    %v536 = vrcp.pop %v505
    %v537 = vmul.f32 1.0, %v536
    %v538 = vmul.f32 %v507, %v507
    %v539 = vmul.f32 %v509, %v509
    %v540 = vmul.f32 %v511, %v511
    %v541 = vmul.f32 %v513, %v513
    %v542 = vmul.f32 %v515, %v515
    %v543 = vmul.f32 %v517, %v517
    %v544 = vmul.f32 %v519, %v519
    %v545 = vmul.f32 %v521, %v521
    %v546 = vmul.f32 %v523, %v523
    %v547 = vmul.f32 %v525, %v525
    %v548 = vmul.f32 %v527, %v527
    %v549 = vmul.f32 %v529, %v529
    %v550 = vmul.f32 %v531, %v531
    %v551 = vmul.f32 %v533, %v533
    %v552 = vmul.f32 %v535, %v535
    %v553 = vmul.f32 %v537, %v537
    %v554 = vmul.f32 %v231, %v507
    %v555 = vmul.f32 %v233, %v509
    %v556 = vmul.f32 %v284, %v511
    %v557 = vmul.f32 %v286, %v513
    %v558 = vmul.f32 %v235, %v515
    %v559 = vmul.f32 %v237, %v517
    %v560 = vmul.f32 %v288, %v519
    %v561 = vmul.f32 %v290, %v521
    %v562 = vmul.f32 %v241, %v523
    %v563 = vmul.f32 %v243, %v525
    %v564 = vmul.f32 %v294, %v527
    %v565 = vmul.f32 %v296, %v529
    %v566 = vmul.f32 %v245, %v531
    %v567 = vmul.f32 %v247, %v533
    %v568 = vmul.f32 %v298, %v535
    %v569 = vmul.f32 %v300, %v537
    %v570 = vpack.c.bf16 %v558, %v554
    %v571 = vpack.c.bf16 %v559, %v555
    %v572 = vpack.c.bf16 %v560, %v556
    %v573 = vpack.c.bf16 %v561, %v557
    %v574 = vpack.c.bf16 %v566, %v562
    %v575 = vpack.c.bf16 %v567, %v563
    %v576 = vpack.c.bf16 %v568, %v564
    %v577 = vpack.c.bf16 %v569, %v565
    %586 = vrot.lane.b32.xlu0 %v570, 17
    %v587 = vpop.permute.xlu0 %586
    %588 = vrot.lane.b32.xlu0 %v574, 17
    %v589 = vpop.permute.xlu0 %588
    %590 = vrot.lane.b32.xlu0 %v571, 17
    %v591 = vpop.permute.xlu0 %590
    %592 = vrot.lane.b32.xlu0 %v575, 17
    %v593 = vpop.permute.xlu0 %592
    %594 = vrot.lane.b32.xlu0 %v572, 17
    %v595 = vpop.permute.xlu0 %594
    %596 = vrot.lane.b32.xlu0 %v576, 17
    %v597 = vpop.permute.xlu0 %596
    %598 = vrot.lane.b32.xlu0 %v573, 17
    %v599 = vpop.permute.xlu0 %598
    %600 = vrot.lane.b32.xlu0 %v577, 17
    %v601 = vpop.permute.xlu0 %600
    %v602 = vlaneseq
    %v603 = vand.u32 %v602, 127
    %vm604 = vcmp.lt.s32.totalorder %v603, 17
    %v605 = vsel %vm604, %v595, %v599
    %v606 = vsel %vm604, %v597, %v601
    %v607 = vsel %vm604, %v591, %v595
    %v608 = vsel %vm604, %v593, %v597
    %v609 = vsel %vm604, %v587, %v591
    %v610 = vsel %vm604, %v589, %v593
    %v611 = vsel %vm604, %v599, %v587
    %v612 = vsel %vm604, %v601, %v589
    %v622 = vpack.i.b16 %v138, %v138
    %v624 = vlaneseq
    %v625 = vshrl.u32 %v624, 7
    %v626 = vsub.s32 0, %v625
    %v627 = vrot.slane %v622, %v626
    %v629 = vpack.i.b16 %v139, %v139
    %v631 = vlaneseq
    %v632 = vshrl.u32 %v631, 7
    %v633 = vsub.s32 0, %v632
    %v634 = vrot.slane %v629, %v633
    %v636 = vpack.i.b16 %v140, %v140
    %v638 = vlaneseq
    %v639 = vshrl.u32 %v638, 7
    %v640 = vsub.s32 0, %v639
    %v641 = vrot.slane %v636, %v640
    %v643 = vpack.i.b16 %v141, %v141
    %v645 = vlaneseq
    %v646 = vshrl.u32 %v645, 7
    %v647 = vsub.s32 0, %v646
    %v648 = vrot.slane %v643, %v647
    %v649 = vmul.bf16 %v611, %v627
    %v650 = vmul.bf16 %v609, %v634
    %v651 = vmul.bf16 %v607, %v641
    %v652 = vmul.bf16 %v605, %v648
    %v653 = vmul.bf16 %v612, %v627
    %v654 = vmul.bf16 %v610, %v634
    %v655 = vmul.bf16 %v608, %v641
    %v656 = vmul.bf16 %v606, %v648
    %657 = vst [vmem:[#allocation2] sm:$0xff] %v649
    %658 = vst [vmem:[#allocation2 + $0x8] sm:$0xff] %v650
    %659 = vst [vmem:[#allocation2 + $0x10] sm:$0xff] %v651
    %660 = vst [vmem:[#allocation2 + $0x18] sm:$0xff] %v652
    %661 = vst [vmem:[#allocation2 + $0x20] sm:$0xff] %v653
    %662 = vst [vmem:[#allocation2 + $0x28] sm:$0xff] %v654
    %663 = vst [vmem:[#allocation2 + $0x30] sm:$0xff] %v655
    %664 = vst [vmem:[#allocation2 + $0x38] sm:$0xff] %v656
    %665 = vrot.lane.b32.xlu0 %v570, 16
    %v666 = vpop.permute.xlu0 %665
    %667 = vrot.lane.b32.xlu0 %v574, 16
    %v668 = vpop.permute.xlu0 %667
    %669 = vrot.lane.b32.xlu0 %v571, 16
    %v670 = vpop.permute.xlu0 %669
    %671 = vrot.lane.b32.xlu0 %v575, 16
    %v672 = vpop.permute.xlu0 %671
    %673 = vrot.lane.b32.xlu0 %v572, 16
    %v674 = vpop.permute.xlu0 %673
    %675 = vrot.lane.b32.xlu0 %v576, 16
    %v676 = vpop.permute.xlu0 %675
    %677 = vrot.lane.b32.xlu0 %v573, 16
    %v678 = vpop.permute.xlu0 %677
    %679 = vrot.lane.b32.xlu0 %v577, 16
    %v680 = vpop.permute.xlu0 %679
    %vm681 = vcmp.lt.s32.totalorder %v603, 16
    %v682 = vsel %vm681, %v674, %v678
    %v683 = vsel %vm681, %v676, %v680
    %v684 = vsel %vm681, %v670, %v674
    %v685 = vsel %vm681, %v672, %v676
    %v686 = vsel %vm681, %v666, %v670
    %v687 = vsel %vm681, %v668, %v672
    %v688 = vsel %vm681, %v678, %v666
    %v689 = vsel %vm681, %v680, %v668
    %v698 = vshrl.u32 %v138, 16
    %v699 = vpack.i.b16 %v698, %v698
    %v701 = vlaneseq
    %v702 = vshrl.u32 %v701, 7
    %v703 = vsub.s32 0, %v702
    %v704 = vrot.slane %v699, %v703
    %v705 = vshrl.u32 %v139, 16
    %v706 = vpack.i.b16 %v705, %v705
    %v708 = vlaneseq
    %v709 = vshrl.u32 %v708, 7
    %v710 = vsub.s32 0, %v709
    %v711 = vrot.slane %v706, %v710
    %v712 = vshrl.u32 %v140, 16
    %v713 = vpack.i.b16 %v712, %v712
    %v715 = vlaneseq
    %v716 = vshrl.u32 %v715, 7
    %v717 = vsub.s32 0, %v716
    %v718 = vrot.slane %v713, %v717
    %v719 = vshrl.u32 %v141, 16
    %v720 = vpack.i.b16 %v719, %v719
    %v722 = vlaneseq
    %v723 = vshrl.u32 %v722, 7
    %v724 = vsub.s32 0, %v723
    %v725 = vrot.slane %v720, %v724
    %v726 = vmul.bf16 %v688, %v704
    %v727 = vmul.bf16 %v686, %v711
    %v728 = vmul.bf16 %v684, %v718
    %v729 = vmul.bf16 %v682, %v725
    %v730 = vmul.bf16 %v689, %v704
    %v731 = vmul.bf16 %v687, %v711
    %v732 = vmul.bf16 %v685, %v718
    %v733 = vmul.bf16 %v683, %v725
    %734 = vst [vmem:[#allocation2 + $0x40] sm:$0xff] %v726
    %735 = vst [vmem:[#allocation2 + $0x48] sm:$0xff] %v727
    %736 = vst [vmem:[#allocation2 + $0x50] sm:$0xff] %v728
    %737 = vst [vmem:[#allocation2 + $0x58] sm:$0xff] %v729
    %738 = vst [vmem:[#allocation2 + $0x60] sm:$0xff] %v730
    %739 = vst [vmem:[#allocation2 + $0x68] sm:$0xff] %v731
    %740 = vst [vmem:[#allocation2 + $0x70] sm:$0xff] %v732
    %741 = vst [vmem:[#allocation2 + $0x78] sm:$0xff] %v733
    %742 = vrot.lane.b32.xlu0 %v570, 15
    %v743 = vpop.permute.xlu0 %742
    %744 = vrot.lane.b32.xlu0 %v574, 15
    %v745 = vpop.permute.xlu0 %744
    %746 = vrot.lane.b32.xlu0 %v571, 15
    %v747 = vpop.permute.xlu0 %746
    %748 = vrot.lane.b32.xlu0 %v575, 15
    %v749 = vpop.permute.xlu0 %748
    %750 = vrot.lane.b32.xlu0 %v572, 15
    %v751 = vpop.permute.xlu0 %750
    %752 = vrot.lane.b32.xlu0 %v576, 15
    %v753 = vpop.permute.xlu0 %752
    %754 = vrot.lane.b32.xlu0 %v573, 15
    %v755 = vpop.permute.xlu0 %754
    %756 = vrot.lane.b32.xlu0 %v577, 15
    %v757 = vpop.permute.xlu0 %756
    %vm758 = vcmp.lt.s32.totalorder %v603, 15
    %v759 = vsel %vm758, %v751, %v755
    %v760 = vsel %vm758, %v753, %v757
    %v761 = vsel %vm758, %v747, %v751
    %v762 = vsel %vm758, %v749, %v753
    %v763 = vsel %vm758, %v743, %v747
    %v764 = vsel %vm758, %v745, %v749
    %v765 = vsel %vm758, %v755, %v743
    %v766 = vsel %vm758, %v757, %v745
    %v775 = vlaneseq
    %v776 = vshrl.u32 %v775, 7
    %v777 = vsub.s32 1, %v776
    %v778 = vrot.slane %v622, %v777
    %v779 = vlaneseq
    %v780 = vshrl.u32 %v779, 7
    %v781 = vsub.s32 1, %v780
    %v782 = vrot.slane %v629, %v781
    %v783 = vlaneseq
    %v784 = vshrl.u32 %v783, 7
    %v785 = vsub.s32 1, %v784
    %v786 = vrot.slane %v636, %v785
    %v787 = vlaneseq
    %v788 = vshrl.u32 %v787, 7
    %v789 = vsub.s32 1, %v788
    %v790 = vrot.slane %v643, %v789
    %v791 = vmul.bf16 %v765, %v778
    %v792 = vmul.bf16 %v763, %v782
    %v793 = vmul.bf16 %v761, %v786
    %v794 = vmul.bf16 %v759, %v790
    %v795 = vmul.bf16 %v766, %v778
    %v796 = vmul.bf16 %v764, %v782
    %v797 = vmul.bf16 %v762, %v786
    %v798 = vmul.bf16 %v760, %v790
    %799 = vst [vmem:[#allocation2 + $0x80] sm:$0xff] %v791
    %800 = vst [vmem:[#allocation2 + $0x88] sm:$0xff] %v792
    %801 = vst [vmem:[#allocation2 + $0x90] sm:$0xff] %v793
    %802 = vst [vmem:[#allocation2 + $0x98] sm:$0xff] %v794
    %803 = vst [vmem:[#allocation2 + $0xa0] sm:$0xff] %v795
    %804 = vst [vmem:[#allocation2 + $0xa8] sm:$0xff] %v796
    %805 = vst [vmem:[#allocation2 + $0xb0] sm:$0xff] %v797
    %806 = vst [vmem:[#allocation2 + $0xb8] sm:$0xff] %v798
    %807 = vrot.lane.b32.xlu0 %v570, 1
    %v808 = vpop.permute.xlu0 %807
    %809 = vrot.lane.b32.xlu0 %v574, 1
    %v810 = vpop.permute.xlu0 %809
    %811 = vrot.lane.b32.xlu0 %v571, 1
    %v812 = vpop.permute.xlu0 %811
    %813 = vrot.lane.b32.xlu0 %v575, 1
    %v814 = vpop.permute.xlu0 %813
    %815 = vrot.lane.b32.xlu0 %v572, 1
    %v816 = vpop.permute.xlu0 %815
    %817 = vrot.lane.b32.xlu0 %v576, 1
    %v818 = vpop.permute.xlu0 %817
    %819 = vrot.lane.b32.xlu0 %v573, 1
    %v820 = vpop.permute.xlu0 %819
    %821 = vrot.lane.b32.xlu0 %v577, 1
    %v822 = vpop.permute.xlu0 %821
    %vm823 = vcmp.lt.s32.totalorder %v603, 1
    %v824 = vsel %vm823, %v816, %v820
    %v825 = vsel %vm823, %v818, %v822
    %v826 = vsel %vm823, %v812, %v816
    %v827 = vsel %vm823, %v814, %v818
    %v828 = vsel %vm823, %v808, %v812
    %v829 = vsel %vm823, %v810, %v814
    %v830 = vsel %vm823, %v820, %v808
    %v831 = vsel %vm823, %v822, %v810
    %v840 = vlaneseq
    %v841 = vshrl.u32 %v840, 7
    %v842 = vsub.s32 1, %v841
    %v843 = vrot.slane %v699, %v842
    %v844 = vlaneseq
    %v845 = vshrl.u32 %v844, 7
    %v846 = vsub.s32 1, %v845
    %v847 = vrot.slane %v706, %v846
    %v848 = vlaneseq
    %v849 = vshrl.u32 %v848, 7
    %v850 = vsub.s32 1, %v849
    %v851 = vrot.slane %v713, %v850
    %v852 = vlaneseq
    %v853 = vshrl.u32 %v852, 7
    %v854 = vsub.s32 1, %v853
    %v855 = vrot.slane %v720, %v854
    %v856 = vmul.bf16 %v830, %v843
    %v857 = vmul.bf16 %v828, %v847
    %v858 = vmul.bf16 %v826, %v851
    %v859 = vmul.bf16 %v824, %v855
    %v860 = vmul.bf16 %v831, %v843
    %v861 = vmul.bf16 %v829, %v847
    %v862 = vmul.bf16 %v827, %v851
    %v863 = vmul.bf16 %v825, %v855
    %864 = vst [vmem:[#allocation2 + $0xc0] sm:$0xff] %v856
    %865 = vst [vmem:[#allocation2 + $0xc8] sm:$0xff] %v857
    %866 = vst [vmem:[#allocation2 + $0xd0] sm:$0xff] %v858
    %867 = vst [vmem:[#allocation2 + $0xd8] sm:$0xff] %v859
    %868 = vst [vmem:[#allocation2 + $0xe0] sm:$0xff] %v860
    %869 = vst [vmem:[#allocation2 + $0xe8] sm:$0xff] %v861
    %870 = vst [vmem:[#allocation2 + $0xf0] sm:$0xff] %v862
    %871 = vst [vmem:[#allocation2 + $0xf8] sm:$0xff] %v863
    %872 = vrot.lane.b32.xlu0 %v570, 127
    %v873 = vpop.permute.xlu0 %872
    %874 = vrot.lane.b32.xlu0 %v574, 127
    %v875 = vpop.permute.xlu0 %874
    %876 = vrot.lane.b32.xlu0 %v571, 127
    %v877 = vpop.permute.xlu0 %876
    %878 = vrot.lane.b32.xlu0 %v575, 127
    %v879 = vpop.permute.xlu0 %878
    %880 = vrot.lane.b32.xlu0 %v572, 127
    %v881 = vpop.permute.xlu0 %880
    %882 = vrot.lane.b32.xlu0 %v576, 127
    %v883 = vpop.permute.xlu0 %882
    %884 = vrot.lane.b32.xlu0 %v573, 127
    %v885 = vpop.permute.xlu0 %884
    %886 = vrot.lane.b32.xlu0 %v577, 127
    %v887 = vpop.permute.xlu0 %886
    %vm888 = vcmp.lt.s32.totalorder %v603, 127
    %v889 = vsel %vm888, %v881, %v885
    %v890 = vsel %vm888, %v883, %v887
    %v891 = vsel %vm888, %v877, %v881
    %v892 = vsel %vm888, %v879, %v883
    %v893 = vsel %vm888, %v873, %v877
    %v894 = vsel %vm888, %v875, %v879
    %v895 = vsel %vm888, %v885, %v873
    %v896 = vsel %vm888, %v887, %v875
    %v905 = vlaneseq
    %v906 = vshrl.u32 %v905, 7
    %v907 = vsub.s32 2, %v906
    %v908 = vrot.slane %v622, %v907
    %v909 = vlaneseq
    %v910 = vshrl.u32 %v909, 7
    %v911 = vsub.s32 2, %v910
    %v912 = vrot.slane %v629, %v911
    %v913 = vlaneseq
    %v914 = vshrl.u32 %v913, 7
    %v915 = vsub.s32 2, %v914
    %v916 = vrot.slane %v636, %v915
    %v917 = vlaneseq
    %v918 = vshrl.u32 %v917, 7
    %v919 = vsub.s32 2, %v918
    %v920 = vrot.slane %v643, %v919
    %v921 = vmul.bf16 %v893, %v908
    %v922 = vmul.bf16 %v891, %v912
    %v923 = vmul.bf16 %v889, %v916
    %v924 = vmul.bf16 %v895, %v920
    %v925 = vmul.bf16 %v894, %v908
    %v926 = vmul.bf16 %v892, %v912
    %v927 = vmul.bf16 %v890, %v916
    %v928 = vmul.bf16 %v896, %v920
    %929 = vst [vmem:[#allocation2 + $0x100] sm:$0xff] %v921
    %930 = vst [vmem:[#allocation2 + $0x108] sm:$0xff] %v922
    %931 = vst [vmem:[#allocation2 + $0x110] sm:$0xff] %v923
    %932 = vst [vmem:[#allocation2 + $0x118] sm:$0xff] %v924
    %933 = vst [vmem:[#allocation2 + $0x120] sm:$0xff] %v925
    %934 = vst [vmem:[#allocation2 + $0x128] sm:$0xff] %v926
    %935 = vst [vmem:[#allocation2 + $0x130] sm:$0xff] %v927
    %936 = vst [vmem:[#allocation2 + $0x138] sm:$0xff] %v928
    %937 = vrot.lane.b32.xlu0 %v570, 113
    %v938 = vpop.permute.xlu0 %937
    %939 = vrot.lane.b32.xlu0 %v574, 113
    %v940 = vpop.permute.xlu0 %939
    %941 = vrot.lane.b32.xlu0 %v571, 113
    %v942 = vpop.permute.xlu0 %941
    %943 = vrot.lane.b32.xlu0 %v575, 113
    %v944 = vpop.permute.xlu0 %943
    %945 = vrot.lane.b32.xlu0 %v572, 113
    %v946 = vpop.permute.xlu0 %945
    %947 = vrot.lane.b32.xlu0 %v576, 113
    %v948 = vpop.permute.xlu0 %947
    %949 = vrot.lane.b32.xlu0 %v573, 113
    %v950 = vpop.permute.xlu0 %949
    %951 = vrot.lane.b32.xlu0 %v577, 113
    %v952 = vpop.permute.xlu0 %951
    %vm953 = vcmp.lt.s32.totalorder %v603, 113
    %v954 = vsel %vm953, %v946, %v950
    %v955 = vsel %vm953, %v948, %v952
    %v956 = vsel %vm953, %v942, %v946
    %v957 = vsel %vm953, %v944, %v948
    %v958 = vsel %vm953, %v938, %v942
    %v959 = vsel %vm953, %v940, %v944
    %v960 = vsel %vm953, %v950, %v938
    %v961 = vsel %vm953, %v952, %v940
    %v970 = vlaneseq
    %v971 = vshrl.u32 %v970, 7
    %v972 = vsub.s32 2, %v971
    %v973 = vrot.slane %v699, %v972
    %v974 = vlaneseq
    %v975 = vshrl.u32 %v974, 7
    %v976 = vsub.s32 2, %v975
    %v977 = vrot.slane %v706, %v976
    %v978 = vlaneseq
    %v979 = vshrl.u32 %v978, 7
    %v980 = vsub.s32 2, %v979
    %v981 = vrot.slane %v713, %v980
    %v982 = vlaneseq
    %v983 = vshrl.u32 %v982, 7
    %v984 = vsub.s32 2, %v983
    %v985 = vrot.slane %v720, %v984
    %v986 = vmul.bf16 %v958, %v973
    %v987 = vmul.bf16 %v956, %v977
    %v988 = vmul.bf16 %v954, %v981
    %v989 = vmul.bf16 %v960, %v985
    %v990 = vmul.bf16 %v959, %v973
    %v991 = vmul.bf16 %v957, %v977
    %v992 = vmul.bf16 %v955, %v981
    %v993 = vmul.bf16 %v961, %v985
    %994 = vst [vmem:[#allocation2 + $0x140] sm:$0xff] %v986
    %995 = vst [vmem:[#allocation2 + $0x148] sm:$0xff] %v987
    %996 = vst [vmem:[#allocation2 + $0x150] sm:$0xff] %v988
    %997 = vst [vmem:[#allocation2 + $0x158] sm:$0xff] %v989
    %998 = vst [vmem:[#allocation2 + $0x160] sm:$0xff] %v990
    %999 = vst [vmem:[#allocation2 + $0x168] sm:$0xff] %v991
    %1000 = vst [vmem:[#allocation2 + $0x170] sm:$0xff] %v992
    %1001 = vst [vmem:[#allocation2 + $0x178] sm:$0xff] %v993
    %1002 = vrot.lane.b32.xlu0 %v570, 112
    %v1003 = vpop.permute.xlu0 %1002
    %1004 = vrot.lane.b32.xlu0 %v574, 112
    %v1005 = vpop.permute.xlu0 %1004
    %1006 = vrot.lane.b32.xlu0 %v571, 112
    %v1007 = vpop.permute.xlu0 %1006
    %1008 = vrot.lane.b32.xlu0 %v575, 112
    %v1009 = vpop.permute.xlu0 %1008
    %1010 = vrot.lane.b32.xlu0 %v572, 112
    %v1011 = vpop.permute.xlu0 %1010
    %1012 = vrot.lane.b32.xlu0 %v576, 112
    %v1013 = vpop.permute.xlu0 %1012
    %1014 = vrot.lane.b32.xlu0 %v573, 112
    %v1015 = vpop.permute.xlu0 %1014
    %1016 = vrot.lane.b32.xlu0 %v577, 112
    %v1017 = vpop.permute.xlu0 %1016
    %vm1018 = vcmp.lt.s32.totalorder %v603, 112
    %v1019 = vsel %vm1018, %v1011, %v1015
    %v1020 = vsel %vm1018, %v1013, %v1017
    %v1021 = vsel %vm1018, %v1007, %v1011
    %v1022 = vsel %vm1018, %v1009, %v1013
    %v1023 = vsel %vm1018, %v1003, %v1007
    %v1024 = vsel %vm1018, %v1005, %v1009
    %v1025 = vsel %vm1018, %v1015, %v1003
    %v1026 = vsel %vm1018, %v1017, %v1005
    %v1035 = vlaneseq
    %v1036 = vshrl.u32 %v1035, 7
    %v1037 = vsub.s32 3, %v1036
    %v1038 = vrot.slane %v622, %v1037
    %v1039 = vlaneseq
    %v1040 = vshrl.u32 %v1039, 7
    %v1041 = vsub.s32 3, %v1040
    %v1042 = vrot.slane %v629, %v1041
    %v1043 = vlaneseq
    %v1044 = vshrl.u32 %v1043, 7
    %v1045 = vsub.s32 3, %v1044
    %v1046 = vrot.slane %v636, %v1045
    %v1047 = vlaneseq
    %v1048 = vshrl.u32 %v1047, 7
    %v1049 = vsub.s32 3, %v1048
    %v1050 = vrot.slane %v643, %v1049
    %v1051 = vmul.bf16 %v1023, %v1038
    %v1052 = vmul.bf16 %v1021, %v1042
    %v1053 = vmul.bf16 %v1019, %v1046
    %v1054 = vmul.bf16 %v1025, %v1050
    %v1055 = vmul.bf16 %v1024, %v1038
    %v1056 = vmul.bf16 %v1022, %v1042
    %v1057 = vmul.bf16 %v1020, %v1046
    %v1058 = vmul.bf16 %v1026, %v1050
    %1059 = vst [vmem:[#allocation2 + $0x180] sm:$0xff] %v1051
    %1060 = vst [vmem:[#allocation2 + $0x188] sm:$0xff] %v1052
    %1061 = vst [vmem:[#allocation2 + $0x190] sm:$0xff] %v1053
    %1062 = vst [vmem:[#allocation2 + $0x198] sm:$0xff] %v1054
    %1063 = vst [vmem:[#allocation2 + $0x1a0] sm:$0xff] %v1055
    %1064 = vst [vmem:[#allocation2 + $0x1a8] sm:$0xff] %v1056
    %1065 = vst [vmem:[#allocation2 + $0x1b0] sm:$0xff] %v1057
    %1066 = vst [vmem:[#allocation2 + $0x1b8] sm:$0xff] %v1058
    %1067 = vrot.lane.b32.xlu0 %v570, 111
    %v1068 = vpop.permute.xlu0 %1067
    %1069 = vrot.lane.b32.xlu0 %v574, 111
    %v1070 = vpop.permute.xlu0 %1069
    %1071 = vrot.lane.b32.xlu0 %v571, 111
    %v1072 = vpop.permute.xlu0 %1071
    %1073 = vrot.lane.b32.xlu0 %v575, 111
    %v1074 = vpop.permute.xlu0 %1073
    %1075 = vrot.lane.b32.xlu0 %v572, 111
    %v1076 = vpop.permute.xlu0 %1075
    %1077 = vrot.lane.b32.xlu0 %v576, 111
    %v1078 = vpop.permute.xlu0 %1077
    %1079 = vrot.lane.b32.xlu0 %v573, 111
    %v1080 = vpop.permute.xlu0 %1079
    %1081 = vrot.lane.b32.xlu0 %v577, 111
    %v1082 = vpop.permute.xlu0 %1081
    %vm1083 = vcmp.lt.s32.totalorder %v603, 111
    %v1084 = vsel %vm1083, %v1076, %v1080
    %v1085 = vsel %vm1083, %v1078, %v1082
    %v1086 = vsel %vm1083, %v1072, %v1076
    %v1087 = vsel %vm1083, %v1074, %v1078
    %v1088 = vsel %vm1083, %v1068, %v1072
    %v1089 = vsel %vm1083, %v1070, %v1074
    %v1090 = vsel %vm1083, %v1080, %v1068
    %v1091 = vsel %vm1083, %v1082, %v1070
    %v1100 = vlaneseq
    %v1101 = vshrl.u32 %v1100, 7
    %v1102 = vsub.s32 3, %v1101
    %v1103 = vrot.slane %v699, %v1102
    %v1104 = vlaneseq
    %v1105 = vshrl.u32 %v1104, 7
    %v1106 = vsub.s32 3, %v1105
    %v1107 = vrot.slane %v706, %v1106
    %v1108 = vlaneseq
    %v1109 = vshrl.u32 %v1108, 7
    %v1110 = vsub.s32 3, %v1109
    %v1111 = vrot.slane %v713, %v1110
    %v1112 = vlaneseq
    %v1113 = vshrl.u32 %v1112, 7
    %v1114 = vsub.s32 3, %v1113
    %v1115 = vrot.slane %v720, %v1114
    %v1116 = vmul.bf16 %v1088, %v1103
    %v1117 = vmul.bf16 %v1086, %v1107
    %v1118 = vmul.bf16 %v1084, %v1111
    %v1119 = vmul.bf16 %v1090, %v1115
    %v1120 = vmul.bf16 %v1089, %v1103
    %v1121 = vmul.bf16 %v1087, %v1107
    %v1122 = vmul.bf16 %v1085, %v1111
    %v1123 = vmul.bf16 %v1091, %v1115
    %1124 = vst [vmem:[#allocation2 + $0x1c0] sm:$0xff] %v1116
    %1125 = vst [vmem:[#allocation2 + $0x1c8] sm:$0xff] %v1117
    %1126 = vst [vmem:[#allocation2 + $0x1d0] sm:$0xff] %v1118
    %1127 = vst [vmem:[#allocation2 + $0x1d8] sm:$0xff] %v1119
    %1128 = vst [vmem:[#allocation2 + $0x1e0] sm:$0xff] %v1120
    %1129 = vst [vmem:[#allocation2 + $0x1e8] sm:$0xff] %v1121
    %1130 = vst [vmem:[#allocation2 + $0x1f0] sm:$0xff] %v1122
    %1131 = vst [vmem:[#allocation2 + $0x1f8] sm:$0xff] %v1123
    %v1132 = vld [vmem:[#allocation8] sm:$0xff]
    %v1133 = vld [vmem:[#allocation8 + $0x8] sm:$0xff]
    %v1134 = vld [vmem:[#allocation8 + $0x10] sm:$0xff]
    %v1135 = vld [vmem:[#allocation8 + $0x18] sm:$0xff]
    %v1136 = vld [vmem:[#allocation2] sm:$0xff]
    %v1137 = vld [vmem:[#allocation2 + $0x8] sm:$0xff]
    %v1138 = vld [vmem:[#allocation2 + $0x10] sm:$0xff]
    %v1139 = vld [vmem:[#allocation2 + $0x18] sm:$0xff]
    %v1140 = vld [vmem:[#allocation2 + $0x20] sm:$0xff]
    %v1141 = vld [vmem:[#allocation2 + $0x28] sm:$0xff]
    %v1142 = vld [vmem:[#allocation2 + $0x30] sm:$0xff]
    %v1143 = vld [vmem:[#allocation2 + $0x38] sm:$0xff]
    %v1144 = vld [vmem:[#allocation2 + $0x40] sm:$0xff]
    %v1145 = vld [vmem:[#allocation2 + $0x48] sm:$0xff]
    %v1146 = vld [vmem:[#allocation2 + $0x50] sm:$0xff]
    %v1147 = vld [vmem:[#allocation2 + $0x58] sm:$0xff]
    %v1148 = vld [vmem:[#allocation2 + $0x60] sm:$0xff]
    %v1149 = vld [vmem:[#allocation2 + $0x68] sm:$0xff]
    %v1150 = vld [vmem:[#allocation2 + $0x70] sm:$0xff]
    %v1151 = vld [vmem:[#allocation2 + $0x78] sm:$0xff]
    %v1152 = vld [vmem:[#allocation2 + $0x80] sm:$0xff]
    %v1153 = vld [vmem:[#allocation2 + $0x88] sm:$0xff]
    %v1154 = vld [vmem:[#allocation2 + $0x90] sm:$0xff]
    %v1155 = vld [vmem:[#allocation2 + $0x98] sm:$0xff]
    %v1156 = vld [vmem:[#allocation2 + $0xa0] sm:$0xff]
    %v1157 = vld [vmem:[#allocation2 + $0xa8] sm:$0xff]
    %v1158 = vld [vmem:[#allocation2 + $0xb0] sm:$0xff]
    %v1159 = vld [vmem:[#allocation2 + $0xb8] sm:$0xff]
    %v1160 = vld [vmem:[#allocation2 + $0xc0] sm:$0xff]
    %v1161 = vld [vmem:[#allocation2 + $0xc8] sm:$0xff]
    %v1162 = vld [vmem:[#allocation2 + $0xd0] sm:$0xff]
    %v1163 = vld [vmem:[#allocation2 + $0xd8] sm:$0xff]
    %v1164 = vld [vmem:[#allocation2 + $0xe0] sm:$0xff]
    %v1165 = vld [vmem:[#allocation2 + $0xe8] sm:$0xff]
    %v1166 = vld [vmem:[#allocation2 + $0xf0] sm:$0xff]
    %v1167 = vld [vmem:[#allocation2 + $0xf8] sm:$0xff]
    %v1168 = vld [vmem:[#allocation2 + $0x100] sm:$0xff]
    %v1169 = vld [vmem:[#allocation2 + $0x108] sm:$0xff]
    %v1170 = vld [vmem:[#allocation2 + $0x110] sm:$0xff]
    %v1171 = vld [vmem:[#allocation2 + $0x118] sm:$0xff]
    %v1172 = vld [vmem:[#allocation2 + $0x120] sm:$0xff]
    %v1173 = vld [vmem:[#allocation2 + $0x128] sm:$0xff]
    %v1174 = vld [vmem:[#allocation2 + $0x130] sm:$0xff]
    %v1175 = vld [vmem:[#allocation2 + $0x138] sm:$0xff]
    %v1176 = vld [vmem:[#allocation2 + $0x140] sm:$0xff]
    %v1177 = vld [vmem:[#allocation2 + $0x148] sm:$0xff]
    %v1178 = vld [vmem:[#allocation2 + $0x150] sm:$0xff]
    %v1179 = vld [vmem:[#allocation2 + $0x158] sm:$0xff]
    %v1180 = vld [vmem:[#allocation2 + $0x160] sm:$0xff]
    %v1181 = vld [vmem:[#allocation2 + $0x168] sm:$0xff]
    %v1182 = vld [vmem:[#allocation2 + $0x170] sm:$0xff]
    %v1183 = vld [vmem:[#allocation2 + $0x178] sm:$0xff]
    %v1184 = vld [vmem:[#allocation2 + $0x180] sm:$0xff]
    %v1185 = vld [vmem:[#allocation2 + $0x188] sm:$0xff]
    %v1186 = vld [vmem:[#allocation2 + $0x190] sm:$0xff]
    %v1187 = vld [vmem:[#allocation2 + $0x198] sm:$0xff]
    %v1188 = vld [vmem:[#allocation2 + $0x1a0] sm:$0xff]
    %v1189 = vld [vmem:[#allocation2 + $0x1a8] sm:$0xff]
    %v1190 = vld [vmem:[#allocation2 + $0x1b0] sm:$0xff]
    %v1191 = vld [vmem:[#allocation2 + $0x1b8] sm:$0xff]
    %v1192 = vld [vmem:[#allocation2 + $0x1c0] sm:$0xff]
    %v1193 = vld [vmem:[#allocation2 + $0x1c8] sm:$0xff]
    %v1194 = vld [vmem:[#allocation2 + $0x1d0] sm:$0xff]
    %v1195 = vld [vmem:[#allocation2 + $0x1d8] sm:$0xff]
    %v1196 = vld [vmem:[#allocation2 + $0x1e0] sm:$0xff]
    %v1197 = vld [vmem:[#allocation2 + $0x1e8] sm:$0xff]
    %v1198 = vld [vmem:[#allocation2 + $0x1f0] sm:$0xff]
    %v1199 = vld [vmem:[#allocation2 + $0x1f8] sm:$0xff]
    %v1200 = vld [vmem:[#allocation9] sm:$0xf]
    %v1201 = vld [vmem:[#allocation9 + $0x4] sm:$0xf]
    %v1202 = vld [vmem:[#allocation9 + $0x8] sm:$0xf]
    %v1203 = vld [vmem:[#allocation9 + $0xc] sm:$0xf]
    %v1208 = vunpack.c.l.b16 %v1200
    %v1209 = vunpack.c.l.b16 %v1201
    %v1210 = vunpack.c.l.b16 %v1202
    %v1211 = vunpack.c.l.b16 %v1203
    %v1212 = vpack.c.b16 %v1209, %v1208
    %v1213 = vpack.c.b16 %v1211, %v1210
    %vm1214 = vcmask 261120
    %v1216 = vsel %vm1214, %v1212, 0
    %v1219 = vsel %vm1214, %v1213, 0
    %1221 = vmatprep.subr.bf16.mxu0 %v571
    %1222 = vmatpush1.bf16.msra.mxu0 %v570
    %1223 = vmatprep.subr.bf16.mxu0 %v575
    %1224 = vmatpush1.bf16.msra.mxu0 %v574
    %1225 = vmatprep.subr.bf16.mxu0 0
    %1226 = vmatpush1.bf16.msra.mxu0 0
    %1227 = vmatprep.subr.bf16.mxu0 0
    %1228 = vmatpush1.bf16.msra.mxu0 0
    %1229 = vmatprep.subr.bf16.mxu0 0
    %1230 = vmatpush1.bf16.msra.mxu0 0
    %1231 = vmatprep.subr.bf16.mxu0 0
    %1232 = vmatpush1.bf16.msra.mxu0 0
    %1233 = vmatprep.subr.bf16.mxu0 0
    %1234 = vmatpush1.bf16.msra.mxu0 0
    %1235 = vmatprep.subr.bf16.mxu0 0
    %1236 = vmatpush1.bf16.msra.mxu0 0
    %1237 = vmatprep.subr.bf16.mxu0 0
    %1238 = vmatpush1.bf16.msra.mxu0 0
    %1239 = vmatprep.subr.bf16.mxu0 0
    %1240 = vmatpush1.bf16.msra.mxu0 0
    %1241 = vmatprep.subr.bf16.mxu0 0
    %1242 = vmatpush1.bf16.msra.mxu0 0
    %1243 = vmatprep.subr.bf16.mxu0 0
    %1244 = vmatpush1.bf16.msra.mxu0 0
    %1245 = vmatprep.subr.bf16.mxu0 0
    %1246 = vmatpush1.bf16.msra.mxu0 0
    %1247 = vmatprep.subr.bf16.mxu0 0
    %1248 = vmatpush1.bf16.msra.mxu0 0
    %1249 = vmatprep.subr.bf16.mxu0 0
    %1250 = vmatpush1.bf16.msra.mxu0 0
    %1251 = vmatprep.subr.bf16.mxu0 0
    %1252 = vmatpush1.bf16.msra.mxu0 0
    %1253 = vmatprep.mubr.bf16.mxu0 0
    %1254 = vmatmul.mubr.bf16.gmra.mrb[0].mxu0 %v1216
    %v1255 = vpop.f32.mrb[0].mxu0
    %v1256 = vadd.f32 0.0, %v1255
    %v1257 = vpop.f32.mrb[0].mxu0
    %v1258 = vadd.f32 0.0, %v1257
    %v1259 = vpop.f32.mrb[0].mxu0
    %v1260 = vadd.f32 0.0, %v1259
    %v1261 = vpop.f32.mrb[0].mxu0
    %v1262 = vadd.f32 0.0, %v1261
    %1263 = vmatprep.mubr.bf16.mxu0 0
    %1264 = vmatmul.mubr.bf16.gmra.mrb[0].mxu0 %v1219
    %v1265 = vpop.f32.mrb[0].mxu0
    %v1266 = vadd.f32 0.0, %v1265
    %v1267 = vpop.f32.mrb[0].mxu0
    %v1268 = vadd.f32 0.0, %v1267
    %v1269 = vpop.f32.mrb[0].mxu0
    %v1270 = vadd.f32 0.0, %v1269
    %v1271 = vpop.f32.mrb[0].mxu0
    %v1272 = vadd.f32 0.0, %v1271
    %1273 = vdwg.mxu0
    %1274 = vmatprep.subr.bf16.mxu0 %v573
    %1275 = vmatpush1.bf16.msra.mxu0 %v572
    %1276 = vmatprep.subr.bf16.mxu0 %v577
    %1277 = vmatpush1.bf16.msra.mxu0 %v576
    %1278 = vmatprep.subr.bf16.mxu0 0
    %1279 = vmatpush1.bf16.msra.mxu0 0
    %1280 = vmatprep.subr.bf16.mxu0 0
    %1281 = vmatpush1.bf16.msra.mxu0 0
    %1282 = vmatprep.subr.bf16.mxu0 0
    %1283 = vmatpush1.bf16.msra.mxu0 0
    %1284 = vmatprep.subr.bf16.mxu0 0
    %1285 = vmatpush1.bf16.msra.mxu0 0
    %1286 = vmatprep.subr.bf16.mxu0 0
    %1287 = vmatpush1.bf16.msra.mxu0 0
    %1288 = vmatprep.subr.bf16.mxu0 0
    %1289 = vmatpush1.bf16.msra.mxu0 0
    %1290 = vmatprep.subr.bf16.mxu0 0
    %1291 = vmatpush1.bf16.msra.mxu0 0
    %1292 = vmatprep.subr.bf16.mxu0 0
    %1293 = vmatpush1.bf16.msra.mxu0 0
    %1294 = vmatprep.subr.bf16.mxu0 0
    %1295 = vmatpush1.bf16.msra.mxu0 0
    %1296 = vmatprep.subr.bf16.mxu0 0
    %1297 = vmatpush1.bf16.msra.mxu0 0
    %1298 = vmatprep.subr.bf16.mxu0 0
    %1299 = vmatpush1.bf16.msra.mxu0 0
    %1300 = vmatprep.subr.bf16.mxu0 0
    %1301 = vmatpush1.bf16.msra.mxu0 0
    %1302 = vmatprep.subr.bf16.mxu0 0
    %1303 = vmatpush1.bf16.msra.mxu0 0
    %1304 = vmatprep.subr.bf16.mxu0 0
    %1305 = vmatpush1.bf16.msra.mxu0 0
    %1306 = vmatprep.mubr.bf16.mxu0 0
    %1307 = vmatmul.mubr.bf16.gmra.mrb[0].mxu0 %v1216
    %v1308 = vpop.f32.mrb[0].mxu0
    %v1309 = vadd.f32 0.0, %v1308
    %v1310 = vpop.f32.mrb[0].mxu0
    %v1311 = vadd.f32 0.0, %v1310
    %v1312 = vpop.f32.mrb[0].mxu0
    %v1313 = vadd.f32 0.0, %v1312
    %v1314 = vpop.f32.mrb[0].mxu0
    %v1315 = vadd.f32 0.0, %v1314
    %1316 = vmatprep.mubr.bf16.mxu0 0
    %1317 = vmatmul.mubr.bf16.gmra.mrb[0].mxu0 %v1219
    %v1318 = vpop.f32.mrb[0].mxu0
    %v1319 = vadd.f32 0.0, %v1318
    %v1320 = vpop.f32.mrb[0].mxu0
    %v1321 = vadd.f32 0.0, %v1320
    %v1322 = vpop.f32.mrb[0].mxu0
    %v1323 = vadd.f32 0.0, %v1322
    %v1324 = vpop.f32.mrb[0].mxu0
    %v1325 = vadd.f32 0.0, %v1324
    %1326 = vdwg.mxu0
    %v1331 = vunpack.c.l.b16 %v1132
    %v1332 = vunpack.c.h.b16 %v1132
    %v1333 = vunpack.c.l.b16 %v1133
    %v1334 = vunpack.c.h.b16 %v1133
    %v1335 = vunpack.c.l.b16 %v1134
    %v1336 = vunpack.c.h.b16 %v1134
    %v1337 = vunpack.c.l.b16 %v1135
    %v1338 = vunpack.c.h.b16 %v1135
    %v1339 = vpack.c.b16 %v1333, %v1331
    %v1340 = vpack.c.b16 %v1334, %v1332
    %v1341 = vpack.c.b16 %v1337, %v1335
    %v1342 = vpack.c.b16 %v1338, %v1336
    %1347 = vmatprep.subr.bf16.mxu0 %v1137
    %1348 = vmatpush1.bf16.msra.mxu0 %v1136
    %1349 = vmatprep.subr.bf16.mxu0 %v1141
    %1350 = vmatpush1.bf16.msra.mxu0 %v1140
    %1351 = vmatprep.subr.bf16.mxu0 %v1145
    %1352 = vmatpush1.bf16.msra.mxu0 %v1144
    %1353 = vmatprep.subr.bf16.mxu0 %v1149
    %1354 = vmatpush1.bf16.msra.mxu0 %v1148
    %1355 = vmatprep.subr.bf16.mxu0 %v1153
    %1356 = vmatpush1.bf16.msra.mxu0 %v1152
    %1357 = vmatprep.subr.bf16.mxu0 %v1157
    %1358 = vmatpush1.bf16.msra.mxu0 %v1156
    %1359 = vmatprep.subr.bf16.mxu0 %v1161
    %1360 = vmatpush1.bf16.msra.mxu0 %v1160
    %1361 = vmatprep.subr.bf16.mxu0 %v1165
    %1362 = vmatpush1.bf16.msra.mxu0 %v1164
    %1363 = vmatprep.subr.bf16.mxu0 %v1169
    %1364 = vmatpush1.bf16.msra.mxu0 %v1168
    %1365 = vmatprep.subr.bf16.mxu0 %v1173
    %1366 = vmatpush1.bf16.msra.mxu0 %v1172
    %1367 = vmatprep.subr.bf16.mxu0 %v1177
    %1368 = vmatpush1.bf16.msra.mxu0 %v1176
    %1369 = vmatprep.subr.bf16.mxu0 %v1181
    %1370 = vmatpush1.bf16.msra.mxu0 %v1180
    %1371 = vmatprep.subr.bf16.mxu0 %v1185
    %1372 = vmatpush1.bf16.msra.mxu0 %v1184
    %1373 = vmatprep.subr.bf16.mxu0 %v1189
    %1374 = vmatpush1.bf16.msra.mxu0 %v1188
    %1375 = vmatprep.subr.bf16.mxu0 %v1193
    %1376 = vmatpush1.bf16.msra.mxu0 %v1192
    %1377 = vmatprep.subr.bf16.mxu0 %v1197
    %1378 = vmatpush1.bf16.msra.mxu0 %v1196
    %1379 = vmatprep.mubr.bf16.mxu0 %v1340
    %1380 = vmatmul.mubr.bf16.gmra.mrb[0].mxu0 %v1339
    %v1381 = vpop.f32.mrb[0].mxu0
    %v1382 = vadd.f32 %v1256, %v1381
    %v1383 = vpop.f32.mrb[0].mxu0
    %v1384 = vadd.f32 %v1258, %v1383
    %v1385 = vpop.f32.mrb[0].mxu0
    %v1386 = vadd.f32 %v1260, %v1385
    %v1387 = vpop.f32.mrb[0].mxu0
    %v1388 = vadd.f32 %v1262, %v1387
    %1389 = vmatprep.mubr.bf16.mxu0 %v1342
    %1390 = vmatmul.mubr.bf16.gmra.mrb[0].mxu0 %v1341
    %v1391 = vpop.f32.mrb[0].mxu0
    %v1392 = vadd.f32 %v1266, %v1391
    %v1393 = vpop.f32.mrb[0].mxu0
    %v1394 = vadd.f32 %v1268, %v1393
    %v1395 = vpop.f32.mrb[0].mxu0
    %v1396 = vadd.f32 %v1270, %v1395
    %v1397 = vpop.f32.mrb[0].mxu0
    %v1398 = vadd.f32 %v1272, %v1397
    %1399 = vdwg.mxu0
    %1400 = vmatprep.subr.bf16.mxu0 %v1139
    %1401 = vmatpush1.bf16.msra.mxu0 %v1138
    %1402 = vmatprep.subr.bf16.mxu0 %v1143
    %1403 = vmatpush1.bf16.msra.mxu0 %v1142
    %1404 = vmatprep.subr.bf16.mxu0 %v1147
    %1405 = vmatpush1.bf16.msra.mxu0 %v1146
    %1406 = vmatprep.subr.bf16.mxu0 %v1151
    %1407 = vmatpush1.bf16.msra.mxu0 %v1150
    %1408 = vmatprep.subr.bf16.mxu0 %v1155
    %1409 = vmatpush1.bf16.msra.mxu0 %v1154
    %1410 = vmatprep.subr.bf16.mxu0 %v1159
    %1411 = vmatpush1.bf16.msra.mxu0 %v1158
    %1412 = vmatprep.subr.bf16.mxu0 %v1163
    %1413 = vmatpush1.bf16.msra.mxu0 %v1162
    %1414 = vmatprep.subr.bf16.mxu0 %v1167
    %1415 = vmatpush1.bf16.msra.mxu0 %v1166
    %1416 = vmatprep.subr.bf16.mxu0 %v1171
    %1417 = vmatpush1.bf16.msra.mxu0 %v1170
    %1418 = vmatprep.subr.bf16.mxu0 %v1175
    %1419 = vmatpush1.bf16.msra.mxu0 %v1174
    %1420 = vmatprep.subr.bf16.mxu0 %v1179
    %1421 = vmatpush1.bf16.msra.mxu0 %v1178
    %1422 = vmatprep.subr.bf16.mxu0 %v1183
    %1423 = vmatpush1.bf16.msra.mxu0 %v1182
    %1424 = vmatprep.subr.bf16.mxu0 %v1187
    %1425 = vmatpush1.bf16.msra.mxu0 %v1186
    %1426 = vmatprep.subr.bf16.mxu0 %v1191
    %1427 = vmatpush1.bf16.msra.mxu0 %v1190
    %1428 = vmatprep.subr.bf16.mxu0 %v1195
    %1429 = vmatpush1.bf16.msra.mxu0 %v1194
    %1430 = vmatprep.subr.bf16.mxu0 %v1199
    %1431 = vmatpush1.bf16.msra.mxu0 %v1198
    %1432 = vmatprep.mubr.bf16.mxu0 %v1340
    %1433 = vmatmul.mubr.bf16.gmra.mrb[0].mxu0 %v1339
    %v1434 = vpop.f32.mrb[0].mxu0
    %v1435 = vadd.f32 %v1309, %v1434
    %v1436 = vpop.f32.mrb[0].mxu0
    %v1437 = vadd.f32 %v1311, %v1436
    %v1438 = vpop.f32.mrb[0].mxu0
    %v1439 = vadd.f32 %v1313, %v1438
    %v1440 = vpop.f32.mrb[0].mxu0
    %v1441 = vadd.f32 %v1315, %v1440
    %1442 = vmatprep.mubr.bf16.mxu0 %v1342
    %1443 = vmatmul.mubr.bf16.gmra.mrb[0].mxu0 %v1341
    %v1444 = vpop.f32.mrb[0].mxu0
    %v1445 = vadd.f32 %v1319, %v1444
    %v1446 = vpop.f32.mrb[0].mxu0
    %v1447 = vadd.f32 %v1321, %v1446
    %v1448 = vpop.f32.mrb[0].mxu0
    %v1449 = vadd.f32 %v1323, %v1448
    %v1450 = vpop.f32.mrb[0].mxu0
    %v1451 = vadd.f32 %v1325, %v1450
    %1452 = vdwg.mxu0
    %v1453 = vmax.f32 %v1382, 0.0
    %v1454 = vmax.f32 %v1384, 0.0
    %v1455 = vmax.f32 %v1435, 0.0
    %v1456 = vmax.f32 %v1437, 0.0
    %v1457 = vmax.f32 %v1386, 0.0
    %v1458 = vmax.f32 %v1388, 0.0
    %v1459 = vmax.f32 %v1439, 0.0
    %v1460 = vmax.f32 %v1441, 0.0
    %v1461 = vmax.f32 %v1392, 0.0
    %v1462 = vmax.f32 %v1394, 0.0
    %v1463 = vmax.f32 %v1445, 0.0
    %v1464 = vmax.f32 %v1447, 0.0
    %v1465 = vmax.f32 %v1396, 0.0
    %v1466 = vmax.f32 %v1398, 0.0
    %v1467 = vmax.f32 %v1449, 0.0
    %v1468 = vmax.f32 %v1451, 0.0
    %v1469 = vpack.c.bf16 %v1457, %v1453
    %v1470 = vpack.c.bf16 %v1458, %v1454
    %v1471 = vpack.c.bf16 %v1459, %v1455
    %v1472 = vpack.c.bf16 %v1460, %v1456
    %v1473 = vpack.c.bf16 %v1465, %v1461
    %v1474 = vpack.c.bf16 %v1466, %v1462
    %v1475 = vpack.c.bf16 %v1467, %v1463
    %v1476 = vpack.c.bf16 %v1468, %v1464
    %1485 = vrot.lane.b32.xlu0 %v1469, 17
    %v1486 = vpop.permute.xlu0 %1485
    %1487 = vrot.lane.b32.xlu0 %v1473, 17
    %v1488 = vpop.permute.xlu0 %1487
    %1489 = vrot.lane.b32.xlu0 %v1470, 17
    %v1490 = vpop.permute.xlu0 %1489
    %1491 = vrot.lane.b32.xlu0 %v1474, 17
    %v1492 = vpop.permute.xlu0 %1491
    %1493 = vrot.lane.b32.xlu0 %v1471, 17
    %v1494 = vpop.permute.xlu0 %1493
    %1495 = vrot.lane.b32.xlu0 %v1475, 17
    %v1496 = vpop.permute.xlu0 %1495
    %1497 = vrot.lane.b32.xlu0 %v1472, 17
    %v1498 = vpop.permute.xlu0 %1497
    %1499 = vrot.lane.b32.xlu0 %v1476, 17
    %v1500 = vpop.permute.xlu0 %1499
    %v1501 = vsel %vm604, %v1494, %v1498
    %v1502 = vsel %vm604, %v1496, %v1500
    %v1503 = vsel %vm604, %v1490, %v1494
    %v1504 = vsel %vm604, %v1492, %v1496
    %v1505 = vsel %vm604, %v1486, %v1490
    %v1506 = vsel %vm604, %v1488, %v1492
    %v1507 = vsel %vm604, %v1498, %v1486
    %v1508 = vsel %vm604, %v1500, %v1488
    %v1517 = vmul.bf16 %v1507, %v627
    %v1518 = vmul.bf16 %v1505, %v634
    %v1519 = vmul.bf16 %v1503, %v641
    %v1520 = vmul.bf16 %v1501, %v648
    %v1521 = vmul.bf16 %v1508, %v627
    %v1522 = vmul.bf16 %v1506, %v634
    %v1523 = vmul.bf16 %v1504, %v641
    %v1524 = vmul.bf16 %v1502, %v648
    %1525 = vst [vmem:[#allocation2] sm:$0xff] %v1517
    %1526 = vst [vmem:[#allocation2 + $0x8] sm:$0xff] %v1518
    %1527 = vst [vmem:[#allocation2 + $0x10] sm:$0xff] %v1519
    %1528 = vst [vmem:[#allocation2 + $0x18] sm:$0xff] %v1520
    %1529 = vst [vmem:[#allocation2 + $0x20] sm:$0xff] %v1521
    %1530 = vst [vmem:[#allocation2 + $0x28] sm:$0xff] %v1522
    %1531 = vst [vmem:[#allocation2 + $0x30] sm:$0xff] %v1523
    %1532 = vst [vmem:[#allocation2 + $0x38] sm:$0xff] %v1524
    %1533 = vrot.lane.b32.xlu0 %v1469, 16
    %v1534 = vpop.permute.xlu0 %1533
    %1535 = vrot.lane.b32.xlu0 %v1473, 16
    %v1536 = vpop.permute.xlu0 %1535
    %1537 = vrot.lane.b32.xlu0 %v1470, 16
    %v1538 = vpop.permute.xlu0 %1537
    %1539 = vrot.lane.b32.xlu0 %v1474, 16
    %v1540 = vpop.permute.xlu0 %1539
    %1541 = vrot.lane.b32.xlu0 %v1471, 16
    %v1542 = vpop.permute.xlu0 %1541
    %1543 = vrot.lane.b32.xlu0 %v1475, 16
    %v1544 = vpop.permute.xlu0 %1543
    %1545 = vrot.lane.b32.xlu0 %v1472, 16
    %v1546 = vpop.permute.xlu0 %1545
    %1547 = vrot.lane.b32.xlu0 %v1476, 16
    %v1548 = vpop.permute.xlu0 %1547
    %v1549 = vsel %vm681, %v1542, %v1546
    %v1550 = vsel %vm681, %v1544, %v1548
    %v1551 = vsel %vm681, %v1538, %v1542
    %v1552 = vsel %vm681, %v1540, %v1544
    %v1553 = vsel %vm681, %v1534, %v1538
    %v1554 = vsel %vm681, %v1536, %v1540
    %v1555 = vsel %vm681, %v1546, %v1534
    %v1556 = vsel %vm681, %v1548, %v1536
    %v1565 = vmul.bf16 %v1555, %v704
    %v1566 = vmul.bf16 %v1553, %v711
    %v1567 = vmul.bf16 %v1551, %v718
    %v1568 = vmul.bf16 %v1549, %v725
    %v1569 = vmul.bf16 %v1556, %v704
    %v1570 = vmul.bf16 %v1554, %v711
    %v1571 = vmul.bf16 %v1552, %v718
    %v1572 = vmul.bf16 %v1550, %v725
    %1573 = vst [vmem:[#allocation2 + $0x40] sm:$0xff] %v1565
    %1574 = vst [vmem:[#allocation2 + $0x48] sm:$0xff] %v1566
    %1575 = vst [vmem:[#allocation2 + $0x50] sm:$0xff] %v1567
    %1576 = vst [vmem:[#allocation2 + $0x58] sm:$0xff] %v1568
    %1577 = vst [vmem:[#allocation2 + $0x60] sm:$0xff] %v1569
    %1578 = vst [vmem:[#allocation2 + $0x68] sm:$0xff] %v1570
    %1579 = vst [vmem:[#allocation2 + $0x70] sm:$0xff] %v1571
    %1580 = vst [vmem:[#allocation2 + $0x78] sm:$0xff] %v1572
    %1581 = vrot.lane.b32.xlu0 %v1469, 15
    %v1582 = vpop.permute.xlu0 %1581
    %1583 = vrot.lane.b32.xlu0 %v1473, 15
    %v1584 = vpop.permute.xlu0 %1583
    %1585 = vrot.lane.b32.xlu0 %v1470, 15
    %v1586 = vpop.permute.xlu0 %1585
    %1587 = vrot.lane.b32.xlu0 %v1474, 15
    %v1588 = vpop.permute.xlu0 %1587
    %1589 = vrot.lane.b32.xlu0 %v1471, 15
    %v1590 = vpop.permute.xlu0 %1589
    %1591 = vrot.lane.b32.xlu0 %v1475, 15
    %v1592 = vpop.permute.xlu0 %1591
    %1593 = vrot.lane.b32.xlu0 %v1472, 15
    %v1594 = vpop.permute.xlu0 %1593
    %1595 = vrot.lane.b32.xlu0 %v1476, 15
    %v1596 = vpop.permute.xlu0 %1595
    %v1597 = vsel %vm758, %v1590, %v1594
    %v1598 = vsel %vm758, %v1592, %v1596
    %v1599 = vsel %vm758, %v1586, %v1590
    %v1600 = vsel %vm758, %v1588, %v1592
    %v1601 = vsel %vm758, %v1582, %v1586
    %v1602 = vsel %vm758, %v1584, %v1588
    %v1603 = vsel %vm758, %v1594, %v1582
    %v1604 = vsel %vm758, %v1596, %v1584
    %v1613 = vmul.bf16 %v1603, %v778
    %v1614 = vmul.bf16 %v1601, %v782
    %v1615 = vmul.bf16 %v1599, %v786
    %v1616 = vmul.bf16 %v1597, %v790
    %v1617 = vmul.bf16 %v1604, %v778
    %v1618 = vmul.bf16 %v1602, %v782
    %v1619 = vmul.bf16 %v1600, %v786
    %v1620 = vmul.bf16 %v1598, %v790
    %1621 = vst [vmem:[#allocation2 + $0x80] sm:$0xff] %v1613
    %1622 = vst [vmem:[#allocation2 + $0x88] sm:$0xff] %v1614
    %1623 = vst [vmem:[#allocation2 + $0x90] sm:$0xff] %v1615
    %1624 = vst [vmem:[#allocation2 + $0x98] sm:$0xff] %v1616
    %1625 = vst [vmem:[#allocation2 + $0xa0] sm:$0xff] %v1617
    %1626 = vst [vmem:[#allocation2 + $0xa8] sm:$0xff] %v1618
    %1627 = vst [vmem:[#allocation2 + $0xb0] sm:$0xff] %v1619
    %1628 = vst [vmem:[#allocation2 + $0xb8] sm:$0xff] %v1620
    %1629 = vrot.lane.b32.xlu0 %v1469, 1
    %v1630 = vpop.permute.xlu0 %1629
    %1631 = vrot.lane.b32.xlu0 %v1473, 1
    %v1632 = vpop.permute.xlu0 %1631
    %1633 = vrot.lane.b32.xlu0 %v1470, 1
    %v1634 = vpop.permute.xlu0 %1633
    %1635 = vrot.lane.b32.xlu0 %v1474, 1
    %v1636 = vpop.permute.xlu0 %1635
    %1637 = vrot.lane.b32.xlu0 %v1471, 1
    %v1638 = vpop.permute.xlu0 %1637
    %1639 = vrot.lane.b32.xlu0 %v1475, 1
    %v1640 = vpop.permute.xlu0 %1639
    %1641 = vrot.lane.b32.xlu0 %v1472, 1
    %v1642 = vpop.permute.xlu0 %1641
    %1643 = vrot.lane.b32.xlu0 %v1476, 1
    %v1644 = vpop.permute.xlu0 %1643
    %v1645 = vsel %vm823, %v1638, %v1642
    %v1646 = vsel %vm823, %v1640, %v1644
    %v1647 = vsel %vm823, %v1634, %v1638
    %v1648 = vsel %vm823, %v1636, %v1640
    %v1649 = vsel %vm823, %v1630, %v1634
    %v1650 = vsel %vm823, %v1632, %v1636
    %v1651 = vsel %vm823, %v1642, %v1630
    %v1652 = vsel %vm823, %v1644, %v1632
    %v1661 = vmul.bf16 %v1651, %v843
    %v1662 = vmul.bf16 %v1649, %v847
    %v1663 = vmul.bf16 %v1647, %v851
    %v1664 = vmul.bf16 %v1645, %v855
    %v1665 = vmul.bf16 %v1652, %v843
    %v1666 = vmul.bf16 %v1650, %v847
    %v1667 = vmul.bf16 %v1648, %v851
    %v1668 = vmul.bf16 %v1646, %v855
    %1669 = vst [vmem:[#allocation2 + $0xc0] sm:$0xff] %v1661
    %1670 = vst [vmem:[#allocation2 + $0xc8] sm:$0xff] %v1662
    %1671 = vst [vmem:[#allocation2 + $0xd0] sm:$0xff] %v1663
    %1672 = vst [vmem:[#allocation2 + $0xd8] sm:$0xff] %v1664
    %1673 = vst [vmem:[#allocation2 + $0xe0] sm:$0xff] %v1665
    %1674 = vst [vmem:[#allocation2 + $0xe8] sm:$0xff] %v1666
    %1675 = vst [vmem:[#allocation2 + $0xf0] sm:$0xff] %v1667
    %1676 = vst [vmem:[#allocation2 + $0xf8] sm:$0xff] %v1668
    %1677 = vrot.lane.b32.xlu0 %v1469, 127
    %v1678 = vpop.permute.xlu0 %1677
    %1679 = vrot.lane.b32.xlu0 %v1473, 127
    %v1680 = vpop.permute.xlu0 %1679
    %1681 = vrot.lane.b32.xlu0 %v1470, 127
    %v1682 = vpop.permute.xlu0 %1681
    %1683 = vrot.lane.b32.xlu0 %v1474, 127
    %v1684 = vpop.permute.xlu0 %1683
    %1685 = vrot.lane.b32.xlu0 %v1471, 127
    %v1686 = vpop.permute.xlu0 %1685
    %1687 = vrot.lane.b32.xlu0 %v1475, 127
    %v1688 = vpop.permute.xlu0 %1687
    %1689 = vrot.lane.b32.xlu0 %v1472, 127
    %v1690 = vpop.permute.xlu0 %1689
    %1691 = vrot.lane.b32.xlu0 %v1476, 127
    %v1692 = vpop.permute.xlu0 %1691
    %v1693 = vsel %vm888, %v1686, %v1690
    %v1694 = vsel %vm888, %v1688, %v1692
    %v1695 = vsel %vm888, %v1682, %v1686
    %v1696 = vsel %vm888, %v1684, %v1688
    %v1697 = vsel %vm888, %v1678, %v1682
    %v1698 = vsel %vm888, %v1680, %v1684
    %v1699 = vsel %vm888, %v1690, %v1678
    %v1700 = vsel %vm888, %v1692, %v1680
    %v1709 = vmul.bf16 %v1697, %v908
    %v1710 = vmul.bf16 %v1695, %v912
    %v1711 = vmul.bf16 %v1693, %v916
    %v1712 = vmul.bf16 %v1699, %v920
    %v1713 = vmul.bf16 %v1698, %v908
    %v1714 = vmul.bf16 %v1696, %v912
    %v1715 = vmul.bf16 %v1694, %v916
    %v1716 = vmul.bf16 %v1700, %v920
    %1717 = vst [vmem:[#allocation2 + $0x100] sm:$0xff] %v1709
    %1718 = vst [vmem:[#allocation2 + $0x108] sm:$0xff] %v1710
    %1719 = vst [vmem:[#allocation2 + $0x110] sm:$0xff] %v1711
    %1720 = vst [vmem:[#allocation2 + $0x118] sm:$0xff] %v1712
    %1721 = vst [vmem:[#allocation2 + $0x120] sm:$0xff] %v1713
    %1722 = vst [vmem:[#allocation2 + $0x128] sm:$0xff] %v1714
    %1723 = vst [vmem:[#allocation2 + $0x130] sm:$0xff] %v1715
    %1724 = vst [vmem:[#allocation2 + $0x138] sm:$0xff] %v1716
    %1725 = vrot.lane.b32.xlu0 %v1469, 113
    %v1726 = vpop.permute.xlu0 %1725
    %1727 = vrot.lane.b32.xlu0 %v1473, 113
    %v1728 = vpop.permute.xlu0 %1727
    %1729 = vrot.lane.b32.xlu0 %v1470, 113
    %v1730 = vpop.permute.xlu0 %1729
    %1731 = vrot.lane.b32.xlu0 %v1474, 113
    %v1732 = vpop.permute.xlu0 %1731
    %1733 = vrot.lane.b32.xlu0 %v1471, 113
    %v1734 = vpop.permute.xlu0 %1733
    %1735 = vrot.lane.b32.xlu0 %v1475, 113
    %v1736 = vpop.permute.xlu0 %1735
    %1737 = vrot.lane.b32.xlu0 %v1472, 113
    %v1738 = vpop.permute.xlu0 %1737
    %1739 = vrot.lane.b32.xlu0 %v1476, 113
    %v1740 = vpop.permute.xlu0 %1739
    %v1741 = vsel %vm953, %v1734, %v1738
    %v1742 = vsel %vm953, %v1736, %v1740
    %v1743 = vsel %vm953, %v1730, %v1734
    %v1744 = vsel %vm953, %v1732, %v1736
    %v1745 = vsel %vm953, %v1726, %v1730
    %v1746 = vsel %vm953, %v1728, %v1732
    %v1747 = vsel %vm953, %v1738, %v1726
    %v1748 = vsel %vm953, %v1740, %v1728
    %v1757 = vmul.bf16 %v1745, %v973
    %v1758 = vmul.bf16 %v1743, %v977
    %v1759 = vmul.bf16 %v1741, %v981
    %v1760 = vmul.bf16 %v1747, %v985
    %v1761 = vmul.bf16 %v1746, %v973
    %v1762 = vmul.bf16 %v1744, %v977
    %v1763 = vmul.bf16 %v1742, %v981
    %v1764 = vmul.bf16 %v1748, %v985
    %1765 = vst [vmem:[#allocation2 + $0x140] sm:$0xff] %v1757
    %1766 = vst [vmem:[#allocation2 + $0x148] sm:$0xff] %v1758
    %1767 = vst [vmem:[#allocation2 + $0x150] sm:$0xff] %v1759
    %1768 = vst [vmem:[#allocation2 + $0x158] sm:$0xff] %v1760
    %1769 = vst [vmem:[#allocation2 + $0x160] sm:$0xff] %v1761
    %1770 = vst [vmem:[#allocation2 + $0x168] sm:$0xff] %v1762
    %1771 = vst [vmem:[#allocation2 + $0x170] sm:$0xff] %v1763
    %1772 = vst [vmem:[#allocation2 + $0x178] sm:$0xff] %v1764
    %1773 = vrot.lane.b32.xlu0 %v1469, 112
    %v1774 = vpop.permute.xlu0 %1773
    %1775 = vrot.lane.b32.xlu0 %v1473, 112
    %v1776 = vpop.permute.xlu0 %1775
    %1777 = vrot.lane.b32.xlu0 %v1470, 112
    %v1778 = vpop.permute.xlu0 %1777
    %1779 = vrot.lane.b32.xlu0 %v1474, 112
    %v1780 = vpop.permute.xlu0 %1779
    %1781 = vrot.lane.b32.xlu0 %v1471, 112
    %v1782 = vpop.permute.xlu0 %1781
    %1783 = vrot.lane.b32.xlu0 %v1475, 112
    %v1784 = vpop.permute.xlu0 %1783
    %1785 = vrot.lane.b32.xlu0 %v1472, 112
    %v1786 = vpop.permute.xlu0 %1785
    %1787 = vrot.lane.b32.xlu0 %v1476, 112
    %v1788 = vpop.permute.xlu0 %1787
    %v1789 = vsel %vm1018, %v1782, %v1786
    %v1790 = vsel %vm1018, %v1784, %v1788
    %v1791 = vsel %vm1018, %v1778, %v1782
    %v1792 = vsel %vm1018, %v1780, %v1784
    %v1793 = vsel %vm1018, %v1774, %v1778
    %v1794 = vsel %vm1018, %v1776, %v1780
    %v1795 = vsel %vm1018, %v1786, %v1774
    %v1796 = vsel %vm1018, %v1788, %v1776
    %v1805 = vmul.bf16 %v1793, %v1038
    %v1806 = vmul.bf16 %v1791, %v1042
    %v1807 = vmul.bf16 %v1789, %v1046
    %v1808 = vmul.bf16 %v1795, %v1050
    %v1809 = vmul.bf16 %v1794, %v1038
    %v1810 = vmul.bf16 %v1792, %v1042
    %v1811 = vmul.bf16 %v1790, %v1046
    %v1812 = vmul.bf16 %v1796, %v1050
    %1813 = vst [vmem:[#allocation2 + $0x180] sm:$0xff] %v1805
    %1814 = vst [vmem:[#allocation2 + $0x188] sm:$0xff] %v1806
    %1815 = vst [vmem:[#allocation2 + $0x190] sm:$0xff] %v1807
    %1816 = vst [vmem:[#allocation2 + $0x198] sm:$0xff] %v1808
    %1817 = vst [vmem:[#allocation2 + $0x1a0] sm:$0xff] %v1809
    %1818 = vst [vmem:[#allocation2 + $0x1a8] sm:$0xff] %v1810
    %1819 = vst [vmem:[#allocation2 + $0x1b0] sm:$0xff] %v1811
    %1820 = vst [vmem:[#allocation2 + $0x1b8] sm:$0xff] %v1812
    %1821 = vrot.lane.b32.xlu0 %v1469, 111
    %v1822 = vpop.permute.xlu0 %1821
    %1823 = vrot.lane.b32.xlu0 %v1473, 111
    %v1824 = vpop.permute.xlu0 %1823
    %1825 = vrot.lane.b32.xlu0 %v1470, 111
    %v1826 = vpop.permute.xlu0 %1825
    %1827 = vrot.lane.b32.xlu0 %v1474, 111
    %v1828 = vpop.permute.xlu0 %1827
    %1829 = vrot.lane.b32.xlu0 %v1471, 111
    %v1830 = vpop.permute.xlu0 %1829
    %1831 = vrot.lane.b32.xlu0 %v1475, 111
    %v1832 = vpop.permute.xlu0 %1831
    %1833 = vrot.lane.b32.xlu0 %v1472, 111
    %v1834 = vpop.permute.xlu0 %1833
    %1835 = vrot.lane.b32.xlu0 %v1476, 111
    %v1836 = vpop.permute.xlu0 %1835
    %v1837 = vsel %vm1083, %v1830, %v1834
    %v1838 = vsel %vm1083, %v1832, %v1836
    %v1839 = vsel %vm1083, %v1826, %v1830
    %v1840 = vsel %vm1083, %v1828, %v1832
    %v1841 = vsel %vm1083, %v1822, %v1826
    %v1842 = vsel %vm1083, %v1824, %v1828
    %v1843 = vsel %vm1083, %v1834, %v1822
    %v1844 = vsel %vm1083, %v1836, %v1824
    %v1853 = vmul.bf16 %v1841, %v1103
    %v1854 = vmul.bf16 %v1839, %v1107
    %v1855 = vmul.bf16 %v1837, %v1111
    %v1856 = vmul.bf16 %v1843, %v1115
    %v1857 = vmul.bf16 %v1842, %v1103
    %v1858 = vmul.bf16 %v1840, %v1107
    %v1859 = vmul.bf16 %v1838, %v1111
    %v1860 = vmul.bf16 %v1844, %v1115
    %1861 = vst [vmem:[#allocation2 + $0x1c0] sm:$0xff] %v1853
    %1862 = vst [vmem:[#allocation2 + $0x1c8] sm:$0xff] %v1854
    %1863 = vst [vmem:[#allocation2 + $0x1d0] sm:$0xff] %v1855
    %1864 = vst [vmem:[#allocation2 + $0x1d8] sm:$0xff] %v1856
    %1865 = vst [vmem:[#allocation2 + $0x1e0] sm:$0xff] %v1857
    %1866 = vst [vmem:[#allocation2 + $0x1e8] sm:$0xff] %v1858
    %1867 = vst [vmem:[#allocation2 + $0x1f0] sm:$0xff] %v1859
    %1868 = vst [vmem:[#allocation2 + $0x1f8] sm:$0xff] %v1860
    %v1869 = vld [vmem:[%s7] sm:$0xff]
    %v1870 = vld [vmem:[%s7 + $0x8] sm:$0xff]
    %v1871 = vld [vmem:[%s7 + $0x10] sm:$0xff]
    %v1872 = vld [vmem:[%s7 + $0x18] sm:$0xff]
    %v1873 = vld [vmem:[#allocation2] sm:$0xff]
    %v1874 = vld [vmem:[#allocation2 + $0x8] sm:$0xff]
    %v1875 = vld [vmem:[#allocation2 + $0x10] sm:$0xff]
    %v1876 = vld [vmem:[#allocation2 + $0x18] sm:$0xff]
    %v1877 = vld [vmem:[#allocation2 + $0x20] sm:$0xff]
    %v1878 = vld [vmem:[#allocation2 + $0x28] sm:$0xff]
    %v1879 = vld [vmem:[#allocation2 + $0x30] sm:$0xff]
    %v1880 = vld [vmem:[#allocation2 + $0x38] sm:$0xff]
    %v1881 = vld [vmem:[#allocation2 + $0x40] sm:$0xff]
    %v1882 = vld [vmem:[#allocation2 + $0x48] sm:$0xff]
    %v1883 = vld [vmem:[#allocation2 + $0x50] sm:$0xff]
    %v1884 = vld [vmem:[#allocation2 + $0x58] sm:$0xff]
    %v1885 = vld [vmem:[#allocation2 + $0x60] sm:$0xff]
    %v1886 = vld [vmem:[#allocation2 + $0x68] sm:$0xff]
    %v1887 = vld [vmem:[#allocation2 + $0x70] sm:$0xff]
    %v1888 = vld [vmem:[#allocation2 + $0x78] sm:$0xff]
    %v1889 = vld [vmem:[#allocation2 + $0x80] sm:$0xff]
    %v1890 = vld [vmem:[#allocation2 + $0x88] sm:$0xff]
    %v1891 = vld [vmem:[#allocation2 + $0x90] sm:$0xff]
    %v1892 = vld [vmem:[#allocation2 + $0x98] sm:$0xff]
    %v1893 = vld [vmem:[#allocation2 + $0xa0] sm:$0xff]
    %v1894 = vld [vmem:[#allocation2 + $0xa8] sm:$0xff]
    %v1895 = vld [vmem:[#allocation2 + $0xb0] sm:$0xff]
    %v1896 = vld [vmem:[#allocation2 + $0xb8] sm:$0xff]
    %v1897 = vld [vmem:[#allocation2 + $0xc0] sm:$0xff]
    %v1898 = vld [vmem:[#allocation2 + $0xc8] sm:$0xff]
    %v1899 = vld [vmem:[#allocation2 + $0xd0] sm:$0xff]
    %v1900 = vld [vmem:[#allocation2 + $0xd8] sm:$0xff]
    %v1901 = vld [vmem:[#allocation2 + $0xe0] sm:$0xff]
    %v1902 = vld [vmem:[#allocation2 + $0xe8] sm:$0xff]
    %v1903 = vld [vmem:[#allocation2 + $0xf0] sm:$0xff]
    %v1904 = vld [vmem:[#allocation2 + $0xf8] sm:$0xff]
    %v1905 = vld [vmem:[#allocation2 + $0x100] sm:$0xff]
    %v1906 = vld [vmem:[#allocation2 + $0x108] sm:$0xff]
    %v1907 = vld [vmem:[#allocation2 + $0x110] sm:$0xff]
    %v1908 = vld [vmem:[#allocation2 + $0x118] sm:$0xff]
    %v1909 = vld [vmem:[#allocation2 + $0x120] sm:$0xff]
    %v1910 = vld [vmem:[#allocation2 + $0x128] sm:$0xff]
    %v1911 = vld [vmem:[#allocation2 + $0x130] sm:$0xff]
    %v1912 = vld [vmem:[#allocation2 + $0x138] sm:$0xff]
    %v1913 = vld [vmem:[#allocation2 + $0x140] sm:$0xff]
    %v1914 = vld [vmem:[#allocation2 + $0x148] sm:$0xff]
    %v1915 = vld [vmem:[#allocation2 + $0x150] sm:$0xff]
    %v1916 = vld [vmem:[#allocation2 + $0x158] sm:$0xff]
    %v1917 = vld [vmem:[#allocation2 + $0x160] sm:$0xff]
    %v1918 = vld [vmem:[#allocation2 + $0x168] sm:$0xff]
    %v1919 = vld [vmem:[#allocation2 + $0x170] sm:$0xff]
    %v1920 = vld [vmem:[#allocation2 + $0x178] sm:$0xff]
    %v1921 = vld [vmem:[#allocation2 + $0x180] sm:$0xff]
    %v1922 = vld [vmem:[#allocation2 + $0x188] sm:$0xff]
    %v1923 = vld [vmem:[#allocation2 + $0x190] sm:$0xff]
    %v1924 = vld [vmem:[#allocation2 + $0x198] sm:$0xff]
    %v1925 = vld [vmem:[#allocation2 + $0x1a0] sm:$0xff]
    %v1926 = vld [vmem:[#allocation2 + $0x1a8] sm:$0xff]
    %v1927 = vld [vmem:[#allocation2 + $0x1b0] sm:$0xff]
    %v1928 = vld [vmem:[#allocation2 + $0x1b8] sm:$0xff]
    %v1929 = vld [vmem:[#allocation2 + $0x1c0] sm:$0xff]
    %v1930 = vld [vmem:[#allocation2 + $0x1c8] sm:$0xff]
    %v1931 = vld [vmem:[#allocation2 + $0x1d0] sm:$0xff]
    %v1932 = vld [vmem:[#allocation2 + $0x1d8] sm:$0xff]
    %v1933 = vld [vmem:[#allocation2 + $0x1e0] sm:$0xff]
    %v1934 = vld [vmem:[#allocation2 + $0x1e8] sm:$0xff]
    %v1935 = vld [vmem:[#allocation2 + $0x1f0] sm:$0xff]
    %v1936 = vld [vmem:[#allocation2 + $0x1f8] sm:$0xff]
    %v1937 = vld [vmem:[#allocation11] sm:$0xf]
    %v1938 = vld [vmem:[#allocation11 + $0x4] sm:$0xf]
    %v1939 = vld [vmem:[#allocation11 + $0x8] sm:$0xf]
    %v1940 = vld [vmem:[#allocation11 + $0xc] sm:$0xf]
    %v1945 = vunpack.c.l.b16 %v1937
    %v1946 = vunpack.c.l.b16 %v1938
    %v1947 = vunpack.c.l.b16 %v1939
    %v1948 = vunpack.c.l.b16 %v1940
    %v1949 = vpack.c.b16 %v1946, %v1945
    %v1950 = vpack.c.b16 %v1948, %v1947
    %v1952 = vsel %vm1214, %v1949, 0
    %v1955 = vsel %vm1214, %v1950, 0
    %1957 = vmatprep.subr.bf16.mxu0 %v1470
    %1958 = vmatpush1.bf16.msra.mxu0 %v1469
    %1959 = vmatprep.subr.bf16.mxu0 %v1474
    %1960 = vmatpush1.bf16.msra.mxu0 %v1473
    %1961 = vmatprep.subr.bf16.mxu0 0
    %1962 = vmatpush1.bf16.msra.mxu0 0
    %1963 = vmatprep.subr.bf16.mxu0 0
    %1964 = vmatpush1.bf16.msra.mxu0 0
    %1965 = vmatprep.subr.bf16.mxu0 0
    %1966 = vmatpush1.bf16.msra.mxu0 0
    %1967 = vmatprep.subr.bf16.mxu0 0
    %1968 = vmatpush1.bf16.msra.mxu0 0
    %1969 = vmatprep.subr.bf16.mxu0 0
    %1970 = vmatpush1.bf16.msra.mxu0 0
    %1971 = vmatprep.subr.bf16.mxu0 0
    %1972 = vmatpush1.bf16.msra.mxu0 0
    %1973 = vmatprep.subr.bf16.mxu0 0
    %1974 = vmatpush1.bf16.msra.mxu0 0
    %1975 = vmatprep.subr.bf16.mxu0 0
    %1976 = vmatpush1.bf16.msra.mxu0 0
    %1977 = vmatprep.subr.bf16.mxu0 0
    %1978 = vmatpush1.bf16.msra.mxu0 0
    %1979 = vmatprep.subr.bf16.mxu0 0
    %1980 = vmatpush1.bf16.msra.mxu0 0
    %1981 = vmatprep.subr.bf16.mxu0 0
    %1982 = vmatpush1.bf16.msra.mxu0 0
    %1983 = vmatprep.subr.bf16.mxu0 0
    %1984 = vmatpush1.bf16.msra.mxu0 0
    %1985 = vmatprep.subr.bf16.mxu0 0
    %1986 = vmatpush1.bf16.msra.mxu0 0
    %1987 = vmatprep.subr.bf16.mxu0 0
    %1988 = vmatpush1.bf16.msra.mxu0 0
    %1989 = vmatprep.mubr.bf16.mxu0 0
    %1990 = vmatmul.mubr.bf16.gmra.mrb[0].mxu0 %v1952
    %v1991 = vpop.f32.mrb[0].mxu0
    %v1992 = vadd.f32 0.0, %v1991
    %v1993 = vpop.f32.mrb[0].mxu0
    %v1994 = vadd.f32 0.0, %v1993
    %v1995 = vpop.f32.mrb[0].mxu0
    %v1996 = vadd.f32 0.0, %v1995
    %v1997 = vpop.f32.mrb[0].mxu0
    %v1998 = vadd.f32 0.0, %v1997
    %1999 = vmatprep.mubr.bf16.mxu0 0
    %2000 = vmatmul.mubr.bf16.gmra.mrb[0].mxu0 %v1955
    %v2001 = vpop.f32.mrb[0].mxu0
    %v2002 = vadd.f32 0.0, %v2001
    %v2003 = vpop.f32.mrb[0].mxu0
    %v2004 = vadd.f32 0.0, %v2003
    %v2005 = vpop.f32.mrb[0].mxu0
    %v2006 = vadd.f32 0.0, %v2005
    %v2007 = vpop.f32.mrb[0].mxu0
    %v2008 = vadd.f32 0.0, %v2007
    %2009 = vdwg.mxu0
    %2010 = vmatprep.subr.bf16.mxu0 %v1472
    %2011 = vmatpush1.bf16.msra.mxu0 %v1471
    %2012 = vmatprep.subr.bf16.mxu0 %v1476
    %2013 = vmatpush1.bf16.msra.mxu0 %v1475
    %2014 = vmatprep.subr.bf16.mxu0 0
    %2015 = vmatpush1.bf16.msra.mxu0 0
    %2016 = vmatprep.subr.bf16.mxu0 0
    %2017 = vmatpush1.bf16.msra.mxu0 0
    %2018 = vmatprep.subr.bf16.mxu0 0
    %2019 = vmatpush1.bf16.msra.mxu0 0
    %2020 = vmatprep.subr.bf16.mxu0 0
    %2021 = vmatpush1.bf16.msra.mxu0 0
    %2022 = vmatprep.subr.bf16.mxu0 0
    %2023 = vmatpush1.bf16.msra.mxu0 0
    %2024 = vmatprep.subr.bf16.mxu0 0
    %2025 = vmatpush1.bf16.msra.mxu0 0
    %2026 = vmatprep.subr.bf16.mxu0 0
    %2027 = vmatpush1.bf16.msra.mxu0 0
    %2028 = vmatprep.subr.bf16.mxu0 0
    %2029 = vmatpush1.bf16.msra.mxu0 0
    %2030 = vmatprep.subr.bf16.mxu0 0
    %2031 = vmatpush1.bf16.msra.mxu0 0
    %2032 = vmatprep.subr.bf16.mxu0 0
    %2033 = vmatpush1.bf16.msra.mxu0 0
    %2034 = vmatprep.subr.bf16.mxu0 0
    %2035 = vmatpush1.bf16.msra.mxu0 0
    %2036 = vmatprep.subr.bf16.mxu0 0
    %2037 = vmatpush1.bf16.msra.mxu0 0
    %2038 = vmatprep.subr.bf16.mxu0 0
    %2039 = vmatpush1.bf16.msra.mxu0 0
    %2040 = vmatprep.subr.bf16.mxu0 0
    %2041 = vmatpush1.bf16.msra.mxu0 0
    %2042 = vmatprep.mubr.bf16.mxu0 0
    %2043 = vmatmul.mubr.bf16.gmra.mrb[0].mxu0 %v1952
    %v2044 = vpop.f32.mrb[0].mxu0
    %v2045 = vadd.f32 0.0, %v2044
    %v2046 = vpop.f32.mrb[0].mxu0
    %v2047 = vadd.f32 0.0, %v2046
    %v2048 = vpop.f32.mrb[0].mxu0
    %v2049 = vadd.f32 0.0, %v2048
    %v2050 = vpop.f32.mrb[0].mxu0
    %v2051 = vadd.f32 0.0, %v2050
    %2052 = vmatprep.mubr.bf16.mxu0 0
    %2053 = vmatmul.mubr.bf16.gmra.mrb[0].mxu0 %v1955
    %v2054 = vpop.f32.mrb[0].mxu0
    %v2055 = vadd.f32 0.0, %v2054
    %v2056 = vpop.f32.mrb[0].mxu0
    %v2057 = vadd.f32 0.0, %v2056
    %v2058 = vpop.f32.mrb[0].mxu0
    %v2059 = vadd.f32 0.0, %v2058
    %v2060 = vpop.f32.mrb[0].mxu0
    %v2061 = vadd.f32 0.0, %v2060
    %2062 = vdwg.mxu0
    %v2067 = vunpack.c.l.b16 %v1869
    %v2068 = vunpack.c.h.b16 %v1869
    %v2069 = vunpack.c.l.b16 %v1870
    %v2070 = vunpack.c.h.b16 %v1870
    %v2071 = vunpack.c.l.b16 %v1871
    %v2072 = vunpack.c.h.b16 %v1871
    %v2073 = vunpack.c.l.b16 %v1872
    %v2074 = vunpack.c.h.b16 %v1872
    %v2075 = vpack.c.b16 %v2069, %v2067
    %v2076 = vpack.c.b16 %v2070, %v2068
    %v2077 = vpack.c.b16 %v2073, %v2071
    %v2078 = vpack.c.b16 %v2074, %v2072
    %2083 = vmatprep.subr.bf16.mxu0 %v1874
    %2084 = vmatpush1.bf16.msra.mxu0 %v1873
    %2085 = vmatprep.subr.bf16.mxu0 %v1878
    %2086 = vmatpush1.bf16.msra.mxu0 %v1877
    %2087 = vmatprep.subr.bf16.mxu0 %v1882
    %2088 = vmatpush1.bf16.msra.mxu0 %v1881
    %2089 = vmatprep.subr.bf16.mxu0 %v1886
    %2090 = vmatpush1.bf16.msra.mxu0 %v1885
    %2091 = vmatprep.subr.bf16.mxu0 %v1890
    %2092 = vmatpush1.bf16.msra.mxu0 %v1889
    %2093 = vmatprep.subr.bf16.mxu0 %v1894
    %2094 = vmatpush1.bf16.msra.mxu0 %v1893
    %2095 = vmatprep.subr.bf16.mxu0 %v1898
    %2096 = vmatpush1.bf16.msra.mxu0 %v1897
    %2097 = vmatprep.subr.bf16.mxu0 %v1902
    %2098 = vmatpush1.bf16.msra.mxu0 %v1901
    %2099 = vmatprep.subr.bf16.mxu0 %v1906
    %2100 = vmatpush1.bf16.msra.mxu0 %v1905
    %2101 = vmatprep.subr.bf16.mxu0 %v1910
    %2102 = vmatpush1.bf16.msra.mxu0 %v1909
    %2103 = vmatprep.subr.bf16.mxu0 %v1914
    %2104 = vmatpush1.bf16.msra.mxu0 %v1913
    %2105 = vmatprep.subr.bf16.mxu0 %v1918
    %2106 = vmatpush1.bf16.msra.mxu0 %v1917
    %2107 = vmatprep.subr.bf16.mxu0 %v1922
    %2108 = vmatpush1.bf16.msra.mxu0 %v1921
    %2109 = vmatprep.subr.bf16.mxu0 %v1926
    %2110 = vmatpush1.bf16.msra.mxu0 %v1925
    %2111 = vmatprep.subr.bf16.mxu0 %v1930
    %2112 = vmatpush1.bf16.msra.mxu0 %v1929
    %2113 = vmatprep.subr.bf16.mxu0 %v1934
    %2114 = vmatpush1.bf16.msra.mxu0 %v1933
    %2115 = vmatprep.mubr.bf16.mxu0 %v2076
    %2116 = vmatmul.mubr.bf16.gmra.mrb[0].mxu0 %v2075
    %v2117 = vpop.f32.mrb[0].mxu0
    %v2118 = vadd.f32 %v1992, %v2117
    %v2119 = vpop.f32.mrb[0].mxu0
    %v2120 = vadd.f32 %v1994, %v2119
    %v2121 = vpop.f32.mrb[0].mxu0
    %v2122 = vadd.f32 %v1996, %v2121
    %v2123 = vpop.f32.mrb[0].mxu0
    %v2124 = vadd.f32 %v1998, %v2123
    %2125 = vmatprep.mubr.bf16.mxu0 %v2078
    %2126 = vmatmul.mubr.bf16.gmra.mrb[0].mxu0 %v2077
    %v2127 = vpop.f32.mrb[0].mxu0
    %v2128 = vadd.f32 %v2002, %v2127
    %v2129 = vpop.f32.mrb[0].mxu0
    %v2130 = vadd.f32 %v2004, %v2129
    %v2131 = vpop.f32.mrb[0].mxu0
    %v2132 = vadd.f32 %v2006, %v2131
    %v2133 = vpop.f32.mrb[0].mxu0
    %v2134 = vadd.f32 %v2008, %v2133
    %2135 = vdwg.mxu0
    %2136 = vmatprep.subr.bf16.mxu0 %v1876
    %2137 = vmatpush1.bf16.msra.mxu0 %v1875
    %2138 = vmatprep.subr.bf16.mxu0 %v1880
    %2139 = vmatpush1.bf16.msra.mxu0 %v1879
    %2140 = vmatprep.subr.bf16.mxu0 %v1884
    %2141 = vmatpush1.bf16.msra.mxu0 %v1883
    %2142 = vmatprep.subr.bf16.mxu0 %v1888
    %2143 = vmatpush1.bf16.msra.mxu0 %v1887
    %2144 = vmatprep.subr.bf16.mxu0 %v1892
    %2145 = vmatpush1.bf16.msra.mxu0 %v1891
    %2146 = vmatprep.subr.bf16.mxu0 %v1896
    %2147 = vmatpush1.bf16.msra.mxu0 %v1895
    %2148 = vmatprep.subr.bf16.mxu0 %v1900
    %2149 = vmatpush1.bf16.msra.mxu0 %v1899
    %2150 = vmatprep.subr.bf16.mxu0 %v1904
    %2151 = vmatpush1.bf16.msra.mxu0 %v1903
    %2152 = vmatprep.subr.bf16.mxu0 %v1908
    %2153 = vmatpush1.bf16.msra.mxu0 %v1907
    %2154 = vmatprep.subr.bf16.mxu0 %v1912
    %2155 = vmatpush1.bf16.msra.mxu0 %v1911
    %2156 = vmatprep.subr.bf16.mxu0 %v1916
    %2157 = vmatpush1.bf16.msra.mxu0 %v1915
    %2158 = vmatprep.subr.bf16.mxu0 %v1920
    %2159 = vmatpush1.bf16.msra.mxu0 %v1919
    %2160 = vmatprep.subr.bf16.mxu0 %v1924
    %2161 = vmatpush1.bf16.msra.mxu0 %v1923
    %2162 = vmatprep.subr.bf16.mxu0 %v1928
    %2163 = vmatpush1.bf16.msra.mxu0 %v1927
    %2164 = vmatprep.subr.bf16.mxu0 %v1932
    %2165 = vmatpush1.bf16.msra.mxu0 %v1931
    %2166 = vmatprep.subr.bf16.mxu0 %v1936
    %2167 = vmatpush1.bf16.msra.mxu0 %v1935
    %2168 = vmatprep.mubr.bf16.mxu0 %v2076
    %2169 = vmatmul.mubr.bf16.gmra.mrb[0].mxu0 %v2075
    %v2170 = vpop.f32.mrb[0].mxu0
    %v2171 = vadd.f32 %v2045, %v2170
    %v2172 = vpop.f32.mrb[0].mxu0
    %v2173 = vadd.f32 %v2047, %v2172
    %v2174 = vpop.f32.mrb[0].mxu0
    %v2175 = vadd.f32 %v2049, %v2174
    %v2176 = vpop.f32.mrb[0].mxu0
    %v2177 = vadd.f32 %v2051, %v2176
    %2178 = vmatprep.mubr.bf16.mxu0 %v2078
    %2179 = vmatmul.mubr.bf16.gmra.mrb[0].mxu0 %v2077
    %v2180 = vpop.f32.mrb[0].mxu0
    %v2181 = vadd.f32 %v2055, %v2180
    %v2182 = vpop.f32.mrb[0].mxu0
    %v2183 = vadd.f32 %v2057, %v2182
    %v2184 = vpop.f32.mrb[0].mxu0
    %v2185 = vadd.f32 %v2059, %v2184
    %v2186 = vpop.f32.mrb[0].mxu0
    %v2187 = vadd.f32 %v2061, %v2186
    %2188 = vdwg.mxu0
    %v2189 = vmul.f32 %v2118, %v538
    %v2190 = vmul.f32 %v2120, %v539
    %v2191 = vmul.f32 %v2171, %v540
    %v2192 = vmul.f32 %v2173, %v541
    %v2193 = vmul.f32 %v2122, %v542
    %v2194 = vmul.f32 %v2124, %v543
    %v2195 = vmul.f32 %v2175, %v544
    %v2196 = vmul.f32 %v2177, %v545
    %v2197 = vmul.f32 %v2128, %v546
    %v2198 = vmul.f32 %v2130, %v547
    %v2199 = vmul.f32 %v2181, %v548
    %v2200 = vmul.f32 %v2183, %v549
    %v2201 = vmul.f32 %v2132, %v550
    %v2202 = vmul.f32 %v2134, %v551
    %v2203 = vmul.f32 %v2185, %v552
    %v2204 = vmul.f32 %v2187, %v553
    %v2205 = vpack.c.bf16 %v2193, %v2189
    %v2206 = vpack.c.bf16 %v2194, %v2190
    %v2207 = vpack.c.bf16 %v2195, %v2191
    %v2208 = vpack.c.bf16 %v2196, %v2192
    %v2209 = vpack.c.bf16 %v2201, %v2197
    %v2210 = vpack.c.bf16 %v2202, %v2198
    %v2211 = vpack.c.bf16 %v2203, %v2199
    %v2212 = vpack.c.bf16 %v2204, %v2200
    %2221 = vrot.lane.b32.xlu0 %v2205, 17
    %v2222 = vpop.permute.xlu0 %2221
    %2223 = vrot.lane.b32.xlu0 %v2209, 17
    %v2224 = vpop.permute.xlu0 %2223
    %2225 = vrot.lane.b32.xlu0 %v2206, 17
    %v2226 = vpop.permute.xlu0 %2225
    %2227 = vrot.lane.b32.xlu0 %v2210, 17
    %v2228 = vpop.permute.xlu0 %2227
    %2229 = vrot.lane.b32.xlu0 %v2207, 17
    %v2230 = vpop.permute.xlu0 %2229
    %2231 = vrot.lane.b32.xlu0 %v2211, 17
    %v2232 = vpop.permute.xlu0 %2231
    %2233 = vrot.lane.b32.xlu0 %v2208, 17
    %v2234 = vpop.permute.xlu0 %2233
    %2235 = vrot.lane.b32.xlu0 %v2212, 17
    %v2236 = vpop.permute.xlu0 %2235
    %v2237 = vsel %vm604, %v2230, %v2234
    %v2238 = vsel %vm604, %v2232, %v2236
    %v2239 = vsel %vm604, %v2226, %v2230
    %v2240 = vsel %vm604, %v2228, %v2232
    %v2241 = vsel %vm604, %v2222, %v2226
    %v2242 = vsel %vm604, %v2224, %v2228
    %v2243 = vsel %vm604, %v2234, %v2222
    %v2244 = vsel %vm604, %v2236, %v2224
    %v2253 = vmul.bf16 %v2243, %v627
    %v2254 = vmul.bf16 %v2241, %v634
    %v2255 = vmul.bf16 %v2239, %v641
    %v2256 = vmul.bf16 %v2237, %v648
    %v2257 = vmul.bf16 %v2244, %v627
    %v2258 = vmul.bf16 %v2242, %v634
    %v2259 = vmul.bf16 %v2240, %v641
    %v2260 = vmul.bf16 %v2238, %v648
    %2261 = vst [vmem:[#allocation2] sm:$0xff] %v2253
    %2262 = vst [vmem:[#allocation2 + $0x8] sm:$0xff] %v2254
    %2263 = vst [vmem:[#allocation2 + $0x10] sm:$0xff] %v2255
    %2264 = vst [vmem:[#allocation2 + $0x18] sm:$0xff] %v2256
    %2265 = vst [vmem:[#allocation2 + $0x20] sm:$0xff] %v2257
    %2266 = vst [vmem:[#allocation2 + $0x28] sm:$0xff] %v2258
    %2267 = vst [vmem:[#allocation2 + $0x30] sm:$0xff] %v2259
    %2268 = vst [vmem:[#allocation2 + $0x38] sm:$0xff] %v2260
    %2269 = vrot.lane.b32.xlu0 %v2205, 16
    %v2270 = vpop.permute.xlu0 %2269
    %2271 = vrot.lane.b32.xlu0 %v2209, 16
    %v2272 = vpop.permute.xlu0 %2271
    %2273 = vrot.lane.b32.xlu0 %v2206, 16
    %v2274 = vpop.permute.xlu0 %2273
    %2275 = vrot.lane.b32.xlu0 %v2210, 16
    %v2276 = vpop.permute.xlu0 %2275
    %2277 = vrot.lane.b32.xlu0 %v2207, 16
    %v2278 = vpop.permute.xlu0 %2277
    %2279 = vrot.lane.b32.xlu0 %v2211, 16
    %v2280 = vpop.permute.xlu0 %2279
    %2281 = vrot.lane.b32.xlu0 %v2208, 16
    %v2282 = vpop.permute.xlu0 %2281
    %2283 = vrot.lane.b32.xlu0 %v2212, 16
    %v2284 = vpop.permute.xlu0 %2283
    %v2285 = vsel %vm681, %v2278, %v2282
    %v2286 = vsel %vm681, %v2280, %v2284
    %v2287 = vsel %vm681, %v2274, %v2278
    %v2288 = vsel %vm681, %v2276, %v2280
    %v2289 = vsel %vm681, %v2270, %v2274
    %v2290 = vsel %vm681, %v2272, %v2276
    %v2291 = vsel %vm681, %v2282, %v2270
    %v2292 = vsel %vm681, %v2284, %v2272
    %v2301 = vmul.bf16 %v2291, %v704
    %v2302 = vmul.bf16 %v2289, %v711
    %v2303 = vmul.bf16 %v2287, %v718
    %v2304 = vmul.bf16 %v2285, %v725
    %v2305 = vmul.bf16 %v2292, %v704
    %v2306 = vmul.bf16 %v2290, %v711
    %v2307 = vmul.bf16 %v2288, %v718
    %v2308 = vmul.bf16 %v2286, %v725
    %2309 = vst [vmem:[#allocation2 + $0x40] sm:$0xff] %v2301
    %2310 = vst [vmem:[#allocation2 + $0x48] sm:$0xff] %v2302
    %2311 = vst [vmem:[#allocation2 + $0x50] sm:$0xff] %v2303
    %2312 = vst [vmem:[#allocation2 + $0x58] sm:$0xff] %v2304
    %2313 = vst [vmem:[#allocation2 + $0x60] sm:$0xff] %v2305
    %2314 = vst [vmem:[#allocation2 + $0x68] sm:$0xff] %v2306
    %2315 = vst [vmem:[#allocation2 + $0x70] sm:$0xff] %v2307
    %2316 = vst [vmem:[#allocation2 + $0x78] sm:$0xff] %v2308
    %2317 = vrot.lane.b32.xlu0 %v2205, 15
    %v2318 = vpop.permute.xlu0 %2317
    %2319 = vrot.lane.b32.xlu0 %v2209, 15
    %v2320 = vpop.permute.xlu0 %2319
    %2321 = vrot.lane.b32.xlu0 %v2206, 15
    %v2322 = vpop.permute.xlu0 %2321
    %2323 = vrot.lane.b32.xlu0 %v2210, 15
    %v2324 = vpop.permute.xlu0 %2323
    %2325 = vrot.lane.b32.xlu0 %v2207, 15
    %v2326 = vpop.permute.xlu0 %2325
    %2327 = vrot.lane.b32.xlu0 %v2211, 15
    %v2328 = vpop.permute.xlu0 %2327
    %2329 = vrot.lane.b32.xlu0 %v2208, 15
    %v2330 = vpop.permute.xlu0 %2329
    %2331 = vrot.lane.b32.xlu0 %v2212, 15
    %v2332 = vpop.permute.xlu0 %2331
    %v2333 = vsel %vm758, %v2326, %v2330
    %v2334 = vsel %vm758, %v2328, %v2332
    %v2335 = vsel %vm758, %v2322, %v2326
    %v2336 = vsel %vm758, %v2324, %v2328
    %v2337 = vsel %vm758, %v2318, %v2322
    %v2338 = vsel %vm758, %v2320, %v2324
    %v2339 = vsel %vm758, %v2330, %v2318
    %v2340 = vsel %vm758, %v2332, %v2320
    %v2349 = vmul.bf16 %v2339, %v778
    %v2350 = vmul.bf16 %v2337, %v782
    %v2351 = vmul.bf16 %v2335, %v786
    %v2352 = vmul.bf16 %v2333, %v790
    %v2353 = vmul.bf16 %v2340, %v778
    %v2354 = vmul.bf16 %v2338, %v782
    %v2355 = vmul.bf16 %v2336, %v786
    %v2356 = vmul.bf16 %v2334, %v790
    %2357 = vst [vmem:[#allocation2 + $0x80] sm:$0xff] %v2349
    %2358 = vst [vmem:[#allocation2 + $0x88] sm:$0xff] %v2350
    %2359 = vst [vmem:[#allocation2 + $0x90] sm:$0xff] %v2351
    %2360 = vst [vmem:[#allocation2 + $0x98] sm:$0xff] %v2352
    %2361 = vst [vmem:[#allocation2 + $0xa0] sm:$0xff] %v2353
    %2362 = vst [vmem:[#allocation2 + $0xa8] sm:$0xff] %v2354
    %2363 = vst [vmem:[#allocation2 + $0xb0] sm:$0xff] %v2355
    %2364 = vst [vmem:[#allocation2 + $0xb8] sm:$0xff] %v2356
    %2365 = vrot.lane.b32.xlu0 %v2205, 1
    %v2366 = vpop.permute.xlu0 %2365
    %2367 = vrot.lane.b32.xlu0 %v2209, 1
    %v2368 = vpop.permute.xlu0 %2367
    %2369 = vrot.lane.b32.xlu0 %v2206, 1
    %v2370 = vpop.permute.xlu0 %2369
    %2371 = vrot.lane.b32.xlu0 %v2210, 1
    %v2372 = vpop.permute.xlu0 %2371
    %2373 = vrot.lane.b32.xlu0 %v2207, 1
    %v2374 = vpop.permute.xlu0 %2373
    %2375 = vrot.lane.b32.xlu0 %v2211, 1
    %v2376 = vpop.permute.xlu0 %2375
    %2377 = vrot.lane.b32.xlu0 %v2208, 1
    %v2378 = vpop.permute.xlu0 %2377
    %2379 = vrot.lane.b32.xlu0 %v2212, 1
    %v2380 = vpop.permute.xlu0 %2379
    %v2381 = vsel %vm823, %v2374, %v2378
    %v2382 = vsel %vm823, %v2376, %v2380
    %v2383 = vsel %vm823, %v2370, %v2374
    %v2384 = vsel %vm823, %v2372, %v2376
    %v2385 = vsel %vm823, %v2366, %v2370
    %v2386 = vsel %vm823, %v2368, %v2372
    %v2387 = vsel %vm823, %v2378, %v2366
    %v2388 = vsel %vm823, %v2380, %v2368
    %v2397 = vmul.bf16 %v2387, %v843
    %v2398 = vmul.bf16 %v2385, %v847
    %v2399 = vmul.bf16 %v2383, %v851
    %v2400 = vmul.bf16 %v2381, %v855
    %v2401 = vmul.bf16 %v2388, %v843
    %v2402 = vmul.bf16 %v2386, %v847
    %v2403 = vmul.bf16 %v2384, %v851
    %v2404 = vmul.bf16 %v2382, %v855
    %2405 = vst [vmem:[#allocation2 + $0xc0] sm:$0xff] %v2397
    %2406 = vst [vmem:[#allocation2 + $0xc8] sm:$0xff] %v2398
    %2407 = vst [vmem:[#allocation2 + $0xd0] sm:$0xff] %v2399
    %2408 = vst [vmem:[#allocation2 + $0xd8] sm:$0xff] %v2400
    %2409 = vst [vmem:[#allocation2 + $0xe0] sm:$0xff] %v2401
    %2410 = vst [vmem:[#allocation2 + $0xe8] sm:$0xff] %v2402
    %2411 = vst [vmem:[#allocation2 + $0xf0] sm:$0xff] %v2403
    %2412 = vst [vmem:[#allocation2 + $0xf8] sm:$0xff] %v2404
    %2413 = vrot.lane.b32.xlu0 %v2205, 127
    %v2414 = vpop.permute.xlu0 %2413
    %2415 = vrot.lane.b32.xlu0 %v2209, 127
    %v2416 = vpop.permute.xlu0 %2415
    %2417 = vrot.lane.b32.xlu0 %v2206, 127
    %v2418 = vpop.permute.xlu0 %2417
    %2419 = vrot.lane.b32.xlu0 %v2210, 127
    %v2420 = vpop.permute.xlu0 %2419
    %2421 = vrot.lane.b32.xlu0 %v2207, 127
    %v2422 = vpop.permute.xlu0 %2421
    %2423 = vrot.lane.b32.xlu0 %v2211, 127
    %v2424 = vpop.permute.xlu0 %2423
    %2425 = vrot.lane.b32.xlu0 %v2208, 127
    %v2426 = vpop.permute.xlu0 %2425
    %2427 = vrot.lane.b32.xlu0 %v2212, 127
    %v2428 = vpop.permute.xlu0 %2427
    %v2429 = vsel %vm888, %v2422, %v2426
    %v2430 = vsel %vm888, %v2424, %v2428
    %v2431 = vsel %vm888, %v2418, %v2422
    %v2432 = vsel %vm888, %v2420, %v2424
    %v2433 = vsel %vm888, %v2414, %v2418
    %v2434 = vsel %vm888, %v2416, %v2420
    %v2435 = vsel %vm888, %v2426, %v2414
    %v2436 = vsel %vm888, %v2428, %v2416
    %v2445 = vmul.bf16 %v2433, %v908
    %v2446 = vmul.bf16 %v2431, %v912
    %v2447 = vmul.bf16 %v2429, %v916
    %v2448 = vmul.bf16 %v2435, %v920
    %v2449 = vmul.bf16 %v2434, %v908
    %v2450 = vmul.bf16 %v2432, %v912
    %v2451 = vmul.bf16 %v2430, %v916
    %v2452 = vmul.bf16 %v2436, %v920
    %2453 = vst [vmem:[#allocation2 + $0x100] sm:$0xff] %v2445
    %2454 = vst [vmem:[#allocation2 + $0x108] sm:$0xff] %v2446
    %2455 = vst [vmem:[#allocation2 + $0x110] sm:$0xff] %v2447
    %2456 = vst [vmem:[#allocation2 + $0x118] sm:$0xff] %v2448
    %2457 = vst [vmem:[#allocation2 + $0x120] sm:$0xff] %v2449
    %2458 = vst [vmem:[#allocation2 + $0x128] sm:$0xff] %v2450
    %2459 = vst [vmem:[#allocation2 + $0x130] sm:$0xff] %v2451
    %2460 = vst [vmem:[#allocation2 + $0x138] sm:$0xff] %v2452
    %2461 = vrot.lane.b32.xlu0 %v2205, 113
    %v2462 = vpop.permute.xlu0 %2461
    %2463 = vrot.lane.b32.xlu0 %v2209, 113
    %v2464 = vpop.permute.xlu0 %2463
    %2465 = vrot.lane.b32.xlu0 %v2206, 113
    %v2466 = vpop.permute.xlu0 %2465
    %2467 = vrot.lane.b32.xlu0 %v2210, 113
    %v2468 = vpop.permute.xlu0 %2467
    %2469 = vrot.lane.b32.xlu0 %v2207, 113
    %v2470 = vpop.permute.xlu0 %2469
    %2471 = vrot.lane.b32.xlu0 %v2211, 113
    %v2472 = vpop.permute.xlu0 %2471
    %2473 = vrot.lane.b32.xlu0 %v2208, 113
    %v2474 = vpop.permute.xlu0 %2473
    %2475 = vrot.lane.b32.xlu0 %v2212, 113
    %v2476 = vpop.permute.xlu0 %2475
    %v2477 = vsel %vm953, %v2470, %v2474
    %v2478 = vsel %vm953, %v2472, %v2476
    %v2479 = vsel %vm953, %v2466, %v2470
    %v2480 = vsel %vm953, %v2468, %v2472
    %v2481 = vsel %vm953, %v2462, %v2466
    %v2482 = vsel %vm953, %v2464, %v2468
    %v2483 = vsel %vm953, %v2474, %v2462
    %v2484 = vsel %vm953, %v2476, %v2464
    %v2493 = vmul.bf16 %v2481, %v973
    %v2494 = vmul.bf16 %v2479, %v977
    %v2495 = vmul.bf16 %v2477, %v981
    %v2496 = vmul.bf16 %v2483, %v985
    %v2497 = vmul.bf16 %v2482, %v973
    %v2498 = vmul.bf16 %v2480, %v977
    %v2499 = vmul.bf16 %v2478, %v981
    %v2500 = vmul.bf16 %v2484, %v985
    %2501 = vst [vmem:[#allocation2 + $0x140] sm:$0xff] %v2493
    %2502 = vst [vmem:[#allocation2 + $0x148] sm:$0xff] %v2494
    %2503 = vst [vmem:[#allocation2 + $0x150] sm:$0xff] %v2495
    %2504 = vst [vmem:[#allocation2 + $0x158] sm:$0xff] %v2496
    %2505 = vst [vmem:[#allocation2 + $0x160] sm:$0xff] %v2497
    %2506 = vst [vmem:[#allocation2 + $0x168] sm:$0xff] %v2498
    %2507 = vst [vmem:[#allocation2 + $0x170] sm:$0xff] %v2499
    %2508 = vst [vmem:[#allocation2 + $0x178] sm:$0xff] %v2500
    %2509 = vrot.lane.b32.xlu0 %v2205, 112
    %v2510 = vpop.permute.xlu0 %2509
    %2511 = vrot.lane.b32.xlu0 %v2209, 112
    %v2512 = vpop.permute.xlu0 %2511
    %2513 = vrot.lane.b32.xlu0 %v2206, 112
    %v2514 = vpop.permute.xlu0 %2513
    %2515 = vrot.lane.b32.xlu0 %v2210, 112
    %v2516 = vpop.permute.xlu0 %2515
    %2517 = vrot.lane.b32.xlu0 %v2207, 112
    %v2518 = vpop.permute.xlu0 %2517
    %2519 = vrot.lane.b32.xlu0 %v2211, 112
    %v2520 = vpop.permute.xlu0 %2519
    %2521 = vrot.lane.b32.xlu0 %v2208, 112
    %v2522 = vpop.permute.xlu0 %2521
    %2523 = vrot.lane.b32.xlu0 %v2212, 112
    %v2524 = vpop.permute.xlu0 %2523
    %v2525 = vsel %vm1018, %v2518, %v2522
    %v2526 = vsel %vm1018, %v2520, %v2524
    %v2527 = vsel %vm1018, %v2514, %v2518
    %v2528 = vsel %vm1018, %v2516, %v2520
    %v2529 = vsel %vm1018, %v2510, %v2514
    %v2530 = vsel %vm1018, %v2512, %v2516
    %v2531 = vsel %vm1018, %v2522, %v2510
    %v2532 = vsel %vm1018, %v2524, %v2512
    %v2541 = vmul.bf16 %v2529, %v1038
    %v2542 = vmul.bf16 %v2527, %v1042
    %v2543 = vmul.bf16 %v2525, %v1046
    %v2544 = vmul.bf16 %v2531, %v1050
    %v2545 = vmul.bf16 %v2530, %v1038
    %v2546 = vmul.bf16 %v2528, %v1042
    %v2547 = vmul.bf16 %v2526, %v1046
    %v2548 = vmul.bf16 %v2532, %v1050
    %2549 = vst [vmem:[#allocation2 + $0x180] sm:$0xff] %v2541
    %2550 = vst [vmem:[#allocation2 + $0x188] sm:$0xff] %v2542
    %2551 = vst [vmem:[#allocation2 + $0x190] sm:$0xff] %v2543
    %2552 = vst [vmem:[#allocation2 + $0x198] sm:$0xff] %v2544
    %2553 = vst [vmem:[#allocation2 + $0x1a0] sm:$0xff] %v2545
    %2554 = vst [vmem:[#allocation2 + $0x1a8] sm:$0xff] %v2546
    %2555 = vst [vmem:[#allocation2 + $0x1b0] sm:$0xff] %v2547
    %2556 = vst [vmem:[#allocation2 + $0x1b8] sm:$0xff] %v2548
    %2557 = vrot.lane.b32.xlu0 %v2205, 111
    %v2558 = vpop.permute.xlu0 %2557
    %2559 = vrot.lane.b32.xlu0 %v2209, 111
    %v2560 = vpop.permute.xlu0 %2559
    %2561 = vrot.lane.b32.xlu0 %v2206, 111
    %v2562 = vpop.permute.xlu0 %2561
    %2563 = vrot.lane.b32.xlu0 %v2210, 111
    %v2564 = vpop.permute.xlu0 %2563
    %2565 = vrot.lane.b32.xlu0 %v2207, 111
    %v2566 = vpop.permute.xlu0 %2565
    %2567 = vrot.lane.b32.xlu0 %v2211, 111
    %v2568 = vpop.permute.xlu0 %2567
    %2569 = vrot.lane.b32.xlu0 %v2208, 111
    %v2570 = vpop.permute.xlu0 %2569
    %2571 = vrot.lane.b32.xlu0 %v2212, 111
    %v2572 = vpop.permute.xlu0 %2571
    %v2573 = vsel %vm1083, %v2566, %v2570
    %v2574 = vsel %vm1083, %v2568, %v2572
    %v2575 = vsel %vm1083, %v2562, %v2566
    %v2576 = vsel %vm1083, %v2564, %v2568
    %v2577 = vsel %vm1083, %v2558, %v2562
    %v2578 = vsel %vm1083, %v2560, %v2564
    %v2579 = vsel %vm1083, %v2570, %v2558
    %v2580 = vsel %vm1083, %v2572, %v2560
    %v2589 = vmul.bf16 %v2577, %v1103
    %v2590 = vmul.bf16 %v2575, %v1107
    %v2591 = vmul.bf16 %v2573, %v1111
    %v2592 = vmul.bf16 %v2579, %v1115
    %v2593 = vmul.bf16 %v2578, %v1103
    %v2594 = vmul.bf16 %v2576, %v1107
    %v2595 = vmul.bf16 %v2574, %v1111
    %v2596 = vmul.bf16 %v2580, %v1115
    %2597 = vst [vmem:[#allocation2 + $0x1c0] sm:$0xff] %v2589
    %2598 = vst [vmem:[#allocation2 + $0x1c8] sm:$0xff] %v2590
    %2599 = vst [vmem:[#allocation2 + $0x1d0] sm:$0xff] %v2591
    %2600 = vst [vmem:[#allocation2 + $0x1d8] sm:$0xff] %v2592
    %2601 = vst [vmem:[#allocation2 + $0x1e0] sm:$0xff] %v2593
    %2602 = vst [vmem:[#allocation2 + $0x1e8] sm:$0xff] %v2594
    %2603 = vst [vmem:[#allocation2 + $0x1f0] sm:$0xff] %v2595
    %2604 = vst [vmem:[#allocation2 + $0x1f8] sm:$0xff] %v2596
    %v2605 = vld [vmem:[#allocation12] sm:$0xff]
    %v2606 = vld [vmem:[#allocation12 + $0x8] sm:$0xff]
    %v2607 = vld [vmem:[#allocation12 + $0x10] sm:$0xff]
    %v2608 = vld [vmem:[#allocation12 + $0x18] sm:$0xff]
    %v2609 = vld [vmem:[#allocation2] sm:$0xff]
    %v2610 = vld [vmem:[#allocation2 + $0x8] sm:$0xff]
    %v2611 = vld [vmem:[#allocation2 + $0x10] sm:$0xff]
    %v2612 = vld [vmem:[#allocation2 + $0x18] sm:$0xff]
    %v2613 = vld [vmem:[#allocation2 + $0x20] sm:$0xff]
    %v2614 = vld [vmem:[#allocation2 + $0x28] sm:$0xff]
    %v2615 = vld [vmem:[#allocation2 + $0x30] sm:$0xff]
    %v2616 = vld [vmem:[#allocation2 + $0x38] sm:$0xff]
    %v2617 = vld [vmem:[#allocation2 + $0x40] sm:$0xff]
    %v2618 = vld [vmem:[#allocation2 + $0x48] sm:$0xff]
    %v2619 = vld [vmem:[#allocation2 + $0x50] sm:$0xff]
    %v2620 = vld [vmem:[#allocation2 + $0x58] sm:$0xff]
    %v2621 = vld [vmem:[#allocation2 + $0x60] sm:$0xff]
    %v2622 = vld [vmem:[#allocation2 + $0x68] sm:$0xff]
    %v2623 = vld [vmem:[#allocation2 + $0x70] sm:$0xff]
    %v2624 = vld [vmem:[#allocation2 + $0x78] sm:$0xff]
    %v2625 = vld [vmem:[#allocation2 + $0x80] sm:$0xff]
    %v2626 = vld [vmem:[#allocation2 + $0x88] sm:$0xff]
    %v2627 = vld [vmem:[#allocation2 + $0x90] sm:$0xff]
    %v2628 = vld [vmem:[#allocation2 + $0x98] sm:$0xff]
    %v2629 = vld [vmem:[#allocation2 + $0xa0] sm:$0xff]
    %v2630 = vld [vmem:[#allocation2 + $0xa8] sm:$0xff]
    %v2631 = vld [vmem:[#allocation2 + $0xb0] sm:$0xff]
    %v2632 = vld [vmem:[#allocation2 + $0xb8] sm:$0xff]
    %v2633 = vld [vmem:[#allocation2 + $0xc0] sm:$0xff]
    %v2634 = vld [vmem:[#allocation2 + $0xc8] sm:$0xff]
    %v2635 = vld [vmem:[#allocation2 + $0xd0] sm:$0xff]
    %v2636 = vld [vmem:[#allocation2 + $0xd8] sm:$0xff]
    %v2637 = vld [vmem:[#allocation2 + $0xe0] sm:$0xff]
    %v2638 = vld [vmem:[#allocation2 + $0xe8] sm:$0xff]
    %v2639 = vld [vmem:[#allocation2 + $0xf0] sm:$0xff]
    %v2640 = vld [vmem:[#allocation2 + $0xf8] sm:$0xff]
    %v2641 = vld [vmem:[#allocation2 + $0x100] sm:$0xff]
    %v2642 = vld [vmem:[#allocation2 + $0x108] sm:$0xff]
    %v2643 = vld [vmem:[#allocation2 + $0x110] sm:$0xff]
    %v2644 = vld [vmem:[#allocation2 + $0x118] sm:$0xff]
    %v2645 = vld [vmem:[#allocation2 + $0x120] sm:$0xff]
    %v2646 = vld [vmem:[#allocation2 + $0x128] sm:$0xff]
    %v2647 = vld [vmem:[#allocation2 + $0x130] sm:$0xff]
    %v2648 = vld [vmem:[#allocation2 + $0x138] sm:$0xff]
    %v2649 = vld [vmem:[#allocation2 + $0x140] sm:$0xff]
    %v2650 = vld [vmem:[#allocation2 + $0x148] sm:$0xff]
    %v2651 = vld [vmem:[#allocation2 + $0x150] sm:$0xff]
    %v2652 = vld [vmem:[#allocation2 + $0x158] sm:$0xff]
    %v2653 = vld [vmem:[#allocation2 + $0x160] sm:$0xff]
    %v2654 = vld [vmem:[#allocation2 + $0x168] sm:$0xff]
    %v2655 = vld [vmem:[#allocation2 + $0x170] sm:$0xff]
    %v2656 = vld [vmem:[#allocation2 + $0x178] sm:$0xff]
    %v2657 = vld [vmem:[#allocation2 + $0x180] sm:$0xff]
    %v2658 = vld [vmem:[#allocation2 + $0x188] sm:$0xff]
    %v2659 = vld [vmem:[#allocation2 + $0x190] sm:$0xff]
    %v2660 = vld [vmem:[#allocation2 + $0x198] sm:$0xff]
    %v2661 = vld [vmem:[#allocation2 + $0x1a0] sm:$0xff]
    %v2662 = vld [vmem:[#allocation2 + $0x1a8] sm:$0xff]
    %v2663 = vld [vmem:[#allocation2 + $0x1b0] sm:$0xff]
    %v2664 = vld [vmem:[#allocation2 + $0x1b8] sm:$0xff]
    %v2665 = vld [vmem:[#allocation2 + $0x1c0] sm:$0xff]
    %v2666 = vld [vmem:[#allocation2 + $0x1c8] sm:$0xff]
    %v2667 = vld [vmem:[#allocation2 + $0x1d0] sm:$0xff]
    %v2668 = vld [vmem:[#allocation2 + $0x1d8] sm:$0xff]
    %v2669 = vld [vmem:[#allocation2 + $0x1e0] sm:$0xff]
    %v2670 = vld [vmem:[#allocation2 + $0x1e8] sm:$0xff]
    %v2671 = vld [vmem:[#allocation2 + $0x1f0] sm:$0xff]
    %v2672 = vld [vmem:[#allocation2 + $0x1f8] sm:$0xff]
    %v2673 = vld [vmem:[#allocation14] sm:$0xf]
    %v2674 = vld [vmem:[#allocation14 + $0x4] sm:$0xf]
    %v2675 = vld [vmem:[#allocation14 + $0x8] sm:$0xf]
    %v2676 = vld [vmem:[#allocation14 + $0xc] sm:$0xf]
    %v2681 = vunpack.c.l.b16 %v2673
    %v2682 = vunpack.c.l.b16 %v2674
    %v2683 = vunpack.c.l.b16 %v2675
    %v2684 = vunpack.c.l.b16 %v2676
    %v2685 = vpack.c.b16 %v2682, %v2681
    %v2686 = vpack.c.b16 %v2684, %v2683
    %v2688 = vsel %vm1214, %v2685, 0
    %v2691 = vsel %vm1214, %v2686, 0
    %2693 = vmatprep.subr.bf16.mxu0 %v2206
    %2694 = vmatpush1.bf16.msra.mxu0 %v2205
    %2695 = vmatprep.subr.bf16.mxu0 %v2210
    %2696 = vmatpush1.bf16.msra.mxu0 %v2209
    %2697 = vmatprep.subr.bf16.mxu0 0
    %2698 = vmatpush1.bf16.msra.mxu0 0
    %2699 = vmatprep.subr.bf16.mxu0 0
    %2700 = vmatpush1.bf16.msra.mxu0 0
    %2701 = vmatprep.subr.bf16.mxu0 0
    %2702 = vmatpush1.bf16.msra.mxu0 0
    %2703 = vmatprep.subr.bf16.mxu0 0
    %2704 = vmatpush1.bf16.msra.mxu0 0
    %2705 = vmatprep.subr.bf16.mxu0 0
    %2706 = vmatpush1.bf16.msra.mxu0 0
    %2707 = vmatprep.subr.bf16.mxu0 0
    %2708 = vmatpush1.bf16.msra.mxu0 0
    %2709 = vmatprep.subr.bf16.mxu0 0
    %2710 = vmatpush1.bf16.msra.mxu0 0
    %2711 = vmatprep.subr.bf16.mxu0 0
    %2712 = vmatpush1.bf16.msra.mxu0 0
    %2713 = vmatprep.subr.bf16.mxu0 0
    %2714 = vmatpush1.bf16.msra.mxu0 0
    %2715 = vmatprep.subr.bf16.mxu0 0
    %2716 = vmatpush1.bf16.msra.mxu0 0
    %2717 = vmatprep.subr.bf16.mxu0 0
    %2718 = vmatpush1.bf16.msra.mxu0 0
    %2719 = vmatprep.subr.bf16.mxu0 0
    %2720 = vmatpush1.bf16.msra.mxu0 0
    %2721 = vmatprep.subr.bf16.mxu0 0
    %2722 = vmatpush1.bf16.msra.mxu0 0
    %2723 = vmatprep.subr.bf16.mxu0 0
    %2724 = vmatpush1.bf16.msra.mxu0 0
    %2725 = vmatprep.mubr.bf16.mxu0 0
    %2726 = vmatmul.mubr.bf16.gmra.mrb[0].mxu0 %v2688
    %v2727 = vpop.f32.mrb[0].mxu0
    %v2728 = vadd.f32 0.0, %v2727
    %v2729 = vpop.f32.mrb[0].mxu0
    %v2730 = vadd.f32 0.0, %v2729
    %v2731 = vpop.f32.mrb[0].mxu0
    %v2732 = vadd.f32 0.0, %v2731
    %v2733 = vpop.f32.mrb[0].mxu0
    %v2734 = vadd.f32 0.0, %v2733
    %2735 = vmatprep.mubr.bf16.mxu0 0
    %2736 = vmatmul.mubr.bf16.gmra.mrb[0].mxu0 %v2691
    %v2737 = vpop.f32.mrb[0].mxu0
    %v2738 = vadd.f32 0.0, %v2737
    %v2739 = vpop.f32.mrb[0].mxu0
    %v2740 = vadd.f32 0.0, %v2739
    %v2741 = vpop.f32.mrb[0].mxu0
    %v2742 = vadd.f32 0.0, %v2741
    %v2743 = vpop.f32.mrb[0].mxu0
    %v2744 = vadd.f32 0.0, %v2743
    %2745 = vdwg.mxu0
    %2746 = vmatprep.subr.bf16.mxu0 %v2208
    %2747 = vmatpush1.bf16.msra.mxu0 %v2207
    %2748 = vmatprep.subr.bf16.mxu0 %v2212
    %2749 = vmatpush1.bf16.msra.mxu0 %v2211
    %2750 = vmatprep.subr.bf16.mxu0 0
    %2751 = vmatpush1.bf16.msra.mxu0 0
    %2752 = vmatprep.subr.bf16.mxu0 0
    %2753 = vmatpush1.bf16.msra.mxu0 0
    %2754 = vmatprep.subr.bf16.mxu0 0
    %2755 = vmatpush1.bf16.msra.mxu0 0
    %2756 = vmatprep.subr.bf16.mxu0 0
    %2757 = vmatpush1.bf16.msra.mxu0 0
    %2758 = vmatprep.subr.bf16.mxu0 0
    %2759 = vmatpush1.bf16.msra.mxu0 0
    %2760 = vmatprep.subr.bf16.mxu0 0
    %2761 = vmatpush1.bf16.msra.mxu0 0
    %2762 = vmatprep.subr.bf16.mxu0 0
    %2763 = vmatpush1.bf16.msra.mxu0 0
    %2764 = vmatprep.subr.bf16.mxu0 0
    %2765 = vmatpush1.bf16.msra.mxu0 0
    %2766 = vmatprep.subr.bf16.mxu0 0
    %2767 = vmatpush1.bf16.msra.mxu0 0
    %2768 = vmatprep.subr.bf16.mxu0 0
    %2769 = vmatpush1.bf16.msra.mxu0 0
    %2770 = vmatprep.subr.bf16.mxu0 0
    %2771 = vmatpush1.bf16.msra.mxu0 0
    %2772 = vmatprep.subr.bf16.mxu0 0
    %2773 = vmatpush1.bf16.msra.mxu0 0
    %2774 = vmatprep.subr.bf16.mxu0 0
    %2775 = vmatpush1.bf16.msra.mxu0 0
    %2776 = vmatprep.subr.bf16.mxu0 0
    %2777 = vmatpush1.bf16.msra.mxu0 0
    %2778 = vmatprep.mubr.bf16.mxu0 0
    %2779 = vmatmul.mubr.bf16.gmra.mrb[0].mxu0 %v2688
    %v2780 = vpop.f32.mrb[0].mxu0
    %v2781 = vadd.f32 0.0, %v2780
    %v2782 = vpop.f32.mrb[0].mxu0
    %v2783 = vadd.f32 0.0, %v2782
    %v2784 = vpop.f32.mrb[0].mxu0
    %v2785 = vadd.f32 0.0, %v2784
    %v2786 = vpop.f32.mrb[0].mxu0
    %v2787 = vadd.f32 0.0, %v2786
    %2788 = vmatprep.mubr.bf16.mxu0 0
    %2789 = vmatmul.mubr.bf16.gmra.mrb[0].mxu0 %v2691
    %v2790 = vpop.f32.mrb[0].mxu0
    %v2791 = vadd.f32 0.0, %v2790
    %v2792 = vpop.f32.mrb[0].mxu0
    %v2793 = vadd.f32 0.0, %v2792
    %v2794 = vpop.f32.mrb[0].mxu0
    %v2795 = vadd.f32 0.0, %v2794
    %v2796 = vpop.f32.mrb[0].mxu0
    %v2797 = vadd.f32 0.0, %v2796
    %2798 = vdwg.mxu0
    %v2803 = vunpack.c.l.b16 %v2605
    %v2804 = vunpack.c.h.b16 %v2605
    %v2805 = vunpack.c.l.b16 %v2606
    %v2806 = vunpack.c.h.b16 %v2606
    %v2807 = vunpack.c.l.b16 %v2607
    %v2808 = vunpack.c.h.b16 %v2607
    %v2809 = vunpack.c.l.b16 %v2608
    %v2810 = vunpack.c.h.b16 %v2608
    %v2811 = vpack.c.b16 %v2805, %v2803
    %v2812 = vpack.c.b16 %v2806, %v2804
    %v2813 = vpack.c.b16 %v2809, %v2807
    %v2814 = vpack.c.b16 %v2810, %v2808
    %2819 = vmatprep.subr.bf16.mxu0 %v2610
    %2820 = vmatpush1.bf16.msra.mxu0 %v2609
    %2821 = vmatprep.subr.bf16.mxu0 %v2614
    %2822 = vmatpush1.bf16.msra.mxu0 %v2613
    %2823 = vmatprep.subr.bf16.mxu0 %v2618
    %2824 = vmatpush1.bf16.msra.mxu0 %v2617
    %2825 = vmatprep.subr.bf16.mxu0 %v2622
    %2826 = vmatpush1.bf16.msra.mxu0 %v2621
    %2827 = vmatprep.subr.bf16.mxu0 %v2626
    %2828 = vmatpush1.bf16.msra.mxu0 %v2625
    %2829 = vmatprep.subr.bf16.mxu0 %v2630
    %2830 = vmatpush1.bf16.msra.mxu0 %v2629
    %2831 = vmatprep.subr.bf16.mxu0 %v2634
    %2832 = vmatpush1.bf16.msra.mxu0 %v2633
    %2833 = vmatprep.subr.bf16.mxu0 %v2638
    %2834 = vmatpush1.bf16.msra.mxu0 %v2637
    %2835 = vmatprep.subr.bf16.mxu0 %v2642
    %2836 = vmatpush1.bf16.msra.mxu0 %v2641
    %2837 = vmatprep.subr.bf16.mxu0 %v2646
    %2838 = vmatpush1.bf16.msra.mxu0 %v2645
    %2839 = vmatprep.subr.bf16.mxu0 %v2650
    %2840 = vmatpush1.bf16.msra.mxu0 %v2649
    %2841 = vmatprep.subr.bf16.mxu0 %v2654
    %2842 = vmatpush1.bf16.msra.mxu0 %v2653
    %2843 = vmatprep.subr.bf16.mxu0 %v2658
    %2844 = vmatpush1.bf16.msra.mxu0 %v2657
    %2845 = vmatprep.subr.bf16.mxu0 %v2662
    %2846 = vmatpush1.bf16.msra.mxu0 %v2661
    %2847 = vmatprep.subr.bf16.mxu0 %v2666
    %2848 = vmatpush1.bf16.msra.mxu0 %v2665
    %2849 = vmatprep.subr.bf16.mxu0 %v2670
    %2850 = vmatpush1.bf16.msra.mxu0 %v2669
    %2851 = vmatprep.mubr.bf16.mxu0 %v2812
    %2852 = vmatmul.mubr.bf16.gmra.mrb[0].mxu0 %v2811
    %v2853 = vpop.f32.mrb[0].mxu0
    %v2854 = vadd.f32 %v2728, %v2853
    %v2855 = vpop.f32.mrb[0].mxu0
    %v2856 = vadd.f32 %v2730, %v2855
    %v2857 = vpop.f32.mrb[0].mxu0
    %v2858 = vadd.f32 %v2732, %v2857
    %v2859 = vpop.f32.mrb[0].mxu0
    %v2860 = vadd.f32 %v2734, %v2859
    %2861 = vmatprep.mubr.bf16.mxu0 %v2814
    %2862 = vmatmul.mubr.bf16.gmra.mrb[0].mxu0 %v2813
    %v2863 = vpop.f32.mrb[0].mxu0
    %v2864 = vadd.f32 %v2738, %v2863
    %v2865 = vpop.f32.mrb[0].mxu0
    %v2866 = vadd.f32 %v2740, %v2865
    %v2867 = vpop.f32.mrb[0].mxu0
    %v2868 = vadd.f32 %v2742, %v2867
    %v2869 = vpop.f32.mrb[0].mxu0
    %v2870 = vadd.f32 %v2744, %v2869
    %2871 = vdwg.mxu0
    %2872 = vmatprep.subr.bf16.mxu0 %v2612
    %2873 = vmatpush1.bf16.msra.mxu0 %v2611
    %2874 = vmatprep.subr.bf16.mxu0 %v2616
    %2875 = vmatpush1.bf16.msra.mxu0 %v2615
    %2876 = vmatprep.subr.bf16.mxu0 %v2620
    %2877 = vmatpush1.bf16.msra.mxu0 %v2619
    %2878 = vmatprep.subr.bf16.mxu0 %v2624
    %2879 = vmatpush1.bf16.msra.mxu0 %v2623
    %2880 = vmatprep.subr.bf16.mxu0 %v2628
    %2881 = vmatpush1.bf16.msra.mxu0 %v2627
    %2882 = vmatprep.subr.bf16.mxu0 %v2632
    %2883 = vmatpush1.bf16.msra.mxu0 %v2631
    %2884 = vmatprep.subr.bf16.mxu0 %v2636
    %2885 = vmatpush1.bf16.msra.mxu0 %v2635
    %2886 = vmatprep.subr.bf16.mxu0 %v2640
    %2887 = vmatpush1.bf16.msra.mxu0 %v2639
    %2888 = vmatprep.subr.bf16.mxu0 %v2644
    %2889 = vmatpush1.bf16.msra.mxu0 %v2643
    %2890 = vmatprep.subr.bf16.mxu0 %v2648
    %2891 = vmatpush1.bf16.msra.mxu0 %v2647
    %2892 = vmatprep.subr.bf16.mxu0 %v2652
    %2893 = vmatpush1.bf16.msra.mxu0 %v2651
    %2894 = vmatprep.subr.bf16.mxu0 %v2656
    %2895 = vmatpush1.bf16.msra.mxu0 %v2655
    %2896 = vmatprep.subr.bf16.mxu0 %v2660
    %2897 = vmatpush1.bf16.msra.mxu0 %v2659
    %2898 = vmatprep.subr.bf16.mxu0 %v2664
    %2899 = vmatpush1.bf16.msra.mxu0 %v2663
    %2900 = vmatprep.subr.bf16.mxu0 %v2668
    %2901 = vmatpush1.bf16.msra.mxu0 %v2667
    %2902 = vmatprep.subr.bf16.mxu0 %v2672
    %2903 = vmatpush1.bf16.msra.mxu0 %v2671
    %2904 = vmatprep.mubr.bf16.mxu0 %v2812
    %2905 = vmatmul.mubr.bf16.gmra.mrb[0].mxu0 %v2811
    %v2906 = vpop.f32.mrb[0].mxu0
    %v2907 = vadd.f32 %v2781, %v2906
    %v2908 = vpop.f32.mrb[0].mxu0
    %v2909 = vadd.f32 %v2783, %v2908
    %v2910 = vpop.f32.mrb[0].mxu0
    %v2911 = vadd.f32 %v2785, %v2910
    %v2912 = vpop.f32.mrb[0].mxu0
    %v2913 = vadd.f32 %v2787, %v2912
    %2914 = vmatprep.mubr.bf16.mxu0 %v2814
    %2915 = vmatmul.mubr.bf16.gmra.mrb[0].mxu0 %v2813
    %v2916 = vpop.f32.mrb[0].mxu0
    %v2917 = vadd.f32 %v2791, %v2916
    %v2918 = vpop.f32.mrb[0].mxu0
    %v2919 = vadd.f32 %v2793, %v2918
    %v2920 = vpop.f32.mrb[0].mxu0
    %v2921 = vadd.f32 %v2795, %v2920
    %v2922 = vpop.f32.mrb[0].mxu0
    %v2923 = vadd.f32 %v2797, %v2922
    %2924 = vdwg.mxu0
    %v2925 = vsub.f32 %v1453, %v2854
    %v2926 = vsub.f32 %v1454, %v2856
    %v2927 = vsub.f32 %v1455, %v2907
    %v2928 = vsub.f32 %v1456, %v2909
    %v2929 = vsub.f32 %v1457, %v2858
    %v2930 = vsub.f32 %v1458, %v2860
    %v2931 = vsub.f32 %v1459, %v2911
    %v2932 = vsub.f32 %v1460, %v2913
    %v2933 = vsub.f32 %v1461, %v2864
    %v2934 = vsub.f32 %v1462, %v2866
    %v2935 = vsub.f32 %v1463, %v2917
    %v2936 = vsub.f32 %v1464, %v2919
    %v2937 = vsub.f32 %v1465, %v2868
    %v2938 = vsub.f32 %v1466, %v2870
    %v2939 = vsub.f32 %v1467, %v2921
    %v2940 = vsub.f32 %v1468, %v2923
    %v2941 = vadd.f32 %v2925, %v1382
    %v2942 = vadd.f32 %v2926, %v1384
    %v2943 = vadd.f32 %v2927, %v1435
    %v2944 = vadd.f32 %v2928, %v1437
    %v2945 = vadd.f32 %v2929, %v1386
    %v2946 = vadd.f32 %v2930, %v1388
    %v2947 = vadd.f32 %v2931, %v1439
    %v2948 = vadd.f32 %v2932, %v1441
    %v2949 = vadd.f32 %v2933, %v1392
    %v2950 = vadd.f32 %v2934, %v1394
    %v2951 = vadd.f32 %v2935, %v1445
    %v2952 = vadd.f32 %v2936, %v1447
    %v2953 = vadd.f32 %v2937, %v1396
    %v2954 = vadd.f32 %v2938, %v1398
    %v2955 = vadd.f32 %v2939, %v1449
    %v2956 = vadd.f32 %v2940, %v1451
    %v2957 = vmax.f32 %v2941, 0.0
    %v2958 = vmax.f32 %v2942, 0.0
    %v2959 = vmax.f32 %v2943, 0.0
    %v2960 = vmax.f32 %v2944, 0.0
    %v2961 = vmax.f32 %v2945, 0.0
    %v2962 = vmax.f32 %v2946, 0.0
    %v2963 = vmax.f32 %v2947, 0.0
    %v2964 = vmax.f32 %v2948, 0.0
    %v2965 = vmax.f32 %v2949, 0.0
    %v2966 = vmax.f32 %v2950, 0.0
    %v2967 = vmax.f32 %v2951, 0.0
    %v2968 = vmax.f32 %v2952, 0.0
    %v2969 = vmax.f32 %v2953, 0.0
    %v2970 = vmax.f32 %v2954, 0.0
    %v2971 = vmax.f32 %v2955, 0.0
    %v2972 = vmax.f32 %v2956, 0.0
    %v2973 = vpack.c.bf16 %v2961, %v2957
    %v2974 = vpack.c.bf16 %v2962, %v2958
    %v2975 = vpack.c.bf16 %v2963, %v2959
    %v2976 = vpack.c.bf16 %v2964, %v2960
    %v2977 = vpack.c.bf16 %v2969, %v2965
    %v2978 = vpack.c.bf16 %v2970, %v2966
    %v2979 = vpack.c.bf16 %v2971, %v2967
    %v2980 = vpack.c.bf16 %v2972, %v2968
    %2989 = vrot.lane.b32.xlu0 %v2973, 17
    %v2990 = vpop.permute.xlu0 %2989
    %2991 = vrot.lane.b32.xlu0 %v2977, 17
    %v2992 = vpop.permute.xlu0 %2991
    %2993 = vrot.lane.b32.xlu0 %v2974, 17
    %v2994 = vpop.permute.xlu0 %2993
    %2995 = vrot.lane.b32.xlu0 %v2978, 17
    %v2996 = vpop.permute.xlu0 %2995
    %2997 = vrot.lane.b32.xlu0 %v2975, 17
    %v2998 = vpop.permute.xlu0 %2997
    %2999 = vrot.lane.b32.xlu0 %v2979, 17
    %v3000 = vpop.permute.xlu0 %2999
    %3001 = vrot.lane.b32.xlu0 %v2976, 17
    %v3002 = vpop.permute.xlu0 %3001
    %3003 = vrot.lane.b32.xlu0 %v2980, 17
    %v3004 = vpop.permute.xlu0 %3003
    %v3005 = vsel %vm604, %v2998, %v3002
    %v3006 = vsel %vm604, %v3000, %v3004
    %v3007 = vsel %vm604, %v2994, %v2998
    %v3008 = vsel %vm604, %v2996, %v3000
    %v3009 = vsel %vm604, %v2990, %v2994
    %v3010 = vsel %vm604, %v2992, %v2996
    %v3011 = vsel %vm604, %v3002, %v2990
    %v3012 = vsel %vm604, %v3004, %v2992
    %v3021 = vmul.bf16 %v3011, %v627
    %v3022 = vmul.bf16 %v3009, %v634
    %v3023 = vmul.bf16 %v3007, %v641
    %v3024 = vmul.bf16 %v3005, %v648
    %v3025 = vmul.bf16 %v3012, %v627
    %v3026 = vmul.bf16 %v3010, %v634
    %v3027 = vmul.bf16 %v3008, %v641
    %v3028 = vmul.bf16 %v3006, %v648
    %3029 = vst [vmem:[#allocation2] sm:$0xff] %v3021
    %3030 = vst [vmem:[#allocation2 + $0x8] sm:$0xff] %v3022
    %3031 = vst [vmem:[#allocation2 + $0x10] sm:$0xff] %v3023
    %3032 = vst [vmem:[#allocation2 + $0x18] sm:$0xff] %v3024
    %3033 = vst [vmem:[#allocation2 + $0x20] sm:$0xff] %v3025
    %3034 = vst [vmem:[#allocation2 + $0x28] sm:$0xff] %v3026
    %3035 = vst [vmem:[#allocation2 + $0x30] sm:$0xff] %v3027
    %3036 = vst [vmem:[#allocation2 + $0x38] sm:$0xff] %v3028
    %3037 = vrot.lane.b32.xlu0 %v2973, 16
    %v3038 = vpop.permute.xlu0 %3037
    %3039 = vrot.lane.b32.xlu0 %v2977, 16
    %v3040 = vpop.permute.xlu0 %3039
    %3041 = vrot.lane.b32.xlu0 %v2974, 16
    %v3042 = vpop.permute.xlu0 %3041
    %3043 = vrot.lane.b32.xlu0 %v2978, 16
    %v3044 = vpop.permute.xlu0 %3043
    %3045 = vrot.lane.b32.xlu0 %v2975, 16
    %v3046 = vpop.permute.xlu0 %3045
    %3047 = vrot.lane.b32.xlu0 %v2979, 16
    %v3048 = vpop.permute.xlu0 %3047
    %3049 = vrot.lane.b32.xlu0 %v2976, 16
    %v3050 = vpop.permute.xlu0 %3049
    %3051 = vrot.lane.b32.xlu0 %v2980, 16
    %v3052 = vpop.permute.xlu0 %3051
    %v3053 = vsel %vm681, %v3046, %v3050
    %v3054 = vsel %vm681, %v3048, %v3052
    %v3055 = vsel %vm681, %v3042, %v3046
    %v3056 = vsel %vm681, %v3044, %v3048
    %v3057 = vsel %vm681, %v3038, %v3042
    %v3058 = vsel %vm681, %v3040, %v3044
    %v3059 = vsel %vm681, %v3050, %v3038
    %v3060 = vsel %vm681, %v3052, %v3040
    %v3069 = vmul.bf16 %v3059, %v704
    %v3070 = vmul.bf16 %v3057, %v711
    %v3071 = vmul.bf16 %v3055, %v718
    %v3072 = vmul.bf16 %v3053, %v725
    %v3073 = vmul.bf16 %v3060, %v704
    %v3074 = vmul.bf16 %v3058, %v711
    %v3075 = vmul.bf16 %v3056, %v718
    %v3076 = vmul.bf16 %v3054, %v725
    %3077 = vst [vmem:[#allocation2 + $0x40] sm:$0xff] %v3069
    %3078 = vst [vmem:[#allocation2 + $0x48] sm:$0xff] %v3070
    %3079 = vst [vmem:[#allocation2 + $0x50] sm:$0xff] %v3071
    %3080 = vst [vmem:[#allocation2 + $0x58] sm:$0xff] %v3072
    %3081 = vst [vmem:[#allocation2 + $0x60] sm:$0xff] %v3073
    %3082 = vst [vmem:[#allocation2 + $0x68] sm:$0xff] %v3074
    %3083 = vst [vmem:[#allocation2 + $0x70] sm:$0xff] %v3075
    %3084 = vst [vmem:[#allocation2 + $0x78] sm:$0xff] %v3076
    %3085 = vrot.lane.b32.xlu0 %v2973, 15
    %v3086 = vpop.permute.xlu0 %3085
    %3087 = vrot.lane.b32.xlu0 %v2977, 15
    %v3088 = vpop.permute.xlu0 %3087
    %3089 = vrot.lane.b32.xlu0 %v2974, 15
    %v3090 = vpop.permute.xlu0 %3089
    %3091 = vrot.lane.b32.xlu0 %v2978, 15
    %v3092 = vpop.permute.xlu0 %3091
    %3093 = vrot.lane.b32.xlu0 %v2975, 15
    %v3094 = vpop.permute.xlu0 %3093
    %3095 = vrot.lane.b32.xlu0 %v2979, 15
    %v3096 = vpop.permute.xlu0 %3095
    %3097 = vrot.lane.b32.xlu0 %v2976, 15
    %v3098 = vpop.permute.xlu0 %3097
    %3099 = vrot.lane.b32.xlu0 %v2980, 15
    %v3100 = vpop.permute.xlu0 %3099
    %v3101 = vsel %vm758, %v3094, %v3098
    %v3102 = vsel %vm758, %v3096, %v3100
    %v3103 = vsel %vm758, %v3090, %v3094
    %v3104 = vsel %vm758, %v3092, %v3096
    %v3105 = vsel %vm758, %v3086, %v3090
    %v3106 = vsel %vm758, %v3088, %v3092
    %v3107 = vsel %vm758, %v3098, %v3086
    %v3108 = vsel %vm758, %v3100, %v3088
    %v3117 = vmul.bf16 %v3107, %v778
    %v3118 = vmul.bf16 %v3105, %v782
    %v3119 = vmul.bf16 %v3103, %v786
    %v3120 = vmul.bf16 %v3101, %v790
    %v3121 = vmul.bf16 %v3108, %v778
    %v3122 = vmul.bf16 %v3106, %v782
    %v3123 = vmul.bf16 %v3104, %v786
    %v3124 = vmul.bf16 %v3102, %v790
    %3125 = vst [vmem:[#allocation2 + $0x80] sm:$0xff] %v3117
    %3126 = vst [vmem:[#allocation2 + $0x88] sm:$0xff] %v3118
    %3127 = vst [vmem:[#allocation2 + $0x90] sm:$0xff] %v3119
    %3128 = vst [vmem:[#allocation2 + $0x98] sm:$0xff] %v3120
    %3129 = vst [vmem:[#allocation2 + $0xa0] sm:$0xff] %v3121
    %3130 = vst [vmem:[#allocation2 + $0xa8] sm:$0xff] %v3122
    %3131 = vst [vmem:[#allocation2 + $0xb0] sm:$0xff] %v3123
    %3132 = vst [vmem:[#allocation2 + $0xb8] sm:$0xff] %v3124
    %3133 = vrot.lane.b32.xlu0 %v2973, 1
    %v3134 = vpop.permute.xlu0 %3133
    %3135 = vrot.lane.b32.xlu0 %v2977, 1
    %v3136 = vpop.permute.xlu0 %3135
    %3137 = vrot.lane.b32.xlu0 %v2974, 1
    %v3138 = vpop.permute.xlu0 %3137
    %3139 = vrot.lane.b32.xlu0 %v2978, 1
    %v3140 = vpop.permute.xlu0 %3139
    %3141 = vrot.lane.b32.xlu0 %v2975, 1
    %v3142 = vpop.permute.xlu0 %3141
    %3143 = vrot.lane.b32.xlu0 %v2979, 1
    %v3144 = vpop.permute.xlu0 %3143
    %3145 = vrot.lane.b32.xlu0 %v2976, 1
    %v3146 = vpop.permute.xlu0 %3145
    %3147 = vrot.lane.b32.xlu0 %v2980, 1
    %v3148 = vpop.permute.xlu0 %3147
    %v3149 = vsel %vm823, %v3142, %v3146
    %v3150 = vsel %vm823, %v3144, %v3148
    %v3151 = vsel %vm823, %v3138, %v3142
    %v3152 = vsel %vm823, %v3140, %v3144
    %v3153 = vsel %vm823, %v3134, %v3138
    %v3154 = vsel %vm823, %v3136, %v3140
    %v3155 = vsel %vm823, %v3146, %v3134
    %v3156 = vsel %vm823, %v3148, %v3136
    %v3165 = vmul.bf16 %v3155, %v843
    %v3166 = vmul.bf16 %v3153, %v847
    %v3167 = vmul.bf16 %v3151, %v851
    %v3168 = vmul.bf16 %v3149, %v855
    %v3169 = vmul.bf16 %v3156, %v843
    %v3170 = vmul.bf16 %v3154, %v847
    %v3171 = vmul.bf16 %v3152, %v851
    %v3172 = vmul.bf16 %v3150, %v855
    %3173 = vst [vmem:[#allocation2 + $0xc0] sm:$0xff] %v3165
    %3174 = vst [vmem:[#allocation2 + $0xc8] sm:$0xff] %v3166
    %3175 = vst [vmem:[#allocation2 + $0xd0] sm:$0xff] %v3167
    %3176 = vst [vmem:[#allocation2 + $0xd8] sm:$0xff] %v3168
    %3177 = vst [vmem:[#allocation2 + $0xe0] sm:$0xff] %v3169
    %3178 = vst [vmem:[#allocation2 + $0xe8] sm:$0xff] %v3170
    %3179 = vst [vmem:[#allocation2 + $0xf0] sm:$0xff] %v3171
    %3180 = vst [vmem:[#allocation2 + $0xf8] sm:$0xff] %v3172
    %3181 = vrot.lane.b32.xlu0 %v2973, 127
    %v3182 = vpop.permute.xlu0 %3181
    %3183 = vrot.lane.b32.xlu0 %v2977, 127
    %v3184 = vpop.permute.xlu0 %3183
    %3185 = vrot.lane.b32.xlu0 %v2974, 127
    %v3186 = vpop.permute.xlu0 %3185
    %3187 = vrot.lane.b32.xlu0 %v2978, 127
    %v3188 = vpop.permute.xlu0 %3187
    %3189 = vrot.lane.b32.xlu0 %v2975, 127
    %v3190 = vpop.permute.xlu0 %3189
    %3191 = vrot.lane.b32.xlu0 %v2979, 127
    %v3192 = vpop.permute.xlu0 %3191
    %3193 = vrot.lane.b32.xlu0 %v2976, 127
    %v3194 = vpop.permute.xlu0 %3193
    %3195 = vrot.lane.b32.xlu0 %v2980, 127
    %v3196 = vpop.permute.xlu0 %3195
    %v3197 = vsel %vm888, %v3190, %v3194
    %v3198 = vsel %vm888, %v3192, %v3196
    %v3199 = vsel %vm888, %v3186, %v3190
    %v3200 = vsel %vm888, %v3188, %v3192
    %v3201 = vsel %vm888, %v3182, %v3186
    %v3202 = vsel %vm888, %v3184, %v3188
    %v3203 = vsel %vm888, %v3194, %v3182
    %v3204 = vsel %vm888, %v3196, %v3184
    %v3213 = vmul.bf16 %v3201, %v908
    %v3214 = vmul.bf16 %v3199, %v912
    %v3215 = vmul.bf16 %v3197, %v916
    %v3216 = vmul.bf16 %v3203, %v920
    %v3217 = vmul.bf16 %v3202, %v908
    %v3218 = vmul.bf16 %v3200, %v912
    %v3219 = vmul.bf16 %v3198, %v916
    %v3220 = vmul.bf16 %v3204, %v920
    %3221 = vst [vmem:[#allocation2 + $0x100] sm:$0xff] %v3213
    %3222 = vst [vmem:[#allocation2 + $0x108] sm:$0xff] %v3214
    %3223 = vst [vmem:[#allocation2 + $0x110] sm:$0xff] %v3215
    %3224 = vst [vmem:[#allocation2 + $0x118] sm:$0xff] %v3216
    %3225 = vst [vmem:[#allocation2 + $0x120] sm:$0xff] %v3217
    %3226 = vst [vmem:[#allocation2 + $0x128] sm:$0xff] %v3218
    %3227 = vst [vmem:[#allocation2 + $0x130] sm:$0xff] %v3219
    %3228 = vst [vmem:[#allocation2 + $0x138] sm:$0xff] %v3220
    %3229 = vrot.lane.b32.xlu0 %v2973, 113
    %v3230 = vpop.permute.xlu0 %3229
    %3231 = vrot.lane.b32.xlu0 %v2977, 113
    %v3232 = vpop.permute.xlu0 %3231
    %3233 = vrot.lane.b32.xlu0 %v2974, 113
    %v3234 = vpop.permute.xlu0 %3233
    %3235 = vrot.lane.b32.xlu0 %v2978, 113
    %v3236 = vpop.permute.xlu0 %3235
    %3237 = vrot.lane.b32.xlu0 %v2975, 113
    %v3238 = vpop.permute.xlu0 %3237
    %3239 = vrot.lane.b32.xlu0 %v2979, 113
    %v3240 = vpop.permute.xlu0 %3239
    %3241 = vrot.lane.b32.xlu0 %v2976, 113
    %v3242 = vpop.permute.xlu0 %3241
    %3243 = vrot.lane.b32.xlu0 %v2980, 113
    %v3244 = vpop.permute.xlu0 %3243
    %v3245 = vsel %vm953, %v3238, %v3242
    %v3246 = vsel %vm953, %v3240, %v3244
    %v3247 = vsel %vm953, %v3234, %v3238
    %v3248 = vsel %vm953, %v3236, %v3240
    %v3249 = vsel %vm953, %v3230, %v3234
    %v3250 = vsel %vm953, %v3232, %v3236
    %v3251 = vsel %vm953, %v3242, %v3230
    %v3252 = vsel %vm953, %v3244, %v3232
    %v3261 = vmul.bf16 %v3249, %v973
    %v3262 = vmul.bf16 %v3247, %v977
    %v3263 = vmul.bf16 %v3245, %v981
    %v3264 = vmul.bf16 %v3251, %v985
    %v3265 = vmul.bf16 %v3250, %v973
    %v3266 = vmul.bf16 %v3248, %v977
    %v3267 = vmul.bf16 %v3246, %v981
    %v3268 = vmul.bf16 %v3252, %v985
    %3269 = vst [vmem:[#allocation2 + $0x140] sm:$0xff] %v3261
    %3270 = vst [vmem:[#allocation2 + $0x148] sm:$0xff] %v3262
    %3271 = vst [vmem:[#allocation2 + $0x150] sm:$0xff] %v3263
    %3272 = vst [vmem:[#allocation2 + $0x158] sm:$0xff] %v3264
    %3273 = vst [vmem:[#allocation2 + $0x160] sm:$0xff] %v3265
    %3274 = vst [vmem:[#allocation2 + $0x168] sm:$0xff] %v3266
    %3275 = vst [vmem:[#allocation2 + $0x170] sm:$0xff] %v3267
    %3276 = vst [vmem:[#allocation2 + $0x178] sm:$0xff] %v3268
    %3277 = vrot.lane.b32.xlu0 %v2973, 112
    %v3278 = vpop.permute.xlu0 %3277
    %3279 = vrot.lane.b32.xlu0 %v2977, 112
    %v3280 = vpop.permute.xlu0 %3279
    %3281 = vrot.lane.b32.xlu0 %v2974, 112
    %v3282 = vpop.permute.xlu0 %3281
    %3283 = vrot.lane.b32.xlu0 %v2978, 112
    %v3284 = vpop.permute.xlu0 %3283
    %3285 = vrot.lane.b32.xlu0 %v2975, 112
    %v3286 = vpop.permute.xlu0 %3285
    %3287 = vrot.lane.b32.xlu0 %v2979, 112
    %v3288 = vpop.permute.xlu0 %3287
    %3289 = vrot.lane.b32.xlu0 %v2976, 112
    %v3290 = vpop.permute.xlu0 %3289
    %3291 = vrot.lane.b32.xlu0 %v2980, 112
    %v3292 = vpop.permute.xlu0 %3291
    %v3293 = vsel %vm1018, %v3286, %v3290
    %v3294 = vsel %vm1018, %v3288, %v3292
    %v3295 = vsel %vm1018, %v3282, %v3286
    %v3296 = vsel %vm1018, %v3284, %v3288
    %v3297 = vsel %vm1018, %v3278, %v3282
    %v3298 = vsel %vm1018, %v3280, %v3284
    %v3299 = vsel %vm1018, %v3290, %v3278
    %v3300 = vsel %vm1018, %v3292, %v3280
    %v3309 = vmul.bf16 %v3297, %v1038
    %v3310 = vmul.bf16 %v3295, %v1042
    %v3311 = vmul.bf16 %v3293, %v1046
    %v3312 = vmul.bf16 %v3299, %v1050
    %v3313 = vmul.bf16 %v3298, %v1038
    %v3314 = vmul.bf16 %v3296, %v1042
    %v3315 = vmul.bf16 %v3294, %v1046
    %v3316 = vmul.bf16 %v3300, %v1050
    %3317 = vst [vmem:[#allocation2 + $0x180] sm:$0xff] %v3309
    %3318 = vst [vmem:[#allocation2 + $0x188] sm:$0xff] %v3310
    %3319 = vst [vmem:[#allocation2 + $0x190] sm:$0xff] %v3311
    %3320 = vst [vmem:[#allocation2 + $0x198] sm:$0xff] %v3312
    %3321 = vst [vmem:[#allocation2 + $0x1a0] sm:$0xff] %v3313
    %3322 = vst [vmem:[#allocation2 + $0x1a8] sm:$0xff] %v3314
    %3323 = vst [vmem:[#allocation2 + $0x1b0] sm:$0xff] %v3315
    %3324 = vst [vmem:[#allocation2 + $0x1b8] sm:$0xff] %v3316
    %3325 = vrot.lane.b32.xlu0 %v2973, 111
    %v3326 = vpop.permute.xlu0 %3325
    %3327 = vrot.lane.b32.xlu0 %v2977, 111
    %v3328 = vpop.permute.xlu0 %3327
    %3329 = vrot.lane.b32.xlu0 %v2974, 111
    %v3330 = vpop.permute.xlu0 %3329
    %3331 = vrot.lane.b32.xlu0 %v2978, 111
    %v3332 = vpop.permute.xlu0 %3331
    %3333 = vrot.lane.b32.xlu0 %v2975, 111
    %v3334 = vpop.permute.xlu0 %3333
    %3335 = vrot.lane.b32.xlu0 %v2979, 111
    %v3336 = vpop.permute.xlu0 %3335
    %3337 = vrot.lane.b32.xlu0 %v2976, 111
    %v3338 = vpop.permute.xlu0 %3337
    %3339 = vrot.lane.b32.xlu0 %v2980, 111
    %v3340 = vpop.permute.xlu0 %3339
    %v3341 = vsel %vm1083, %v3334, %v3338
    %v3342 = vsel %vm1083, %v3336, %v3340
    %v3343 = vsel %vm1083, %v3330, %v3334
    %v3344 = vsel %vm1083, %v3332, %v3336
    %v3345 = vsel %vm1083, %v3326, %v3330
    %v3346 = vsel %vm1083, %v3328, %v3332
    %v3347 = vsel %vm1083, %v3338, %v3326
    %v3348 = vsel %vm1083, %v3340, %v3328
    %v3357 = vmul.bf16 %v3345, %v1103
    %v3358 = vmul.bf16 %v3343, %v1107
    %v3359 = vmul.bf16 %v3341, %v1111
    %v3360 = vmul.bf16 %v3347, %v1115
    %v3361 = vmul.bf16 %v3346, %v1103
    %v3362 = vmul.bf16 %v3344, %v1107
    %v3363 = vmul.bf16 %v3342, %v1111
    %v3364 = vmul.bf16 %v3348, %v1115
    %3365 = vst [vmem:[#allocation2 + $0x1c0] sm:$0xff] %v3357
    %3366 = vst [vmem:[#allocation2 + $0x1c8] sm:$0xff] %v3358
    %3367 = vst [vmem:[#allocation2 + $0x1d0] sm:$0xff] %v3359
    %3368 = vst [vmem:[#allocation2 + $0x1d8] sm:$0xff] %v3360
    %3369 = vst [vmem:[#allocation2 + $0x1e0] sm:$0xff] %v3361
    %3370 = vst [vmem:[#allocation2 + $0x1e8] sm:$0xff] %v3362
    %3371 = vst [vmem:[#allocation2 + $0x1f0] sm:$0xff] %v3363
    %3372 = vst [vmem:[#allocation2 + $0x1f8] sm:$0xff] %v3364
    %v3373 = vld [vmem:[%s7] sm:$0xff]
    %v3374 = vld [vmem:[%s7 + $0x8] sm:$0xff]
    %v3375 = vld [vmem:[%s7 + $0x10] sm:$0xff]
    %v3376 = vld [vmem:[%s7 + $0x18] sm:$0xff]
    %v3377 = vld [vmem:[#allocation2] sm:$0xff]
    %v3378 = vld [vmem:[#allocation2 + $0x8] sm:$0xff]
    %v3379 = vld [vmem:[#allocation2 + $0x10] sm:$0xff]
    %v3380 = vld [vmem:[#allocation2 + $0x18] sm:$0xff]
    %v3381 = vld [vmem:[#allocation2 + $0x20] sm:$0xff]
    %v3382 = vld [vmem:[#allocation2 + $0x28] sm:$0xff]
    %v3383 = vld [vmem:[#allocation2 + $0x30] sm:$0xff]
    %v3384 = vld [vmem:[#allocation2 + $0x38] sm:$0xff]
    %v3385 = vld [vmem:[#allocation2 + $0x40] sm:$0xff]
    %v3386 = vld [vmem:[#allocation2 + $0x48] sm:$0xff]
    %v3387 = vld [vmem:[#allocation2 + $0x50] sm:$0xff]
    %v3388 = vld [vmem:[#allocation2 + $0x58] sm:$0xff]
    %v3389 = vld [vmem:[#allocation2 + $0x60] sm:$0xff]
    %v3390 = vld [vmem:[#allocation2 + $0x68] sm:$0xff]
    %v3391 = vld [vmem:[#allocation2 + $0x70] sm:$0xff]
    %v3392 = vld [vmem:[#allocation2 + $0x78] sm:$0xff]
    %v3393 = vld [vmem:[#allocation2 + $0x80] sm:$0xff]
    %v3394 = vld [vmem:[#allocation2 + $0x88] sm:$0xff]
    %v3395 = vld [vmem:[#allocation2 + $0x90] sm:$0xff]
    %v3396 = vld [vmem:[#allocation2 + $0x98] sm:$0xff]
    %v3397 = vld [vmem:[#allocation2 + $0xa0] sm:$0xff]
    %v3398 = vld [vmem:[#allocation2 + $0xa8] sm:$0xff]
    %v3399 = vld [vmem:[#allocation2 + $0xb0] sm:$0xff]
    %v3400 = vld [vmem:[#allocation2 + $0xb8] sm:$0xff]
    %v3401 = vld [vmem:[#allocation2 + $0xc0] sm:$0xff]
    %v3402 = vld [vmem:[#allocation2 + $0xc8] sm:$0xff]
    %v3403 = vld [vmem:[#allocation2 + $0xd0] sm:$0xff]
    %v3404 = vld [vmem:[#allocation2 + $0xd8] sm:$0xff]
    %v3405 = vld [vmem:[#allocation2 + $0xe0] sm:$0xff]
    %v3406 = vld [vmem:[#allocation2 + $0xe8] sm:$0xff]
    %v3407 = vld [vmem:[#allocation2 + $0xf0] sm:$0xff]
    %v3408 = vld [vmem:[#allocation2 + $0xf8] sm:$0xff]
    %v3409 = vld [vmem:[#allocation2 + $0x100] sm:$0xff]
    %v3410 = vld [vmem:[#allocation2 + $0x108] sm:$0xff]
    %v3411 = vld [vmem:[#allocation2 + $0x110] sm:$0xff]
    %v3412 = vld [vmem:[#allocation2 + $0x118] sm:$0xff]
    %v3413 = vld [vmem:[#allocation2 + $0x120] sm:$0xff]
    %v3414 = vld [vmem:[#allocation2 + $0x128] sm:$0xff]
    %v3415 = vld [vmem:[#allocation2 + $0x130] sm:$0xff]
    %v3416 = vld [vmem:[#allocation2 + $0x138] sm:$0xff]
    %v3417 = vld [vmem:[#allocation2 + $0x140] sm:$0xff]
    %v3418 = vld [vmem:[#allocation2 + $0x148] sm:$0xff]
    %v3419 = vld [vmem:[#allocation2 + $0x150] sm:$0xff]
    %v3420 = vld [vmem:[#allocation2 + $0x158] sm:$0xff]
    %v3421 = vld [vmem:[#allocation2 + $0x160] sm:$0xff]
    %v3422 = vld [vmem:[#allocation2 + $0x168] sm:$0xff]
    %v3423 = vld [vmem:[#allocation2 + $0x170] sm:$0xff]
    %v3424 = vld [vmem:[#allocation2 + $0x178] sm:$0xff]
    %v3425 = vld [vmem:[#allocation2 + $0x180] sm:$0xff]
    %v3426 = vld [vmem:[#allocation2 + $0x188] sm:$0xff]
    %v3427 = vld [vmem:[#allocation2 + $0x190] sm:$0xff]
    %v3428 = vld [vmem:[#allocation2 + $0x198] sm:$0xff]
    %v3429 = vld [vmem:[#allocation2 + $0x1a0] sm:$0xff]
    %v3430 = vld [vmem:[#allocation2 + $0x1a8] sm:$0xff]
    %v3431 = vld [vmem:[#allocation2 + $0x1b0] sm:$0xff]
    %v3432 = vld [vmem:[#allocation2 + $0x1b8] sm:$0xff]
    %v3433 = vld [vmem:[#allocation2 + $0x1c0] sm:$0xff]
    %v3434 = vld [vmem:[#allocation2 + $0x1c8] sm:$0xff]
    %v3435 = vld [vmem:[#allocation2 + $0x1d0] sm:$0xff]
    %v3436 = vld [vmem:[#allocation2 + $0x1d8] sm:$0xff]
    %v3437 = vld [vmem:[#allocation2 + $0x1e0] sm:$0xff]
    %v3438 = vld [vmem:[#allocation2 + $0x1e8] sm:$0xff]
    %v3439 = vld [vmem:[#allocation2 + $0x1f0] sm:$0xff]
    %v3440 = vld [vmem:[#allocation2 + $0x1f8] sm:$0xff]
    %v3441 = vld [vmem:[#allocation11] sm:$0xf]
    %v3442 = vld [vmem:[#allocation11 + $0x4] sm:$0xf]
    %v3443 = vld [vmem:[#allocation11 + $0x8] sm:$0xf]
    %v3444 = vld [vmem:[#allocation11 + $0xc] sm:$0xf]
    %v3449 = vunpack.c.l.b16 %v3441
    %v3450 = vunpack.c.l.b16 %v3442
    %v3451 = vunpack.c.l.b16 %v3443
    %v3452 = vunpack.c.l.b16 %v3444
    %v3453 = vpack.c.b16 %v3450, %v3449
    %v3454 = vpack.c.b16 %v3452, %v3451
    %v3456 = vsel %vm1214, %v3453, 0
    %v3459 = vsel %vm1214, %v3454, 0
    %3461 = vmatprep.subr.bf16.mxu0 %v2974
    %3462 = vmatpush1.bf16.msra.mxu0 %v2973
    %3463 = vmatprep.subr.bf16.mxu0 %v2978
    %3464 = vmatpush1.bf16.msra.mxu0 %v2977
    %3465 = vmatprep.subr.bf16.mxu0 0
    %3466 = vmatpush1.bf16.msra.mxu0 0
    %3467 = vmatprep.subr.bf16.mxu0 0
    %3468 = vmatpush1.bf16.msra.mxu0 0
    %3469 = vmatprep.subr.bf16.mxu0 0
    %3470 = vmatpush1.bf16.msra.mxu0 0
    %3471 = vmatprep.subr.bf16.mxu0 0
    %3472 = vmatpush1.bf16.msra.mxu0 0
    %3473 = vmatprep.subr.bf16.mxu0 0
    %3474 = vmatpush1.bf16.msra.mxu0 0
    %3475 = vmatprep.subr.bf16.mxu0 0
    %3476 = vmatpush1.bf16.msra.mxu0 0
    %3477 = vmatprep.subr.bf16.mxu0 0
    %3478 = vmatpush1.bf16.msra.mxu0 0
    %3479 = vmatprep.subr.bf16.mxu0 0
    %3480 = vmatpush1.bf16.msra.mxu0 0
    %3481 = vmatprep.subr.bf16.mxu0 0
    %3482 = vmatpush1.bf16.msra.mxu0 0
    %3483 = vmatprep.subr.bf16.mxu0 0
    %3484 = vmatpush1.bf16.msra.mxu0 0
    %3485 = vmatprep.subr.bf16.mxu0 0
    %3486 = vmatpush1.bf16.msra.mxu0 0
    %3487 = vmatprep.subr.bf16.mxu0 0
    %3488 = vmatpush1.bf16.msra.mxu0 0
    %3489 = vmatprep.subr.bf16.mxu0 0
    %3490 = vmatpush1.bf16.msra.mxu0 0
    %3491 = vmatprep.subr.bf16.mxu0 0
    %3492 = vmatpush1.bf16.msra.mxu0 0
    %3493 = vmatprep.mubr.bf16.mxu0 0
    %3494 = vmatmul.mubr.bf16.gmra.mrb[0].mxu0 %v3456
    %v3495 = vpop.f32.mrb[0].mxu0
    %v3496 = vadd.f32 0.0, %v3495
    %v3497 = vpop.f32.mrb[0].mxu0
    %v3498 = vadd.f32 0.0, %v3497
    %v3499 = vpop.f32.mrb[0].mxu0
    %v3500 = vadd.f32 0.0, %v3499
    %v3501 = vpop.f32.mrb[0].mxu0
    %v3502 = vadd.f32 0.0, %v3501
    %3503 = vmatprep.mubr.bf16.mxu0 0
    %3504 = vmatmul.mubr.bf16.gmra.mrb[0].mxu0 %v3459
    %v3505 = vpop.f32.mrb[0].mxu0
    %v3506 = vadd.f32 0.0, %v3505
    %v3507 = vpop.f32.mrb[0].mxu0
    %v3508 = vadd.f32 0.0, %v3507
    %v3509 = vpop.f32.mrb[0].mxu0
    %v3510 = vadd.f32 0.0, %v3509
    %v3511 = vpop.f32.mrb[0].mxu0
    %v3512 = vadd.f32 0.0, %v3511
    %3513 = vdwg.mxu0
    %3514 = vmatprep.subr.bf16.mxu0 %v2976
    %3515 = vmatpush1.bf16.msra.mxu0 %v2975
    %3516 = vmatprep.subr.bf16.mxu0 %v2980
    %3517 = vmatpush1.bf16.msra.mxu0 %v2979
    %3518 = vmatprep.subr.bf16.mxu0 0
    %3519 = vmatpush1.bf16.msra.mxu0 0
    %3520 = vmatprep.subr.bf16.mxu0 0
    %3521 = vmatpush1.bf16.msra.mxu0 0
    %3522 = vmatprep.subr.bf16.mxu0 0
    %3523 = vmatpush1.bf16.msra.mxu0 0
    %3524 = vmatprep.subr.bf16.mxu0 0
    %3525 = vmatpush1.bf16.msra.mxu0 0
    %3526 = vmatprep.subr.bf16.mxu0 0
    %3527 = vmatpush1.bf16.msra.mxu0 0
    %3528 = vmatprep.subr.bf16.mxu0 0
    %3529 = vmatpush1.bf16.msra.mxu0 0
    %3530 = vmatprep.subr.bf16.mxu0 0
    %3531 = vmatpush1.bf16.msra.mxu0 0
    %3532 = vmatprep.subr.bf16.mxu0 0
    %3533 = vmatpush1.bf16.msra.mxu0 0
    %3534 = vmatprep.subr.bf16.mxu0 0
    %3535 = vmatpush1.bf16.msra.mxu0 0
    %3536 = vmatprep.subr.bf16.mxu0 0
    %3537 = vmatpush1.bf16.msra.mxu0 0
    %3538 = vmatprep.subr.bf16.mxu0 0
    %3539 = vmatpush1.bf16.msra.mxu0 0
    %3540 = vmatprep.subr.bf16.mxu0 0
    %3541 = vmatpush1.bf16.msra.mxu0 0
    %3542 = vmatprep.subr.bf16.mxu0 0
    %3543 = vmatpush1.bf16.msra.mxu0 0
    %3544 = vmatprep.subr.bf16.mxu0 0
    %3545 = vmatpush1.bf16.msra.mxu0 0
    %3546 = vmatprep.mubr.bf16.mxu0 0
    %3547 = vmatmul.mubr.bf16.gmra.mrb[0].mxu0 %v3456
    %v3548 = vpop.f32.mrb[0].mxu0
    %v3549 = vadd.f32 0.0, %v3548
    %v3550 = vpop.f32.mrb[0].mxu0
    %v3551 = vadd.f32 0.0, %v3550
    %v3552 = vpop.f32.mrb[0].mxu0
    %v3553 = vadd.f32 0.0, %v3552
    %v3554 = vpop.f32.mrb[0].mxu0
    %v3555 = vadd.f32 0.0, %v3554
    %3556 = vmatprep.mubr.bf16.mxu0 0
    %3557 = vmatmul.mubr.bf16.gmra.mrb[0].mxu0 %v3459
    %v3558 = vpop.f32.mrb[0].mxu0
    %v3559 = vadd.f32 0.0, %v3558
    %v3560 = vpop.f32.mrb[0].mxu0
    %v3561 = vadd.f32 0.0, %v3560
    %v3562 = vpop.f32.mrb[0].mxu0
    %v3563 = vadd.f32 0.0, %v3562
    %v3564 = vpop.f32.mrb[0].mxu0
    %v3565 = vadd.f32 0.0, %v3564
    %3566 = vdwg.mxu0
    %v3571 = vunpack.c.l.b16 %v3373
    %v3572 = vunpack.c.h.b16 %v3373
    %v3573 = vunpack.c.l.b16 %v3374
    %v3574 = vunpack.c.h.b16 %v3374
    %v3575 = vunpack.c.l.b16 %v3375
    %v3576 = vunpack.c.h.b16 %v3375
    %v3577 = vunpack.c.l.b16 %v3376
    %v3578 = vunpack.c.h.b16 %v3376
    %v3579 = vpack.c.b16 %v3573, %v3571
    %v3580 = vpack.c.b16 %v3574, %v3572
    %v3581 = vpack.c.b16 %v3577, %v3575
    %v3582 = vpack.c.b16 %v3578, %v3576
    %3587 = vmatprep.subr.bf16.mxu0 %v3378
    %3588 = vmatpush1.bf16.msra.mxu0 %v3377
    %3589 = vmatprep.subr.bf16.mxu0 %v3382
    %3590 = vmatpush1.bf16.msra.mxu0 %v3381
    %3591 = vmatprep.subr.bf16.mxu0 %v3386
    %3592 = vmatpush1.bf16.msra.mxu0 %v3385
    %3593 = vmatprep.subr.bf16.mxu0 %v3390
    %3594 = vmatpush1.bf16.msra.mxu0 %v3389
    %3595 = vmatprep.subr.bf16.mxu0 %v3394
    %3596 = vmatpush1.bf16.msra.mxu0 %v3393
    %3597 = vmatprep.subr.bf16.mxu0 %v3398
    %3598 = vmatpush1.bf16.msra.mxu0 %v3397
    %3599 = vmatprep.subr.bf16.mxu0 %v3402
    %3600 = vmatpush1.bf16.msra.mxu0 %v3401
    %3601 = vmatprep.subr.bf16.mxu0 %v3406
    %3602 = vmatpush1.bf16.msra.mxu0 %v3405
    %3603 = vmatprep.subr.bf16.mxu0 %v3410
    %3604 = vmatpush1.bf16.msra.mxu0 %v3409
    %3605 = vmatprep.subr.bf16.mxu0 %v3414
    %3606 = vmatpush1.bf16.msra.mxu0 %v3413
    %3607 = vmatprep.subr.bf16.mxu0 %v3418
    %3608 = vmatpush1.bf16.msra.mxu0 %v3417
    %3609 = vmatprep.subr.bf16.mxu0 %v3422
    %3610 = vmatpush1.bf16.msra.mxu0 %v3421
    %3611 = vmatprep.subr.bf16.mxu0 %v3426
    %3612 = vmatpush1.bf16.msra.mxu0 %v3425
    %3613 = vmatprep.subr.bf16.mxu0 %v3430
    %3614 = vmatpush1.bf16.msra.mxu0 %v3429
    %3615 = vmatprep.subr.bf16.mxu0 %v3434
    %3616 = vmatpush1.bf16.msra.mxu0 %v3433
    %3617 = vmatprep.subr.bf16.mxu0 %v3438
    %3618 = vmatpush1.bf16.msra.mxu0 %v3437
    %3619 = vmatprep.mubr.bf16.mxu0 %v3580
    %3620 = vmatmul.mubr.bf16.gmra.mrb[0].mxu0 %v3579
    %v3621 = vpop.f32.mrb[0].mxu0
    %v3622 = vadd.f32 %v3496, %v3621
    %v3623 = vpop.f32.mrb[0].mxu0
    %v3624 = vadd.f32 %v3498, %v3623
    %v3625 = vpop.f32.mrb[0].mxu0
    %v3626 = vadd.f32 %v3500, %v3625
    %v3627 = vpop.f32.mrb[0].mxu0
    %v3628 = vadd.f32 %v3502, %v3627
    %3629 = vmatprep.mubr.bf16.mxu0 %v3582
    %3630 = vmatmul.mubr.bf16.gmra.mrb[0].mxu0 %v3581
    %v3631 = vpop.f32.mrb[0].mxu0
    %v3632 = vadd.f32 %v3506, %v3631
    %v3633 = vpop.f32.mrb[0].mxu0
    %v3634 = vadd.f32 %v3508, %v3633
    %v3635 = vpop.f32.mrb[0].mxu0
    %v3636 = vadd.f32 %v3510, %v3635
    %v3637 = vpop.f32.mrb[0].mxu0
    %v3638 = vadd.f32 %v3512, %v3637
    %3639 = vdwg.mxu0
    %3640 = vmatprep.subr.bf16.mxu0 %v3380
    %3641 = vmatpush1.bf16.msra.mxu0 %v3379
    %3642 = vmatprep.subr.bf16.mxu0 %v3384
    %3643 = vmatpush1.bf16.msra.mxu0 %v3383
    %3644 = vmatprep.subr.bf16.mxu0 %v3388
    %3645 = vmatpush1.bf16.msra.mxu0 %v3387
    %3646 = vmatprep.subr.bf16.mxu0 %v3392
    %3647 = vmatpush1.bf16.msra.mxu0 %v3391
    %3648 = vmatprep.subr.bf16.mxu0 %v3396
    %3649 = vmatpush1.bf16.msra.mxu0 %v3395
    %3650 = vmatprep.subr.bf16.mxu0 %v3400
    %3651 = vmatpush1.bf16.msra.mxu0 %v3399
    %3652 = vmatprep.subr.bf16.mxu0 %v3404
    %3653 = vmatpush1.bf16.msra.mxu0 %v3403
    %3654 = vmatprep.subr.bf16.mxu0 %v3408
    %3655 = vmatpush1.bf16.msra.mxu0 %v3407
    %3656 = vmatprep.subr.bf16.mxu0 %v3412
    %3657 = vmatpush1.bf16.msra.mxu0 %v3411
    %3658 = vmatprep.subr.bf16.mxu0 %v3416
    %3659 = vmatpush1.bf16.msra.mxu0 %v3415
    %3660 = vmatprep.subr.bf16.mxu0 %v3420
    %3661 = vmatpush1.bf16.msra.mxu0 %v3419
    %3662 = vmatprep.subr.bf16.mxu0 %v3424
    %3663 = vmatpush1.bf16.msra.mxu0 %v3423
    %3664 = vmatprep.subr.bf16.mxu0 %v3428
    %3665 = vmatpush1.bf16.msra.mxu0 %v3427
    %3666 = vmatprep.subr.bf16.mxu0 %v3432
    %3667 = vmatpush1.bf16.msra.mxu0 %v3431
    %3668 = vmatprep.subr.bf16.mxu0 %v3436
    %3669 = vmatpush1.bf16.msra.mxu0 %v3435
    %3670 = vmatprep.subr.bf16.mxu0 %v3440
    %3671 = vmatpush1.bf16.msra.mxu0 %v3439
    %3672 = vmatprep.mubr.bf16.mxu0 %v3580
    %3673 = vmatmul.mubr.bf16.gmra.mrb[0].mxu0 %v3579
    %v3674 = vpop.f32.mrb[0].mxu0
    %v3675 = vadd.f32 %v3549, %v3674
    %v3676 = vpop.f32.mrb[0].mxu0
    %v3677 = vadd.f32 %v3551, %v3676
    %v3678 = vpop.f32.mrb[0].mxu0
    %v3679 = vadd.f32 %v3553, %v3678
    %v3680 = vpop.f32.mrb[0].mxu0
    %v3681 = vadd.f32 %v3555, %v3680
    %3682 = vmatprep.mubr.bf16.mxu0 %v3582
    %3683 = vmatmul.mubr.bf16.gmra.mrb[0].mxu0 %v3581
    %v3684 = vpop.f32.mrb[0].mxu0
    %v3685 = vadd.f32 %v3559, %v3684
    %v3686 = vpop.f32.mrb[0].mxu0
    %v3687 = vadd.f32 %v3561, %v3686
    %v3688 = vpop.f32.mrb[0].mxu0
    %v3689 = vadd.f32 %v3563, %v3688
    %v3690 = vpop.f32.mrb[0].mxu0
    %v3691 = vadd.f32 %v3565, %v3690
    %3692 = vdwg.mxu0
    %v3693 = vmul.f32 %v3622, %v538
    %v3694 = vmul.f32 %v3624, %v539
    %v3695 = vmul.f32 %v3675, %v540
    %v3696 = vmul.f32 %v3677, %v541
    %v3697 = vmul.f32 %v3626, %v542
    %v3698 = vmul.f32 %v3628, %v543
    %v3699 = vmul.f32 %v3679, %v544
    %v3700 = vmul.f32 %v3681, %v545
    %v3701 = vmul.f32 %v3632, %v546
    %v3702 = vmul.f32 %v3634, %v547
    %v3703 = vmul.f32 %v3685, %v548
    %v3704 = vmul.f32 %v3687, %v549
    %v3705 = vmul.f32 %v3636, %v550
    %v3706 = vmul.f32 %v3638, %v551
    %v3707 = vmul.f32 %v3689, %v552
    %v3708 = vmul.f32 %v3691, %v553
    %v3709 = vpack.c.bf16 %v3697, %v3693
    %v3710 = vpack.c.bf16 %v3698, %v3694
    %v3711 = vpack.c.bf16 %v3699, %v3695
    %v3712 = vpack.c.bf16 %v3700, %v3696
    %v3713 = vpack.c.bf16 %v3705, %v3701
    %v3714 = vpack.c.bf16 %v3706, %v3702
    %v3715 = vpack.c.bf16 %v3707, %v3703
    %v3716 = vpack.c.bf16 %v3708, %v3704
    %3725 = vrot.lane.b32.xlu0 %v3709, 17
    %v3726 = vpop.permute.xlu0 %3725
    %3727 = vrot.lane.b32.xlu0 %v3713, 17
    %v3728 = vpop.permute.xlu0 %3727
    %3729 = vrot.lane.b32.xlu0 %v3710, 17
    %v3730 = vpop.permute.xlu0 %3729
    %3731 = vrot.lane.b32.xlu0 %v3714, 17
    %v3732 = vpop.permute.xlu0 %3731
    %3733 = vrot.lane.b32.xlu0 %v3711, 17
    %v3734 = vpop.permute.xlu0 %3733
    %3735 = vrot.lane.b32.xlu0 %v3715, 17
    %v3736 = vpop.permute.xlu0 %3735
    %3737 = vrot.lane.b32.xlu0 %v3712, 17
    %v3738 = vpop.permute.xlu0 %3737
    %3739 = vrot.lane.b32.xlu0 %v3716, 17
    %v3740 = vpop.permute.xlu0 %3739
    %v3741 = vsel %vm604, %v3734, %v3738
    %v3742 = vsel %vm604, %v3736, %v3740
    %v3743 = vsel %vm604, %v3730, %v3734
    %v3744 = vsel %vm604, %v3732, %v3736
    %v3745 = vsel %vm604, %v3726, %v3730
    %v3746 = vsel %vm604, %v3728, %v3732
    %v3747 = vsel %vm604, %v3738, %v3726
    %v3748 = vsel %vm604, %v3740, %v3728
    %v3757 = vmul.bf16 %v3747, %v627
    %v3758 = vmul.bf16 %v3745, %v634
    %v3759 = vmul.bf16 %v3743, %v641
    %v3760 = vmul.bf16 %v3741, %v648
    %v3761 = vmul.bf16 %v3748, %v627
    %v3762 = vmul.bf16 %v3746, %v634
    %v3763 = vmul.bf16 %v3744, %v641
    %v3764 = vmul.bf16 %v3742, %v648
    %3765 = vst [vmem:[#allocation2] sm:$0xff] %v3757
    %3766 = vst [vmem:[#allocation2 + $0x8] sm:$0xff] %v3758
    %3767 = vst [vmem:[#allocation2 + $0x10] sm:$0xff] %v3759
    %3768 = vst [vmem:[#allocation2 + $0x18] sm:$0xff] %v3760
    %3769 = vst [vmem:[#allocation2 + $0x20] sm:$0xff] %v3761
    %3770 = vst [vmem:[#allocation2 + $0x28] sm:$0xff] %v3762
    %3771 = vst [vmem:[#allocation2 + $0x30] sm:$0xff] %v3763
    %3772 = vst [vmem:[#allocation2 + $0x38] sm:$0xff] %v3764
    %3773 = vrot.lane.b32.xlu0 %v3709, 16
    %v3774 = vpop.permute.xlu0 %3773
    %3775 = vrot.lane.b32.xlu0 %v3713, 16
    %v3776 = vpop.permute.xlu0 %3775
    %3777 = vrot.lane.b32.xlu0 %v3710, 16
    %v3778 = vpop.permute.xlu0 %3777
    %3779 = vrot.lane.b32.xlu0 %v3714, 16
    %v3780 = vpop.permute.xlu0 %3779
    %3781 = vrot.lane.b32.xlu0 %v3711, 16
    %v3782 = vpop.permute.xlu0 %3781
    %3783 = vrot.lane.b32.xlu0 %v3715, 16
    %v3784 = vpop.permute.xlu0 %3783
    %3785 = vrot.lane.b32.xlu0 %v3712, 16
    %v3786 = vpop.permute.xlu0 %3785
    %3787 = vrot.lane.b32.xlu0 %v3716, 16
    %v3788 = vpop.permute.xlu0 %3787
    %v3789 = vsel %vm681, %v3782, %v3786
    %v3790 = vsel %vm681, %v3784, %v3788
    %v3791 = vsel %vm681, %v3778, %v3782
    %v3792 = vsel %vm681, %v3780, %v3784
    %v3793 = vsel %vm681, %v3774, %v3778
    %v3794 = vsel %vm681, %v3776, %v3780
    %v3795 = vsel %vm681, %v3786, %v3774
    %v3796 = vsel %vm681, %v3788, %v3776
    %v3805 = vmul.bf16 %v3795, %v704
    %v3806 = vmul.bf16 %v3793, %v711
    %v3807 = vmul.bf16 %v3791, %v718
    %v3808 = vmul.bf16 %v3789, %v725
    %v3809 = vmul.bf16 %v3796, %v704
    %v3810 = vmul.bf16 %v3794, %v711
    %v3811 = vmul.bf16 %v3792, %v718
    %v3812 = vmul.bf16 %v3790, %v725
    %3813 = vst [vmem:[#allocation2 + $0x40] sm:$0xff] %v3805
    %3814 = vst [vmem:[#allocation2 + $0x48] sm:$0xff] %v3806
    %3815 = vst [vmem:[#allocation2 + $0x50] sm:$0xff] %v3807
    %3816 = vst [vmem:[#allocation2 + $0x58] sm:$0xff] %v3808
    %3817 = vst [vmem:[#allocation2 + $0x60] sm:$0xff] %v3809
    %3818 = vst [vmem:[#allocation2 + $0x68] sm:$0xff] %v3810
    %3819 = vst [vmem:[#allocation2 + $0x70] sm:$0xff] %v3811
    %3820 = vst [vmem:[#allocation2 + $0x78] sm:$0xff] %v3812
    %3821 = vrot.lane.b32.xlu0 %v3709, 15
    %v3822 = vpop.permute.xlu0 %3821
    %3823 = vrot.lane.b32.xlu0 %v3713, 15
    %v3824 = vpop.permute.xlu0 %3823
    %3825 = vrot.lane.b32.xlu0 %v3710, 15
    %v3826 = vpop.permute.xlu0 %3825
    %3827 = vrot.lane.b32.xlu0 %v3714, 15
    %v3828 = vpop.permute.xlu0 %3827
    %3829 = vrot.lane.b32.xlu0 %v3711, 15
    %v3830 = vpop.permute.xlu0 %3829
    %3831 = vrot.lane.b32.xlu0 %v3715, 15
    %v3832 = vpop.permute.xlu0 %3831
    %3833 = vrot.lane.b32.xlu0 %v3712, 15
    %v3834 = vpop.permute.xlu0 %3833
    %3835 = vrot.lane.b32.xlu0 %v3716, 15
    %v3836 = vpop.permute.xlu0 %3835
    %v3837 = vsel %vm758, %v3830, %v3834
    %v3838 = vsel %vm758, %v3832, %v3836
    %v3839 = vsel %vm758, %v3826, %v3830
    %v3840 = vsel %vm758, %v3828, %v3832
    %v3841 = vsel %vm758, %v3822, %v3826
    %v3842 = vsel %vm758, %v3824, %v3828
    %v3843 = vsel %vm758, %v3834, %v3822
    %v3844 = vsel %vm758, %v3836, %v3824
    %v3853 = vmul.bf16 %v3843, %v778
    %v3854 = vmul.bf16 %v3841, %v782
    %v3855 = vmul.bf16 %v3839, %v786
    %v3856 = vmul.bf16 %v3837, %v790
    %v3857 = vmul.bf16 %v3844, %v778
    %v3858 = vmul.bf16 %v3842, %v782
    %v3859 = vmul.bf16 %v3840, %v786
    %v3860 = vmul.bf16 %v3838, %v790
    %3861 = vst [vmem:[#allocation2 + $0x80] sm:$0xff] %v3853
    %3862 = vst [vmem:[#allocation2 + $0x88] sm:$0xff] %v3854
    %3863 = vst [vmem:[#allocation2 + $0x90] sm:$0xff] %v3855
    %3864 = vst [vmem:[#allocation2 + $0x98] sm:$0xff] %v3856
    %3865 = vst [vmem:[#allocation2 + $0xa0] sm:$0xff] %v3857
    %3866 = vst [vmem:[#allocation2 + $0xa8] sm:$0xff] %v3858
    %3867 = vst [vmem:[#allocation2 + $0xb0] sm:$0xff] %v3859
    %3868 = vst [vmem:[#allocation2 + $0xb8] sm:$0xff] %v3860
    %3869 = vrot.lane.b32.xlu0 %v3709, 1
    %v3870 = vpop.permute.xlu0 %3869
    %3871 = vrot.lane.b32.xlu0 %v3713, 1
    %v3872 = vpop.permute.xlu0 %3871
    %3873 = vrot.lane.b32.xlu0 %v3710, 1
    %v3874 = vpop.permute.xlu0 %3873
    %3875 = vrot.lane.b32.xlu0 %v3714, 1
    %v3876 = vpop.permute.xlu0 %3875
    %3877 = vrot.lane.b32.xlu0 %v3711, 1
    %v3878 = vpop.permute.xlu0 %3877
    %3879 = vrot.lane.b32.xlu0 %v3715, 1
    %v3880 = vpop.permute.xlu0 %3879
    %3881 = vrot.lane.b32.xlu0 %v3712, 1
    %v3882 = vpop.permute.xlu0 %3881
    %3883 = vrot.lane.b32.xlu0 %v3716, 1
    %v3884 = vpop.permute.xlu0 %3883
    %v3885 = vsel %vm823, %v3878, %v3882
    %v3886 = vsel %vm823, %v3880, %v3884
    %v3887 = vsel %vm823, %v3874, %v3878
    %v3888 = vsel %vm823, %v3876, %v3880
    %v3889 = vsel %vm823, %v3870, %v3874
    %v3890 = vsel %vm823, %v3872, %v3876
    %v3891 = vsel %vm823, %v3882, %v3870
    %v3892 = vsel %vm823, %v3884, %v3872
    %v3901 = vmul.bf16 %v3891, %v843
    %v3902 = vmul.bf16 %v3889, %v847
    %v3903 = vmul.bf16 %v3887, %v851
    %v3904 = vmul.bf16 %v3885, %v855
    %v3905 = vmul.bf16 %v3892, %v843
    %v3906 = vmul.bf16 %v3890, %v847
    %v3907 = vmul.bf16 %v3888, %v851
    %v3908 = vmul.bf16 %v3886, %v855
    %3909 = vst [vmem:[#allocation2 + $0xc0] sm:$0xff] %v3901
    %3910 = vst [vmem:[#allocation2 + $0xc8] sm:$0xff] %v3902
    %3911 = vst [vmem:[#allocation2 + $0xd0] sm:$0xff] %v3903
    %3912 = vst [vmem:[#allocation2 + $0xd8] sm:$0xff] %v3904
    %3913 = vst [vmem:[#allocation2 + $0xe0] sm:$0xff] %v3905
    %3914 = vst [vmem:[#allocation2 + $0xe8] sm:$0xff] %v3906
    %3915 = vst [vmem:[#allocation2 + $0xf0] sm:$0xff] %v3907
    %3916 = vst [vmem:[#allocation2 + $0xf8] sm:$0xff] %v3908
    %3917 = vrot.lane.b32.xlu0 %v3709, 127
    %v3918 = vpop.permute.xlu0 %3917
    %3919 = vrot.lane.b32.xlu0 %v3713, 127
    %v3920 = vpop.permute.xlu0 %3919
    %3921 = vrot.lane.b32.xlu0 %v3710, 127
    %v3922 = vpop.permute.xlu0 %3921
    %3923 = vrot.lane.b32.xlu0 %v3714, 127
    %v3924 = vpop.permute.xlu0 %3923
    %3925 = vrot.lane.b32.xlu0 %v3711, 127
    %v3926 = vpop.permute.xlu0 %3925
    %3927 = vrot.lane.b32.xlu0 %v3715, 127
    %v3928 = vpop.permute.xlu0 %3927
    %3929 = vrot.lane.b32.xlu0 %v3712, 127
    %v3930 = vpop.permute.xlu0 %3929
    %3931 = vrot.lane.b32.xlu0 %v3716, 127
    %v3932 = vpop.permute.xlu0 %3931
    %v3933 = vsel %vm888, %v3926, %v3930
    %v3934 = vsel %vm888, %v3928, %v3932
    %v3935 = vsel %vm888, %v3922, %v3926
    %v3936 = vsel %vm888, %v3924, %v3928
    %v3937 = vsel %vm888, %v3918, %v3922
    %v3938 = vsel %vm888, %v3920, %v3924
    %v3939 = vsel %vm888, %v3930, %v3918
    %v3940 = vsel %vm888, %v3932, %v3920
    %v3949 = vmul.bf16 %v3937, %v908
    %v3950 = vmul.bf16 %v3935, %v912
    %v3951 = vmul.bf16 %v3933, %v916
    %v3952 = vmul.bf16 %v3939, %v920
    %v3953 = vmul.bf16 %v3938, %v908
    %v3954 = vmul.bf16 %v3936, %v912
    %v3955 = vmul.bf16 %v3934, %v916
    %v3956 = vmul.bf16 %v3940, %v920
    %3957 = vst [vmem:[#allocation2 + $0x100] sm:$0xff] %v3949
    %3958 = vst [vmem:[#allocation2 + $0x108] sm:$0xff] %v3950
    %3959 = vst [vmem:[#allocation2 + $0x110] sm:$0xff] %v3951
    %3960 = vst [vmem:[#allocation2 + $0x118] sm:$0xff] %v3952
    %3961 = vst [vmem:[#allocation2 + $0x120] sm:$0xff] %v3953
    %3962 = vst [vmem:[#allocation2 + $0x128] sm:$0xff] %v3954
    %3963 = vst [vmem:[#allocation2 + $0x130] sm:$0xff] %v3955
    %3964 = vst [vmem:[#allocation2 + $0x138] sm:$0xff] %v3956
    %3965 = vrot.lane.b32.xlu0 %v3709, 113
    %v3966 = vpop.permute.xlu0 %3965
    %3967 = vrot.lane.b32.xlu0 %v3713, 113
    %v3968 = vpop.permute.xlu0 %3967
    %3969 = vrot.lane.b32.xlu0 %v3710, 113
    %v3970 = vpop.permute.xlu0 %3969
    %3971 = vrot.lane.b32.xlu0 %v3714, 113
    %v3972 = vpop.permute.xlu0 %3971
    %3973 = vrot.lane.b32.xlu0 %v3711, 113
    %v3974 = vpop.permute.xlu0 %3973
    %3975 = vrot.lane.b32.xlu0 %v3715, 113
    %v3976 = vpop.permute.xlu0 %3975
    %3977 = vrot.lane.b32.xlu0 %v3712, 113
    %v3978 = vpop.permute.xlu0 %3977
    %3979 = vrot.lane.b32.xlu0 %v3716, 113
    %v3980 = vpop.permute.xlu0 %3979
    %v3981 = vsel %vm953, %v3974, %v3978
    %v3982 = vsel %vm953, %v3976, %v3980
    %v3983 = vsel %vm953, %v3970, %v3974
    %v3984 = vsel %vm953, %v3972, %v3976
    %v3985 = vsel %vm953, %v3966, %v3970
    %v3986 = vsel %vm953, %v3968, %v3972
    %v3987 = vsel %vm953, %v3978, %v3966
    %v3988 = vsel %vm953, %v3980, %v3968
    %v3997 = vmul.bf16 %v3985, %v973
    %v3998 = vmul.bf16 %v3983, %v977
    %v3999 = vmul.bf16 %v3981, %v981
    %v4000 = vmul.bf16 %v3987, %v985
    %v4001 = vmul.bf16 %v3986, %v973
    %v4002 = vmul.bf16 %v3984, %v977
    %v4003 = vmul.bf16 %v3982, %v981
    %v4004 = vmul.bf16 %v3988, %v985
    %4005 = vst [vmem:[#allocation2 + $0x140] sm:$0xff] %v3997
    %4006 = vst [vmem:[#allocation2 + $0x148] sm:$0xff] %v3998
    %4007 = vst [vmem:[#allocation2 + $0x150] sm:$0xff] %v3999
    %4008 = vst [vmem:[#allocation2 + $0x158] sm:$0xff] %v4000
    %4009 = vst [vmem:[#allocation2 + $0x160] sm:$0xff] %v4001
    %4010 = vst [vmem:[#allocation2 + $0x168] sm:$0xff] %v4002
    %4011 = vst [vmem:[#allocation2 + $0x170] sm:$0xff] %v4003
    %4012 = vst [vmem:[#allocation2 + $0x178] sm:$0xff] %v4004
    %4013 = vrot.lane.b32.xlu0 %v3709, 112
    %v4014 = vpop.permute.xlu0 %4013
    %4015 = vrot.lane.b32.xlu0 %v3713, 112
    %v4016 = vpop.permute.xlu0 %4015
    %4017 = vrot.lane.b32.xlu0 %v3710, 112
    %v4018 = vpop.permute.xlu0 %4017
    %4019 = vrot.lane.b32.xlu0 %v3714, 112
    %v4020 = vpop.permute.xlu0 %4019
    %4021 = vrot.lane.b32.xlu0 %v3711, 112
    %v4022 = vpop.permute.xlu0 %4021
    %4023 = vrot.lane.b32.xlu0 %v3715, 112
    %v4024 = vpop.permute.xlu0 %4023
    %4025 = vrot.lane.b32.xlu0 %v3712, 112
    %v4026 = vpop.permute.xlu0 %4025
    %4027 = vrot.lane.b32.xlu0 %v3716, 112
    %v4028 = vpop.permute.xlu0 %4027
    %v4029 = vsel %vm1018, %v4022, %v4026
    %v4030 = vsel %vm1018, %v4024, %v4028
    %v4031 = vsel %vm1018, %v4018, %v4022
    %v4032 = vsel %vm1018, %v4020, %v4024
    %v4033 = vsel %vm1018, %v4014, %v4018
    %v4034 = vsel %vm1018, %v4016, %v4020
    %v4035 = vsel %vm1018, %v4026, %v4014
    %v4036 = vsel %vm1018, %v4028, %v4016
    %v4045 = vmul.bf16 %v4033, %v1038
    %v4046 = vmul.bf16 %v4031, %v1042
    %v4047 = vmul.bf16 %v4029, %v1046
    %v4048 = vmul.bf16 %v4035, %v1050
    %v4049 = vmul.bf16 %v4034, %v1038
    %v4050 = vmul.bf16 %v4032, %v1042
    %v4051 = vmul.bf16 %v4030, %v1046
    %v4052 = vmul.bf16 %v4036, %v1050
    %4053 = vst [vmem:[#allocation2 + $0x180] sm:$0xff] %v4045
    %4054 = vst [vmem:[#allocation2 + $0x188] sm:$0xff] %v4046
    %4055 = vst [vmem:[#allocation2 + $0x190] sm:$0xff] %v4047
    %4056 = vst [vmem:[#allocation2 + $0x198] sm:$0xff] %v4048
    %4057 = vst [vmem:[#allocation2 + $0x1a0] sm:$0xff] %v4049
    %4058 = vst [vmem:[#allocation2 + $0x1a8] sm:$0xff] %v4050
    %4059 = vst [vmem:[#allocation2 + $0x1b0] sm:$0xff] %v4051
    %4060 = vst [vmem:[#allocation2 + $0x1b8] sm:$0xff] %v4052
    %4061 = vrot.lane.b32.xlu0 %v3709, 111
    %v4062 = vpop.permute.xlu0 %4061
    %4063 = vrot.lane.b32.xlu0 %v3713, 111
    %v4064 = vpop.permute.xlu0 %4063
    %4065 = vrot.lane.b32.xlu0 %v3710, 111
    %v4066 = vpop.permute.xlu0 %4065
    %4067 = vrot.lane.b32.xlu0 %v3714, 111
    %v4068 = vpop.permute.xlu0 %4067
    %4069 = vrot.lane.b32.xlu0 %v3711, 111
    %v4070 = vpop.permute.xlu0 %4069
    %4071 = vrot.lane.b32.xlu0 %v3715, 111
    %v4072 = vpop.permute.xlu0 %4071
    %4073 = vrot.lane.b32.xlu0 %v3712, 111
    %v4074 = vpop.permute.xlu0 %4073
    %4075 = vrot.lane.b32.xlu0 %v3716, 111
    %v4076 = vpop.permute.xlu0 %4075
    %v4077 = vsel %vm1083, %v4070, %v4074
    %v4078 = vsel %vm1083, %v4072, %v4076
    %v4079 = vsel %vm1083, %v4066, %v4070
    %v4080 = vsel %vm1083, %v4068, %v4072
    %v4081 = vsel %vm1083, %v4062, %v4066
    %v4082 = vsel %vm1083, %v4064, %v4068
    %v4083 = vsel %vm1083, %v4074, %v4062
    %v4084 = vsel %vm1083, %v4076, %v4064
    %v4093 = vmul.bf16 %v4081, %v1103
    %v4094 = vmul.bf16 %v4079, %v1107
    %v4095 = vmul.bf16 %v4077, %v1111
    %v4096 = vmul.bf16 %v4083, %v1115
    %v4097 = vmul.bf16 %v4082, %v1103
    %v4098 = vmul.bf16 %v4080, %v1107
    %v4099 = vmul.bf16 %v4078, %v1111
    %v4100 = vmul.bf16 %v4084, %v1115
    %4101 = vst [vmem:[#allocation2 + $0x1c0] sm:$0xff] %v4093
    %4102 = vst [vmem:[#allocation2 + $0x1c8] sm:$0xff] %v4094
    %4103 = vst [vmem:[#allocation2 + $0x1d0] sm:$0xff] %v4095
    %4104 = vst [vmem:[#allocation2 + $0x1d8] sm:$0xff] %v4096
    %4105 = vst [vmem:[#allocation2 + $0x1e0] sm:$0xff] %v4097
    %4106 = vst [vmem:[#allocation2 + $0x1e8] sm:$0xff] %v4098
    %4107 = vst [vmem:[#allocation2 + $0x1f0] sm:$0xff] %v4099
    %4108 = vst [vmem:[#allocation2 + $0x1f8] sm:$0xff] %v4100
    %v4109 = vld [vmem:[#allocation12] sm:$0xff]
    %v4110 = vld [vmem:[#allocation12 + $0x8] sm:$0xff]
    %v4111 = vld [vmem:[#allocation12 + $0x10] sm:$0xff]
    %v4112 = vld [vmem:[#allocation12 + $0x18] sm:$0xff]
    %v4113 = vld [vmem:[#allocation2] sm:$0xff]
    %v4114 = vld [vmem:[#allocation2 + $0x8] sm:$0xff]
    %v4115 = vld [vmem:[#allocation2 + $0x10] sm:$0xff]
    %v4116 = vld [vmem:[#allocation2 + $0x18] sm:$0xff]
    %v4117 = vld [vmem:[#allocation2 + $0x20] sm:$0xff]
    %v4118 = vld [vmem:[#allocation2 + $0x28] sm:$0xff]
    %v4119 = vld [vmem:[#allocation2 + $0x30] sm:$0xff]
    %v4120 = vld [vmem:[#allocation2 + $0x38] sm:$0xff]
    %v4121 = vld [vmem:[#allocation2 + $0x40] sm:$0xff]
    %v4122 = vld [vmem:[#allocation2 + $0x48] sm:$0xff]
    %v4123 = vld [vmem:[#allocation2 + $0x50] sm:$0xff]
    %v4124 = vld [vmem:[#allocation2 + $0x58] sm:$0xff]
    %v4125 = vld [vmem:[#allocation2 + $0x60] sm:$0xff]
    %v4126 = vld [vmem:[#allocation2 + $0x68] sm:$0xff]
    %v4127 = vld [vmem:[#allocation2 + $0x70] sm:$0xff]
    %v4128 = vld [vmem:[#allocation2 + $0x78] sm:$0xff]
    %v4129 = vld [vmem:[#allocation2 + $0x80] sm:$0xff]
    %v4130 = vld [vmem:[#allocation2 + $0x88] sm:$0xff]
    %v4131 = vld [vmem:[#allocation2 + $0x90] sm:$0xff]
    %v4132 = vld [vmem:[#allocation2 + $0x98] sm:$0xff]
    %v4133 = vld [vmem:[#allocation2 + $0xa0] sm:$0xff]
    %v4134 = vld [vmem:[#allocation2 + $0xa8] sm:$0xff]
    %v4135 = vld [vmem:[#allocation2 + $0xb0] sm:$0xff]
    %v4136 = vld [vmem:[#allocation2 + $0xb8] sm:$0xff]
    %v4137 = vld [vmem:[#allocation2 + $0xc0] sm:$0xff]
    %v4138 = vld [vmem:[#allocation2 + $0xc8] sm:$0xff]
    %v4139 = vld [vmem:[#allocation2 + $0xd0] sm:$0xff]
    %v4140 = vld [vmem:[#allocation2 + $0xd8] sm:$0xff]
    %v4141 = vld [vmem:[#allocation2 + $0xe0] sm:$0xff]
    %v4142 = vld [vmem:[#allocation2 + $0xe8] sm:$0xff]
    %v4143 = vld [vmem:[#allocation2 + $0xf0] sm:$0xff]
    %v4144 = vld [vmem:[#allocation2 + $0xf8] sm:$0xff]
    %v4145 = vld [vmem:[#allocation2 + $0x100] sm:$0xff]
    %v4146 = vld [vmem:[#allocation2 + $0x108] sm:$0xff]
    %v4147 = vld [vmem:[#allocation2 + $0x110] sm:$0xff]
    %v4148 = vld [vmem:[#allocation2 + $0x118] sm:$0xff]
    %v4149 = vld [vmem:[#allocation2 + $0x120] sm:$0xff]
    %v4150 = vld [vmem:[#allocation2 + $0x128] sm:$0xff]
    %v4151 = vld [vmem:[#allocation2 + $0x130] sm:$0xff]
    %v4152 = vld [vmem:[#allocation2 + $0x138] sm:$0xff]
    %v4153 = vld [vmem:[#allocation2 + $0x140] sm:$0xff]
    %v4154 = vld [vmem:[#allocation2 + $0x148] sm:$0xff]
    %v4155 = vld [vmem:[#allocation2 + $0x150] sm:$0xff]
    %v4156 = vld [vmem:[#allocation2 + $0x158] sm:$0xff]
    %v4157 = vld [vmem:[#allocation2 + $0x160] sm:$0xff]
    %v4158 = vld [vmem:[#allocation2 + $0x168] sm:$0xff]
    %v4159 = vld [vmem:[#allocation2 + $0x170] sm:$0xff]
    %v4160 = vld [vmem:[#allocation2 + $0x178] sm:$0xff]
    %v4161 = vld [vmem:[#allocation2 + $0x180] sm:$0xff]
    %v4162 = vld [vmem:[#allocation2 + $0x188] sm:$0xff]
    %v4163 = vld [vmem:[#allocation2 + $0x190] sm:$0xff]
    %v4164 = vld [vmem:[#allocation2 + $0x198] sm:$0xff]
    %v4165 = vld [vmem:[#allocation2 + $0x1a0] sm:$0xff]
    %v4166 = vld [vmem:[#allocation2 + $0x1a8] sm:$0xff]
    %v4167 = vld [vmem:[#allocation2 + $0x1b0] sm:$0xff]
    %v4168 = vld [vmem:[#allocation2 + $0x1b8] sm:$0xff]
    %v4169 = vld [vmem:[#allocation2 + $0x1c0] sm:$0xff]
    %v4170 = vld [vmem:[#allocation2 + $0x1c8] sm:$0xff]
    %v4171 = vld [vmem:[#allocation2 + $0x1d0] sm:$0xff]
    %v4172 = vld [vmem:[#allocation2 + $0x1d8] sm:$0xff]
    %v4173 = vld [vmem:[#allocation2 + $0x1e0] sm:$0xff]
    %v4174 = vld [vmem:[#allocation2 + $0x1e8] sm:$0xff]
    %v4175 = vld [vmem:[#allocation2 + $0x1f0] sm:$0xff]
    %v4176 = vld [vmem:[#allocation2 + $0x1f8] sm:$0xff]
    %v4177 = vld [vmem:[#allocation14] sm:$0xf]
    %v4178 = vld [vmem:[#allocation14 + $0x4] sm:$0xf]
    %v4179 = vld [vmem:[#allocation14 + $0x8] sm:$0xf]
    %v4180 = vld [vmem:[#allocation14 + $0xc] sm:$0xf]
    %v4185 = vunpack.c.l.b16 %v4177
    %v4186 = vunpack.c.l.b16 %v4178
    %v4187 = vunpack.c.l.b16 %v4179
    %v4188 = vunpack.c.l.b16 %v4180
    %v4189 = vpack.c.b16 %v4186, %v4185
    %v4190 = vpack.c.b16 %v4188, %v4187
    %v4192 = vsel %vm1214, %v4189, 0
    %v4195 = vsel %vm1214, %v4190, 0
    %4197 = vmatprep.subr.bf16.mxu0 %v3710
    %4198 = vmatpush1.bf16.msra.mxu0 %v3709
    %4199 = vmatprep.subr.bf16.mxu0 %v3714
    %4200 = vmatpush1.bf16.msra.mxu0 %v3713
    %4201 = vmatprep.subr.bf16.mxu0 0
    %4202 = vmatpush1.bf16.msra.mxu0 0
    %4203 = vmatprep.subr.bf16.mxu0 0
    %4204 = vmatpush1.bf16.msra.mxu0 0
    %4205 = vmatprep.subr.bf16.mxu0 0
    %4206 = vmatpush1.bf16.msra.mxu0 0
    %4207 = vmatprep.subr.bf16.mxu0 0
    %4208 = vmatpush1.bf16.msra.mxu0 0
    %4209 = vmatprep.subr.bf16.mxu0 0
    %4210 = vmatpush1.bf16.msra.mxu0 0
    %4211 = vmatprep.subr.bf16.mxu0 0
    %4212 = vmatpush1.bf16.msra.mxu0 0
    %4213 = vmatprep.subr.bf16.mxu0 0
    %4214 = vmatpush1.bf16.msra.mxu0 0
    %4215 = vmatprep.subr.bf16.mxu0 0
    %4216 = vmatpush1.bf16.msra.mxu0 0
    %4217 = vmatprep.subr.bf16.mxu0 0
    %4218 = vmatpush1.bf16.msra.mxu0 0
    %4219 = vmatprep.subr.bf16.mxu0 0
    %4220 = vmatpush1.bf16.msra.mxu0 0
    %4221 = vmatprep.subr.bf16.mxu0 0
    %4222 = vmatpush1.bf16.msra.mxu0 0
    %4223 = vmatprep.subr.bf16.mxu0 0
    %4224 = vmatpush1.bf16.msra.mxu0 0
    %4225 = vmatprep.subr.bf16.mxu0 0
    %4226 = vmatpush1.bf16.msra.mxu0 0
    %4227 = vmatprep.subr.bf16.mxu0 0
    %4228 = vmatpush1.bf16.msra.mxu0 0
    %4229 = vmatprep.mubr.bf16.mxu0 0
    %4230 = vmatmul.mubr.bf16.gmra.mrb[0].mxu0 %v4192
    %v4231 = vpop.f32.mrb[0].mxu0
    %v4232 = vadd.f32 0.0, %v4231
    %v4233 = vpop.f32.mrb[0].mxu0
    %v4234 = vadd.f32 0.0, %v4233
    %v4235 = vpop.f32.mrb[0].mxu0
    %v4236 = vadd.f32 0.0, %v4235
    %v4237 = vpop.f32.mrb[0].mxu0
    %v4238 = vadd.f32 0.0, %v4237
    %4239 = vmatprep.mubr.bf16.mxu0 0
    %4240 = vmatmul.mubr.bf16.gmra.mrb[0].mxu0 %v4195
    %v4241 = vpop.f32.mrb[0].mxu0
    %v4242 = vadd.f32 0.0, %v4241
    %v4243 = vpop.f32.mrb[0].mxu0
    %v4244 = vadd.f32 0.0, %v4243
    %v4245 = vpop.f32.mrb[0].mxu0
    %v4246 = vadd.f32 0.0, %v4245
    %v4247 = vpop.f32.mrb[0].mxu0
    %v4248 = vadd.f32 0.0, %v4247
    %4249 = vdwg.mxu0
    %4250 = vmatprep.subr.bf16.mxu0 %v3712
    %4251 = vmatpush1.bf16.msra.mxu0 %v3711
    %4252 = vmatprep.subr.bf16.mxu0 %v3716
    %4253 = vmatpush1.bf16.msra.mxu0 %v3715
    %4254 = vmatprep.subr.bf16.mxu0 0
    %4255 = vmatpush1.bf16.msra.mxu0 0
    %4256 = vmatprep.subr.bf16.mxu0 0
    %4257 = vmatpush1.bf16.msra.mxu0 0
    %4258 = vmatprep.subr.bf16.mxu0 0
    %4259 = vmatpush1.bf16.msra.mxu0 0
    %4260 = vmatprep.subr.bf16.mxu0 0
    %4261 = vmatpush1.bf16.msra.mxu0 0
    %4262 = vmatprep.subr.bf16.mxu0 0
    %4263 = vmatpush1.bf16.msra.mxu0 0
    %4264 = vmatprep.subr.bf16.mxu0 0
    %4265 = vmatpush1.bf16.msra.mxu0 0
    %4266 = vmatprep.subr.bf16.mxu0 0
    %4267 = vmatpush1.bf16.msra.mxu0 0
    %4268 = vmatprep.subr.bf16.mxu0 0
    %4269 = vmatpush1.bf16.msra.mxu0 0
    %4270 = vmatprep.subr.bf16.mxu0 0
    %4271 = vmatpush1.bf16.msra.mxu0 0
    %4272 = vmatprep.subr.bf16.mxu0 0
    %4273 = vmatpush1.bf16.msra.mxu0 0
    %4274 = vmatprep.subr.bf16.mxu0 0
    %4275 = vmatpush1.bf16.msra.mxu0 0
    %4276 = vmatprep.subr.bf16.mxu0 0
    %4277 = vmatpush1.bf16.msra.mxu0 0
    %4278 = vmatprep.subr.bf16.mxu0 0
    %4279 = vmatpush1.bf16.msra.mxu0 0
    %4280 = vmatprep.subr.bf16.mxu0 0
    %4281 = vmatpush1.bf16.msra.mxu0 0
    %4282 = vmatprep.mubr.bf16.mxu0 0
    %4283 = vmatmul.mubr.bf16.gmra.mrb[0].mxu0 %v4192
    %v4284 = vpop.f32.mrb[0].mxu0
    %v4285 = vadd.f32 0.0, %v4284
    %v4286 = vpop.f32.mrb[0].mxu0
    %v4287 = vadd.f32 0.0, %v4286
    %v4288 = vpop.f32.mrb[0].mxu0
    %v4289 = vadd.f32 0.0, %v4288
    %v4290 = vpop.f32.mrb[0].mxu0
    %v4291 = vadd.f32 0.0, %v4290
    %4292 = vmatprep.mubr.bf16.mxu0 0
    %4293 = vmatmul.mubr.bf16.gmra.mrb[0].mxu0 %v4195
    %v4294 = vpop.f32.mrb[0].mxu0
    %v4295 = vadd.f32 0.0, %v4294
    %v4296 = vpop.f32.mrb[0].mxu0
    %v4297 = vadd.f32 0.0, %v4296
    %v4298 = vpop.f32.mrb[0].mxu0
    %v4299 = vadd.f32 0.0, %v4298
    %v4300 = vpop.f32.mrb[0].mxu0
    %v4301 = vadd.f32 0.0, %v4300
    %4302 = vdwg.mxu0
    %v4307 = vunpack.c.l.b16 %v4109
    %v4308 = vunpack.c.h.b16 %v4109
    %v4309 = vunpack.c.l.b16 %v4110
    %v4310 = vunpack.c.h.b16 %v4110
    %v4311 = vunpack.c.l.b16 %v4111
    %v4312 = vunpack.c.h.b16 %v4111
    %v4313 = vunpack.c.l.b16 %v4112
    %v4314 = vunpack.c.h.b16 %v4112
    %v4315 = vpack.c.b16 %v4309, %v4307
    %v4316 = vpack.c.b16 %v4310, %v4308
    %v4317 = vpack.c.b16 %v4313, %v4311
    %v4318 = vpack.c.b16 %v4314, %v4312
    %4323 = vmatprep.subr.bf16.mxu0 %v4114
    %4324 = vmatpush1.bf16.msra.mxu0 %v4113
    %4325 = vmatprep.subr.bf16.mxu0 %v4118
    %4326 = vmatpush1.bf16.msra.mxu0 %v4117
    %4327 = vmatprep.subr.bf16.mxu0 %v4122
    %4328 = vmatpush1.bf16.msra.mxu0 %v4121
    %4329 = vmatprep.subr.bf16.mxu0 %v4126
    %4330 = vmatpush1.bf16.msra.mxu0 %v4125
    %4331 = vmatprep.subr.bf16.mxu0 %v4130
    %4332 = vmatpush1.bf16.msra.mxu0 %v4129
    %4333 = vmatprep.subr.bf16.mxu0 %v4134
    %4334 = vmatpush1.bf16.msra.mxu0 %v4133
    %4335 = vmatprep.subr.bf16.mxu0 %v4138
    %4336 = vmatpush1.bf16.msra.mxu0 %v4137
    %4337 = vmatprep.subr.bf16.mxu0 %v4142
    %4338 = vmatpush1.bf16.msra.mxu0 %v4141
    %4339 = vmatprep.subr.bf16.mxu0 %v4146
    %4340 = vmatpush1.bf16.msra.mxu0 %v4145
    %4341 = vmatprep.subr.bf16.mxu0 %v4150
    %4342 = vmatpush1.bf16.msra.mxu0 %v4149
    %4343 = vmatprep.subr.bf16.mxu0 %v4154
    %4344 = vmatpush1.bf16.msra.mxu0 %v4153
    %4345 = vmatprep.subr.bf16.mxu0 %v4158
    %4346 = vmatpush1.bf16.msra.mxu0 %v4157
    %4347 = vmatprep.subr.bf16.mxu0 %v4162
    %4348 = vmatpush1.bf16.msra.mxu0 %v4161
    %4349 = vmatprep.subr.bf16.mxu0 %v4166
    %4350 = vmatpush1.bf16.msra.mxu0 %v4165
    %4351 = vmatprep.subr.bf16.mxu0 %v4170
    %4352 = vmatpush1.bf16.msra.mxu0 %v4169
    %4353 = vmatprep.subr.bf16.mxu0 %v4174
    %4354 = vmatpush1.bf16.msra.mxu0 %v4173
    %4355 = vmatprep.mubr.bf16.mxu0 %v4316
    %4356 = vmatmul.mubr.bf16.gmra.mrb[0].mxu0 %v4315
    %v4357 = vpop.f32.mrb[0].mxu0
    %v4358 = vadd.f32 %v4232, %v4357
    %v4359 = vpop.f32.mrb[0].mxu0
    %v4360 = vadd.f32 %v4234, %v4359
    %v4361 = vpop.f32.mrb[0].mxu0
    %v4362 = vadd.f32 %v4236, %v4361
    %v4363 = vpop.f32.mrb[0].mxu0
    %v4364 = vadd.f32 %v4238, %v4363
    %4365 = vmatprep.mubr.bf16.mxu0 %v4318
    %4366 = vmatmul.mubr.bf16.gmra.mrb[0].mxu0 %v4317
    %v4367 = vpop.f32.mrb[0].mxu0
    %v4368 = vadd.f32 %v4242, %v4367
    %v4369 = vpop.f32.mrb[0].mxu0
    %v4370 = vadd.f32 %v4244, %v4369
    %v4371 = vpop.f32.mrb[0].mxu0
    %v4372 = vadd.f32 %v4246, %v4371
    %v4373 = vpop.f32.mrb[0].mxu0
    %v4374 = vadd.f32 %v4248, %v4373
    %4375 = vdwg.mxu0
    %4376 = vmatprep.subr.bf16.mxu0 %v4116
    %4377 = vmatpush1.bf16.msra.mxu0 %v4115
    %4378 = vmatprep.subr.bf16.mxu0 %v4120
    %4379 = vmatpush1.bf16.msra.mxu0 %v4119
    %4380 = vmatprep.subr.bf16.mxu0 %v4124
    %4381 = vmatpush1.bf16.msra.mxu0 %v4123
    %4382 = vmatprep.subr.bf16.mxu0 %v4128
    %4383 = vmatpush1.bf16.msra.mxu0 %v4127
    %4384 = vmatprep.subr.bf16.mxu0 %v4132
    %4385 = vmatpush1.bf16.msra.mxu0 %v4131
    %4386 = vmatprep.subr.bf16.mxu0 %v4136
    %4387 = vmatpush1.bf16.msra.mxu0 %v4135
    %4388 = vmatprep.subr.bf16.mxu0 %v4140
    %4389 = vmatpush1.bf16.msra.mxu0 %v4139
    %4390 = vmatprep.subr.bf16.mxu0 %v4144
    %4391 = vmatpush1.bf16.msra.mxu0 %v4143
    %4392 = vmatprep.subr.bf16.mxu0 %v4148
    %4393 = vmatpush1.bf16.msra.mxu0 %v4147
    %4394 = vmatprep.subr.bf16.mxu0 %v4152
    %4395 = vmatpush1.bf16.msra.mxu0 %v4151
    %4396 = vmatprep.subr.bf16.mxu0 %v4156
    %4397 = vmatpush1.bf16.msra.mxu0 %v4155
    %4398 = vmatprep.subr.bf16.mxu0 %v4160
    %4399 = vmatpush1.bf16.msra.mxu0 %v4159
    %4400 = vmatprep.subr.bf16.mxu0 %v4164
    %4401 = vmatpush1.bf16.msra.mxu0 %v4163
    %4402 = vmatprep.subr.bf16.mxu0 %v4168
    %4403 = vmatpush1.bf16.msra.mxu0 %v4167
    %4404 = vmatprep.subr.bf16.mxu0 %v4172
    %4405 = vmatpush1.bf16.msra.mxu0 %v4171
    %4406 = vmatprep.subr.bf16.mxu0 %v4176
    %4407 = vmatpush1.bf16.msra.mxu0 %v4175
    %4408 = vmatprep.mubr.bf16.mxu0 %v4316
    %4409 = vmatmul.mubr.bf16.gmra.mrb[0].mxu0 %v4315
    %v4410 = vpop.f32.mrb[0].mxu0
    %v4411 = vadd.f32 %v4285, %v4410
    %v4412 = vpop.f32.mrb[0].mxu0
    %v4413 = vadd.f32 %v4287, %v4412
    %v4414 = vpop.f32.mrb[0].mxu0
    %v4415 = vadd.f32 %v4289, %v4414
    %v4416 = vpop.f32.mrb[0].mxu0
    %v4417 = vadd.f32 %v4291, %v4416
    %4418 = vmatprep.mubr.bf16.mxu0 %v4318
    %4419 = vmatmul.mubr.bf16.gmra.mrb[0].mxu0 %v4317
    %v4420 = vpop.f32.mrb[0].mxu0
    %v4421 = vadd.f32 %v4295, %v4420
    %v4422 = vpop.f32.mrb[0].mxu0
    %v4423 = vadd.f32 %v4297, %v4422
    %v4424 = vpop.f32.mrb[0].mxu0
    %v4425 = vadd.f32 %v4299, %v4424
    %v4426 = vpop.f32.mrb[0].mxu0
    %v4427 = vadd.f32 %v4301, %v4426
    %4428 = vdwg.mxu0
    %v4429 = vsub.f32 %v2957, %v4358
    %v4430 = vsub.f32 %v2958, %v4360
    %v4431 = vsub.f32 %v2959, %v4411
    %v4432 = vsub.f32 %v2960, %v4413
    %v4433 = vsub.f32 %v2961, %v4362
    %v4434 = vsub.f32 %v2962, %v4364
    %v4435 = vsub.f32 %v2963, %v4415
    %v4436 = vsub.f32 %v2964, %v4417
    %v4437 = vsub.f32 %v2965, %v4368
    %v4438 = vsub.f32 %v2966, %v4370
    %v4439 = vsub.f32 %v2967, %v4421
    %v4440 = vsub.f32 %v2968, %v4423
    %v4441 = vsub.f32 %v2969, %v4372
    %v4442 = vsub.f32 %v2970, %v4374
    %v4443 = vsub.f32 %v2971, %v4425
    %v4444 = vsub.f32 %v2972, %v4427
    %v4445 = vadd.f32 %v4429, %v1382
    %v4446 = vadd.f32 %v4430, %v1384
    %v4447 = vadd.f32 %v4431, %v1435
    %v4448 = vadd.f32 %v4432, %v1437
    %v4449 = vadd.f32 %v4433, %v1386
    %v4450 = vadd.f32 %v4434, %v1388
    %v4451 = vadd.f32 %v4435, %v1439
    %v4452 = vadd.f32 %v4436, %v1441
    %v4453 = vadd.f32 %v4437, %v1392
    %v4454 = vadd.f32 %v4438, %v1394
    %v4455 = vadd.f32 %v4439, %v1445
    %v4456 = vadd.f32 %v4440, %v1447
    %v4457 = vadd.f32 %v4441, %v1396
    %v4458 = vadd.f32 %v4442, %v1398
    %v4459 = vadd.f32 %v4443, %v1449
    %v4460 = vadd.f32 %v4444, %v1451
    %v4461 = vmax.f32 %v4445, 0.0
    %v4462 = vmax.f32 %v4446, 0.0
    %v4463 = vmax.f32 %v4447, 0.0
    %v4464 = vmax.f32 %v4448, 0.0
    %v4465 = vmax.f32 %v4449, 0.0
    %v4466 = vmax.f32 %v4450, 0.0
    %v4467 = vmax.f32 %v4451, 0.0
    %v4468 = vmax.f32 %v4452, 0.0
    %v4469 = vmax.f32 %v4453, 0.0
    %v4470 = vmax.f32 %v4454, 0.0
    %v4471 = vmax.f32 %v4455, 0.0
    %v4472 = vmax.f32 %v4456, 0.0
    %v4473 = vmax.f32 %v4457, 0.0
    %v4474 = vmax.f32 %v4458, 0.0
    %v4475 = vmax.f32 %v4459, 0.0
    %v4476 = vmax.f32 %v4460, 0.0
    %v4477 = vld [vmem:[%s11] sm:$0xf]
    %v4478 = vpack.c.bf16 %v4465, %v4461
    %v4479 = vpack.c.bf16 %v4466, %v4462
    %v4480 = vpack.c.bf16 %v4467, %v4463
    %v4481 = vpack.c.bf16 %v4468, %v4464
    %v4482 = vpack.c.bf16 %v4473, %v4469
    %v4483 = vpack.c.bf16 %v4474, %v4470
    %v4484 = vpack.c.bf16 %v4475, %v4471
    %v4485 = vpack.c.bf16 %v4476, %v4472
    %v4487 = vsel %vm1214, %v4477, 0
    %4489 = vmatprep.subr.bf16.mxu0 %v4479
    %4490 = vmatpush1.bf16.msra.mxu0 %v4478
    %4491 = vmatprep.subr.bf16.mxu0 %v4483
    %4492 = vmatpush1.bf16.msra.mxu0 %v4482
    %4493 = vmatprep.subr.bf16.mxu0 0
    %4494 = vmatpush1.bf16.msra.mxu0 0
    %4495 = vmatprep.subr.bf16.mxu0 0
    %4496 = vmatpush1.bf16.msra.mxu0 0
    %4497 = vmatprep.subr.bf16.mxu0 0
    %4498 = vmatpush1.bf16.msra.mxu0 0
    %4499 = vmatprep.subr.bf16.mxu0 0
    %4500 = vmatpush1.bf16.msra.mxu0 0
    %4501 = vmatprep.subr.bf16.mxu0 0
    %4502 = vmatpush1.bf16.msra.mxu0 0
    %4503 = vmatprep.subr.bf16.mxu0 0
    %4504 = vmatpush1.bf16.msra.mxu0 0
    %4505 = vmatprep.subr.bf16.mxu0 0
    %4506 = vmatpush1.bf16.msra.mxu0 0
    %4507 = vmatprep.subr.bf16.mxu0 0
    %4508 = vmatpush1.bf16.msra.mxu0 0
    %4509 = vmatprep.subr.bf16.mxu0 0
    %4510 = vmatpush1.bf16.msra.mxu0 0
    %4511 = vmatprep.subr.bf16.mxu0 0
    %4512 = vmatpush1.bf16.msra.mxu0 0
    %4513 = vmatprep.subr.bf16.mxu0 0
    %4514 = vmatpush1.bf16.msra.mxu0 0
    %4515 = vmatprep.subr.bf16.mxu0 0
    %4516 = vmatpush1.bf16.msra.mxu0 0
    %4517 = vmatprep.subr.bf16.mxu0 0
    %4518 = vmatpush1.bf16.msra.mxu0 0
    %4519 = vmatprep.subr.bf16.mxu0 0
    %4520 = vmatpush1.bf16.msra.mxu0 0
    %4521 = vmatprep.mubr.bf16.mxu0 0
    %4522 = vmatmul.mubr.bf16.gmra.mrb[0].mxu0 %v4487
    %v4523 = vpop.f32.mrb[0].mxu0
    %v4524 = vadd.f32 0.0, %v4523
    %v4525 = vpop.f32.mrb[0].mxu0
    %v4526 = vadd.f32 0.0, %v4525
    %v4527 = vpop.f32.mrb[0].mxu0
    %v4528 = vpop.f32.mrb[0].mxu0
    %4529 = vdwg.mxu0
    %4530 = vmatprep.subr.bf16.mxu0 %v4481
    %4531 = vmatpush1.bf16.msra.mxu0 %v4480
    %4532 = vmatprep.subr.bf16.mxu0 %v4485
    %4533 = vmatpush1.bf16.msra.mxu0 %v4484
    %4534 = vmatprep.subr.bf16.mxu0 0
    %4535 = vmatpush1.bf16.msra.mxu0 0
    %4536 = vmatprep.subr.bf16.mxu0 0
    %4537 = vmatpush1.bf16.msra.mxu0 0
    %4538 = vmatprep.subr.bf16.mxu0 0
    %4539 = vmatpush1.bf16.msra.mxu0 0
    %4540 = vmatprep.subr.bf16.mxu0 0
    %4541 = vmatpush1.bf16.msra.mxu0 0
    %4542 = vmatprep.subr.bf16.mxu0 0
    %4543 = vmatpush1.bf16.msra.mxu0 0
    %4544 = vmatprep.subr.bf16.mxu0 0
    %4545 = vmatpush1.bf16.msra.mxu0 0
    %4546 = vmatprep.subr.bf16.mxu0 0
    %4547 = vmatpush1.bf16.msra.mxu0 0
    %4548 = vmatprep.subr.bf16.mxu0 0
    %4549 = vmatpush1.bf16.msra.mxu0 0
    %4550 = vmatprep.subr.bf16.mxu0 0
    %4551 = vmatpush1.bf16.msra.mxu0 0
    %4552 = vmatprep.subr.bf16.mxu0 0
    %4553 = vmatpush1.bf16.msra.mxu0 0
    %4554 = vmatprep.subr.bf16.mxu0 0
    %4555 = vmatpush1.bf16.msra.mxu0 0
    %4556 = vmatprep.subr.bf16.mxu0 0
    %4557 = vmatpush1.bf16.msra.mxu0 0
    %4558 = vmatprep.subr.bf16.mxu0 0
    %4559 = vmatpush1.bf16.msra.mxu0 0
    %4560 = vmatprep.subr.bf16.mxu0 0
    %4561 = vmatpush1.bf16.msra.mxu0 0
    %4562 = vmatprep.mubr.bf16.mxu0 0
    %4563 = vmatmul.mubr.bf16.gmra.mrb[0].mxu0 %v4487
    %v4564 = vpop.f32.mrb[0].mxu0
    %v4565 = vadd.f32 0.0, %v4564
    %v4566 = vpop.f32.mrb[0].mxu0
    %v4567 = vadd.f32 0.0, %v4566
    %v4568 = vpop.f32.mrb[0].mxu0
    %v4569 = vpop.f32.mrb[0].mxu0
    %4570 = vdwg.mxu0
    %4571 = vst [vmem:[#allocation15] sm:$0xff] %v4524
    %4572 = vst [vmem:[#allocation15 + $0x8] sm:$0xff] %v4526
    %4573 = vst [vmem:[#allocation15 + $0x10] sm:$0xff] %v4565
    %4574 = vst [vmem:[#allocation15 + $0x18] sm:$0xff] %v4567
    // Predicated region
    $region78: #{tpu_custom_call.1} parent=1 // pred_check
      _
    $region79: #{tpu_custom_call.1} parent=1 // pred_check_branch
      %4576 = sbr.rel (0) target = $region81
    $region80: #{tpu_custom_call.1} parent=1 // pred_region
      %s4578 = ssub.s32 512, 512
      %4579 = vsyncadd [#allocation5], %s4578
      %s4581 = sshll.u32 [#allocation15], 4
      %s4582 = int_to_ptr.vmem [resolvable:$true] %s4581
      %4584 = dma.vmem_to_hbm [thread:$0]  %s4582, 512, %s12, [#allocation5]
    $region81: #{tpu_custom_call.1} parent=1 // pred_fallthru
      _
    // Predicated region
    $region82: #{tpu_custom_call.1} parent=1 // pred_check
      _
    $region83: #{tpu_custom_call.1} parent=1 // pred_check_branch
      %4586 = sbr.rel (0) target = $region85
    $region84: #{tpu_custom_call.1} parent=1 // pred_region
      %4587 = dma.done [#allocation5], 512
    $region85: #{tpu_custom_call.1} parent=1 // pred_fallthru
      _
    %4588 = vsyncpa [#allocation4], 1
    %4589 = vsyncpa [#allocation7], 1
    %4590 = vsyncpa [#allocation10], 1
    %4591 = vsyncpa [#allocation13], 1
    %4592 = vsyncpa [#allocation5], 1

</llo_original>
